<compile_context>
chip_gen: v5e
topology: v5e:2x2
jax: 0.10.0
libtpu: 0.0.40
codegen_flags: <defaults>
</compile_context>

<pallas_src>
import jax
import jax.numpy as jnp
from jax.experimental import pallas as pl
from jax.experimental.pallas import tpu as pltpu


# ----------------------------- fixed SimpleNet geometry -----------------------------
H0 = W0 = 32                          # input image
KH = KW = 5                           # conv kernel
IC1, OC1 = 3, 6                       # conv1
IC2, OC2 = 6, 16                      # conv2
N1 = H0 * W0                          # 1024 flat pixels (conv1 domain)
H1 = W1 = (H0 - KH + 1) // 2          # 14 after pool1
N2 = H1 * W1                          # 196 flat pixels (conv2 domain)
H2 = W2 = (H1 - KH + 1) // 2          # 5 after pool2
NPOOL2 = H2 * W2                      # 25
M1 = N1 - W0 - 1                      # 991 window-max columns (pool1)
M2 = N2 - W1 - 1                      # 181 window-max columns (pool2)
HALO1 = (KH - 1) * W0 + (KW - 1)      # 132
HALO2 = (KH - 1) * W1 + (KW - 1)      # 60
XPAD = 1280                           # N1 + HALO1 = 1156 rounded up to a 128-lane multiple
P1PAD = 256                           # N2 + HALO2 = 256 exactly (pool1 out incl. zero halo)
P2PAD = 32                            # NPOOL2 = 25 rounded up (zero-padded)
HID = 120
HID_PAD = 128
K1 = KH * KW * IC1                    # 75  (conv1 contraction)
K2 = KH * KW * IC2                    # 150 (conv2 contraction)


def _round_up(x, m):
    return -(-x // m) * m


# ------------------------------------ fused kernel -----------------------------------

def _simplenet_kernel(x_ref, w1_ref, b1_ref, w2_ref, b2_ref,
                      s1_ref, s2_ref, wf1_ref, bf1_ref, wf2_ref, bf2_ref,
                      o_ref,
                      patch1, patch2, y1s, p1s, y2s, p2s):
    """Whole SimpleNet forward for ONE image (grid iterates over the batch).

    Activations are channels-first 2-D slabs (C, flat_pixels) with the flat pixel index on
    lanes.  All "don't-care" columns (wrapped conv outputs, padding) stay FINITE (zero-padded
    halo + ReLU), and the 0/1 selection matmuls only ever pick valid columns, so no NaN/Inf
    can leak into selected outputs.
    """
    f32 = jnp.float32

    # ---- conv1 (+bias+ReLU): (3,32,32) -> (6,28,28) on the 1024-col flat slab -----------
    # im2col: stack the 25 taps into the contraction dim (rows (kh*KW+kw)*IC1 + ic).
    for kh in range(KH):
        for kw in range(KW):
            k = kh * KW + kw
            patch1[pl.ds(k * IC1, IC1), :] = x_ref[:, pl.ds(kh * W0 + kw, N1)]
    y1 = jnp.dot(w1_ref[...], patch1[pl.ds(0, K1), :],
                 preferred_element_type=f32) + b1_ref[...]          # (6, 1024)
    y1s[pl.ds(0, OC1), :] = jnp.maximum(y1, 0.0)

    # ---- pool1: 2x2 window max via shifted slices + exact 0/1 lane-compaction matmul ----
    m1 = jnp.maximum(
        jnp.maximum(y1s[pl.ds(0, OC1), pl.ds(0, M1)],
                    y1s[pl.ds(0, OC1), pl.ds(1, M1)]),
        jnp.maximum(y1s[pl.ds(0, OC1), pl.ds(W0, M1)],
                    y1s[pl.ds(0, OC1), pl.ds(W0 + 1, M1)]))          # (6, 991)
    # (6, 256): cols [0,196) = pooled 14x14 map, cols [196,256) = exact zeros (conv2 halo)
    p1s[pl.ds(0, OC1), :] = jnp.dot(m1, s1_ref[...], preferred_element_type=f32)

    # ---- conv2 (+bias+ReLU): (6,14,14) -> (16,10,10) -------------------------------------
    for kh in range(KH):
        for kw in range(KW):
            k = kh * KW + kw
            patch2[pl.ds(k * IC2, IC2), pl.ds(0, N2)] = \
                p1s[pl.ds(0, IC2), pl.ds(kh * W1 + kw, N2)]
    y2 = jnp.dot(w2_ref[...], patch2[pl.ds(0, K2), pl.ds(0, N2)],
                 preferred_element_type=f32) + b2_ref[...]           # (16, 196)
    y2s[:, pl.ds(0, N2)] = jnp.maximum(y2, 0.0)

    # ---- pool2 ---------------------------------------------------------------------------
    m2 = jnp.maximum(
        jnp.maximum(y2s[:, pl.ds(0, M2)], y2s[:, pl.ds(1, M2)]),
        jnp.maximum(y2s[:, pl.ds(W1, M2)], y2s[:, pl.ds(W1 + 1, M2)]))   # (16, 181)
    p2s[...] = jnp.dot(m2, s2_ref[...], preferred_element_type=f32)      # (16, 32), cols>=25 = 0

    # ---- fc1 + ReLU + fc2 (torch flatten order folded into channel-blocked fc1 weights) --
    h = bf1_ref[...]                                                     # (1, 128)
    for c in range(OC2):
        h = h + jnp.dot(p2s[pl.ds(c, 1), :], wf1_ref[c],
                        preferred_element_type=f32)
    h = jnp.maximum(h, 0.0)
    out = jnp.dot(h, wf2_ref[...], preferred_element_type=f32) + bf2_ref[...]   # (1, NC_pad)
    o_ref[...] = jnp.broadcast_to(out, o_ref.shape)                      # lane-dense store


# ------------------------------------ forward wrapper ---------------------------------

def simplenet_forward(kparams, x_nchw, *, num_classes=100):
    """x_nchw: (B, 3, 32, 32) float32 NCHW (like PyTorch). Returns (B, num_classes)."""
    B, C, H, W = x_nchw.shape
    assert (C, H, W) == (IC1, H0, W0), "fused kernel is specialized to 3x32x32 inputs"
    nc_pad = kparams["fc2_w"].shape[1]

    # Only per-forward XLA glue: flat channels-first slab + zero halo for shifted taps.
    x_pad = jnp.pad(x_nchw.reshape(B, IC1, N1), ((0, 0), (0, 0), (0, XPAD - N1)))

    out = pl.pallas_call(
        _simplenet_kernel,
        out_shape=jax.ShapeDtypeStruct((B, 8, nc_pad), jnp.float32),
        grid=(B,),
        in_specs=[
            pl.BlockSpec((None, IC1, XPAD), lambda b: (b, 0, 0)),       # one image / step
            pl.BlockSpec((OC1, K1), lambda b: (0, 0)),                  # conv1 weights
            pl.BlockSpec((OC1, 1), lambda b: (0, 0)),                   # conv1 bias
            pl.BlockSpec((OC2, K2), lambda b: (0, 0)),                  # conv2 weights
            pl.BlockSpec((OC2, 1), lambda b: (0, 0)),                   # conv2 bias
            pl.BlockSpec((M1, P1PAD), lambda b: (0, 0)),                # pool1 selector
            pl.BlockSpec((M2, P2PAD), lambda b: (0, 0)),                # pool2 selector
            pl.BlockSpec((OC2, P2PAD, HID_PAD), lambda b: (0, 0, 0)),   # fc1 weights (blocked)
            pl.BlockSpec((1, HID_PAD), lambda b: (0, 0)),               # fc1 bias
            pl.BlockSpec((HID_PAD, nc_pad), lambda b: (0, 0)),          # fc2 weights
            pl.BlockSpec((1, nc_pad), lambda b: (0, 0)),                # fc2 bias
        ],
        out_specs=pl.BlockSpec((None, 8, nc_pad), lambda b: (b, 0, 0)),
        scratch_shapes=[
            pltpu.VMEM((_round_up(K1, 8), N1), jnp.float32),     # conv1 im2col patches
            pltpu.VMEM((_round_up(K2, 8), P1PAD), jnp.float32),  # conv2 im2col patches
            pltpu.VMEM((8, N1), jnp.float32),                    # conv1+relu out (6 rows used)
            pltpu.VMEM((8, P1PAD), jnp.float32),                 # pool1 out + zero halo
            pltpu.VMEM((OC2, P1PAD), jnp.float32),               # conv2+relu out (196 cols used)
            pltpu.VMEM((OC2, P2PAD), jnp.float32),               # pool2 out
        ],
        compiler_params=pltpu.CompilerParams(
            dimension_semantics=("parallel",),          # 2 steps -> both v7x TensorCores
            vmem_limit_bytes=32 * 1024 * 1024,          # explicit; usage is only a few MiB
        ),
    )(x_pad, kparams["conv1_w"], kparams["conv1_b"],
      kparams["conv2_w"], kparams["conv2_b"],
      kparams["pool1_sel"], kparams["pool2_sel"],
      kparams["fc1_w"], kparams["fc1_b"], kparams["fc2_w"], kparams["fc2_b"])

    return out[:, 0, :num_classes]


# ------------------------------- params & one-time layout -----------------------------

def init_params(num_classes=100):
    """Deterministic PyTorch-default-style (uniform +-1/sqrt(fan_in)) init, torch layouts."""
    key = jax.random.PRNGKey(42)
    ks = jax.random.split(key, 8)

    def u(k, shape, fan_in):
        bound = 1.0 / jnp.sqrt(jnp.float32(fan_in))
        return jax.random.uniform(k, shape, jnp.float32, -bound, bound)

    return {
        "conv1_w": u(ks[0], (OC1, IC1, KH, KW), IC1 * KH * KW),
        "conv1_b": u(ks[1], (OC1,), IC1 * KH * KW),
        "conv2_w": u(ks[2], (OC2, IC2, KH, KW), IC2 * KH * KW),
        "conv2_b": u(ks[3], (OC2,), IC2 * KH * KW),
        "fc1_w":   u(ks[4], (HID, OC2 * NPOOL2), OC2 * NPOOL2),
        "fc1_b":   u(ks[5], (HID,), OC2 * NPOOL2),
        "fc2_w":   u(ks[6], (num_classes, HID), HID),
        "fc2_b":   u(ks[7], (num_classes,), HID),
    }


def prepare_params(params, num_classes=100):
    """One-time re-layout into kernel-friendly layouts + constant pool selectors."""
    nc_pad = _round_up(num_classes, 128)

    def conv_flat(w):                       # (OC, IC, KH, KW) -> (OC, KH*KW*IC)
        oc, ic, kh, kw = w.shape
        return jnp.transpose(w, (0, 2, 3, 1)).reshape(oc, kh * kw * ic)

    def pool_selector(w_in, ph, pw, n_rows, n_cols):
        # S[p, q] = 1 iff q is a valid pooled pixel and p = 2*(q//pw)*w_in + 2*(q%pw).
        q = jnp.arange(n_cols)
        p = 2 * (q // pw) * w_in + 2 * (q % pw)
        p = jnp.where(q < ph * pw, p, -1)                    # zero columns for padding
        return (jnp.arange(n_rows)[:, None] == p[None, :]).astype(jnp.float32)

    # fc1: torch flatten order is c*25 + (ph*5+pw); fold it into (C, 25->32, 120->128) blocks.
    w1t = params["fc1_w"].T.reshape(OC2, NPOOL2, HID)
    fc1_w = jnp.zeros((OC2, P2PAD, HID_PAD), jnp.float32).at[:, :NPOOL2, :HID].set(w1t)
    fc1_b = jnp.zeros((1, HID_PAD), jnp.float32).at[0, :HID].set(params["fc1_b"])
    fc2_w = jnp.zeros((HID_PAD, nc_pad), jnp.float32).at[:HID, :num_classes].set(
        params["fc2_w"].T)
    fc2_b = jnp.zeros((1, nc_pad), jnp.float32).at[0, :num_classes].set(params["fc2_b"])

    return {
        "conv1_w": conv_flat(params["conv1_w"]),
        "conv1_b": params["conv1_b"].reshape(OC1, 1),
        "conv2_w": conv_flat(params["conv2_w"]),
        "conv2_b": params["conv2_b"].reshape(OC2, 1),
        "pool1_sel": pool_selector(W0, H1, W1, M1, P1PAD),   # (991, 256), batch independent
        "pool2_sel": pool_selector(W1, H2, W2, M2, P2PAD),   # (181, 32)
        "fc1_w": fc1_w, "fc1_b": fc1_b, "fc2_w": fc2_w, "fc2_b": fc2_b,
    }


# --------------------------------- pure-JAX reference ----------------------------------

def reference_forward(params, x):
    dn = ("NCHW", "OIHW", "NCHW")
    y = jax.lax.conv_general_dilated(x, params["conv1_w"], (1, 1), "VALID",
                                     dimension_numbers=dn)
    y = jnp.maximum(y + params["conv1_b"][None, :, None, None], 0.0)
    y = jax.lax.reduce_window(y, -jnp.inf, jax.lax.max, (1, 1, 2, 2), (1, 1, 2, 2), "VALID")
    y = jax.lax.conv_general_dilated(y, params["conv2_w"], (1, 1), "VALID",
                                     dimension_numbers=dn)
    y = jnp.maximum(y + params["conv2_b"][None, :, None, None], 0.0)
    y = jax.lax.reduce_window(y, -jnp.inf, jax.lax.max, (1, 1, 2, 2), (1, 1, 2, 2), "VALID")
    flat = y.reshape(y.shape[0], -1)
    h = jnp.maximum(flat @ params["fc1_w"].T + params["fc1_b"], 0.0)
    return h @ params["fc2_w"].T + params["fc2_b"]


# ---------------------------------------- main ------------------------------------------

if __name__ == "__main__":
    num_classes = 100
    params = init_params(num_classes)
    kparams = prepare_params(params, num_classes)

    # Input must be 32x32 so the flatten hits 16*5*5 = 400 features (as in the torch spec).
    x = jax.random.normal(jax.random.PRNGKey(0), (2, IC1, H0, W0), jnp.float32)

    fwd = jax.jit(simplenet_forward, static_argnames=("num_classes",))
    out = fwd(kparams, x, num_classes=num_classes)
    jax.block_until_ready(out)

    assert out.shape == (2, num_classes)
    assert out.dtype == jnp.float32

    ref = reference_forward(params, x)
    assert bool(jnp.allclose(out, ref, atol=1e-2, rtol=1e-2)), "mismatch vs XLA reference"

    print("KERNEL_OK")
</pallas_src>

<mosaic_0001>
module attributes {stable_mosaic.version = 11 : i64} {
  func.func @_simplenet_kernel(%arg0: i32, %arg1: memref<1x3x1280xf32, #tpu.memory_space<vmem>>, %arg2: memref<6x75xf32, #tpu.memory_space<vmem>>, %arg3: memref<6x1xf32, #tpu.memory_space<vmem>>, %arg4: memref<16x150xf32, #tpu.memory_space<vmem>>, %arg5: memref<16x1xf32, #tpu.memory_space<vmem>>, %arg6: memref<991x256xf32, #tpu.memory_space<vmem>>, %arg7: memref<181x32xf32, #tpu.memory_space<vmem>>, %arg8: memref<16x32x128xf32, #tpu.memory_space<vmem>>, %arg9: memref<1x128xf32, #tpu.memory_space<vmem>>, %arg10: memref<128x128xf32, #tpu.memory_space<vmem>>, %arg11: memref<1x128xf32, #tpu.memory_space<vmem>>, %arg12: memref<1x8x128xf32, #tpu.memory_space<vmem>>, %arg13: memref<80x1024xf32, #tpu.memory_space<vmem>>, %arg14: memref<152x256xf32, #tpu.memory_space<vmem>>, %arg15: memref<8x1024xf32, #tpu.memory_space<vmem>>, %arg16: memref<8x256xf32, #tpu.memory_space<vmem>>, %arg17: memref<16x256xf32, #tpu.memory_space<vmem>>, %arg18: memref<16x32xf32, #tpu.memory_space<vmem>>) attributes {dimension_semantics = [#tpu.dimension_semantics<parallel>], iteration_bounds = array<i64: 2>, scalar_prefetch = 0 : i64, scratch_operands = 6 : i64, tpu.core_type = #tpu.core_type<tc>, window_params = [{transform_indices = @transform_0, window_bounds = array<i64: 1, 3, 1280>}, {pipeline_mode = #tpu.pipeline_mode<synchronous>, transform_indices = @transform_1, window_bounds = array<i64: 6, 75>}, {pipeline_mode = #tpu.pipeline_mode<synchronous>, transform_indices = @transform_2, window_bounds = array<i64: 6, 1>}, {pipeline_mode = #tpu.pipeline_mode<synchronous>, transform_indices = @transform_3, window_bounds = array<i64: 16, 150>}, {pipeline_mode = #tpu.pipeline_mode<synchronous>, transform_indices = @transform_4, window_bounds = array<i64: 16, 1>}, {pipeline_mode = #tpu.pipeline_mode<synchronous>, transform_indices = @transform_5, window_bounds = array<i64: 991, 256>}, {pipeline_mode = #tpu.pipeline_mode<synchronous>, transform_indices = @transform_6, window_bounds = array<i64: 181, 32>}, {pipeline_mode = #tpu.pipeline_mode<synchronous>, transform_indices = @transform_7, window_bounds = array<i64: 16, 32, 128>}, {pipeline_mode = #tpu.pipeline_mode<synchronous>, transform_indices = @transform_8, window_bounds = array<i64: 1, 128>}, {pipeline_mode = #tpu.pipeline_mode<synchronous>, transform_indices = @transform_9, window_bounds = array<i64: 128, 128>}, {pipeline_mode = #tpu.pipeline_mode<synchronous>, transform_indices = @transform_10, window_bounds = array<i64: 1, 128>}, {transform_indices = @transform_11, window_bounds = array<i64: 1, 8, 128>}]} {
    %c0 = arith.constant 0 : index
    %c0_0 = arith.constant 0 : index
    %c0_1 = arith.constant 0 : index
    %0 = vector.load %arg1[%c0, %c0_0, %c0_1] : memref<1x3x1280xf32, #tpu.memory_space<vmem>>, vector<1x3x1024xf32>
    %1 = vector.shape_cast %0 : vector<1x3x1024xf32> to vector<3x1024xf32>
    %c0_2 = arith.constant 0 : index
    %c0_3 = arith.constant 0 : index
    %2 = vector.load %arg13[%c0_2, %c0_3] : memref<80x1024xf32, #tpu.memory_space<vmem>>, vector<3x1024xf32>
    tpu.vector_store %arg13[%c0_2, %c0_3], %1 {strides = array<i32>} : memref<80x1024xf32, #tpu.memory_space<vmem>>, vector<3x1024xf32>,
    %c0_4 = arith.constant 0 : index
    %c0_5 = arith.constant 0 : index
    %c1 = arith.constant 1 : index
    %3 = vector.load %arg1[%c0_4, %c0_5, %c1] : memref<1x3x1280xf32, #tpu.memory_space<vmem>>, vector<1x3x1024xf32>
    %4 = vector.shape_cast %3 : vector<1x3x1024xf32> to vector<3x1024xf32>
    %c3 = arith.constant 3 : index
    %c0_6 = arith.constant 0 : index
    %5 = vector.load %arg13[%c3, %c0_6] : memref<80x1024xf32, #tpu.memory_space<vmem>>, vector<3x1024xf32>
    tpu.vector_store %arg13[%c3, %c0_6], %4 {strides = array<i32>} : memref<80x1024xf32, #tpu.memory_space<vmem>>, vector<3x1024xf32>,
    %c0_7 = arith.constant 0 : index
    %c0_8 = arith.constant 0 : index
    %c2 = arith.constant 2 : index
    %6 = vector.load %arg1[%c0_7, %c0_8, %c2] : memref<1x3x1280xf32, #tpu.memory_space<vmem>>, vector<1x3x1024xf32>
    %7 = vector.shape_cast %6 : vector<1x3x1024xf32> to vector<3x1024xf32>
    %c6 = arith.constant 6 : index
    %c0_9 = arith.constant 0 : index
    %8 = vector.load %arg13[%c6, %c0_9] : memref<80x1024xf32, #tpu.memory_space<vmem>>, vector<3x1024xf32>
    tpu.vector_store %arg13[%c6, %c0_9], %7 {strides = array<i32>} : memref<80x1024xf32, #tpu.memory_space<vmem>>, vector<3x1024xf32>,
    %c0_10 = arith.constant 0 : index
    %c0_11 = arith.constant 0 : index
    %c3_12 = arith.constant 3 : index
    %9 = vector.load %arg1[%c0_10, %c0_11, %c3_12] : memref<1x3x1280xf32, #tpu.memory_space<vmem>>, vector<1x3x1024xf32>
    %10 = vector.shape_cast %9 : vector<1x3x1024xf32> to vector<3x1024xf32>
    %c9 = arith.constant 9 : index
    %c0_13 = arith.constant 0 : index
    %11 = vector.load %arg13[%c9, %c0_13] : memref<80x1024xf32, #tpu.memory_space<vmem>>, vector<3x1024xf32>
    tpu.vector_store %arg13[%c9, %c0_13], %10 {strides = array<i32>} : memref<80x1024xf32, #tpu.memory_space<vmem>>, vector<3x1024xf32>,
    %c0_14 = arith.constant 0 : index
    %c0_15 = arith.constant 0 : index
    %c4 = arith.constant 4 : index
    %12 = vector.load %arg1[%c0_14, %c0_15, %c4] : memref<1x3x1280xf32, #tpu.memory_space<vmem>>, vector<1x3x1024xf32>
    %13 = vector.shape_cast %12 : vector<1x3x1024xf32> to vector<3x1024xf32>
    %c12 = arith.constant 12 : index
    %c0_16 = arith.constant 0 : index
    %14 = vector.load %arg13[%c12, %c0_16] : memref<80x1024xf32, #tpu.memory_space<vmem>>, vector<3x1024xf32>
    tpu.vector_store %arg13[%c12, %c0_16], %13 {strides = array<i32>} : memref<80x1024xf32, #tpu.memory_space<vmem>>, vector<3x1024xf32>,
    %c0_17 = arith.constant 0 : index
    %c0_18 = arith.constant 0 : index
    %c32 = arith.constant 32 : index
    %15 = vector.load %arg1[%c0_17, %c0_18, %c32] : memref<1x3x1280xf32, #tpu.memory_space<vmem>>, vector<1x3x1024xf32>
    %16 = vector.shape_cast %15 : vector<1x3x1024xf32> to vector<3x1024xf32>
    %c15 = arith.constant 15 : index
    %c0_19 = arith.constant 0 : index
    %17 = vector.load %arg13[%c15, %c0_19] : memref<80x1024xf32, #tpu.memory_space<vmem>>, vector<3x1024xf32>
    tpu.vector_store %arg13[%c15, %c0_19], %16 {strides = array<i32>} : memref<80x1024xf32, #tpu.memory_space<vmem>>, vector<3x1024xf32>,
    %c0_20 = arith.constant 0 : index
    %c0_21 = arith.constant 0 : index
    %c33 = arith.constant 33 : index
    %18 = vector.load %arg1[%c0_20, %c0_21, %c33] : memref<1x3x1280xf32, #tpu.memory_space<vmem>>, vector<1x3x1024xf32>
    %19 = vector.shape_cast %18 : vector<1x3x1024xf32> to vector<3x1024xf32>
    %c18 = arith.constant 18 : index
    %c0_22 = arith.constant 0 : index
    %20 = vector.load %arg13[%c18, %c0_22] : memref<80x1024xf32, #tpu.memory_space<vmem>>, vector<3x1024xf32>
    tpu.vector_store %arg13[%c18, %c0_22], %19 {strides = array<i32>} : memref<80x1024xf32, #tpu.memory_space<vmem>>, vector<3x1024xf32>,
    %c0_23 = arith.constant 0 : index
    %c0_24 = arith.constant 0 : index
    %c34 = arith.constant 34 : index
    %21 = vector.load %arg1[%c0_23, %c0_24, %c34] : memref<1x3x1280xf32, #tpu.memory_space<vmem>>, vector<1x3x1024xf32>
    %22 = vector.shape_cast %21 : vector<1x3x1024xf32> to vector<3x1024xf32>
    %c21 = arith.constant 21 : index
    %c0_25 = arith.constant 0 : index
    %23 = vector.load %arg13[%c21, %c0_25] : memref<80x1024xf32, #tpu.memory_space<vmem>>, vector<3x1024xf32>
    tpu.vector_store %arg13[%c21, %c0_25], %22 {strides = array<i32>} : memref<80x1024xf32, #tpu.memory_space<vmem>>, vector<3x1024xf32>,
    %c0_26 = arith.constant 0 : index
    %c0_27 = arith.constant 0 : index
    %c35 = arith.constant 35 : index
    %24 = vector.load %arg1[%c0_26, %c0_27, %c35] : memref<1x3x1280xf32, #tpu.memory_space<vmem>>, vector<1x3x1024xf32>
    %25 = vector.shape_cast %24 : vector<1x3x1024xf32> to vector<3x1024xf32>
    %c24 = arith.constant 24 : index
    %c0_28 = arith.constant 0 : index
    %26 = vector.load %arg13[%c24, %c0_28] : memref<80x1024xf32, #tpu.memory_space<vmem>>, vector<3x1024xf32>
    tpu.vector_store %arg13[%c24, %c0_28], %25 {strides = array<i32>} : memref<80x1024xf32, #tpu.memory_space<vmem>>, vector<3x1024xf32>,
    %c0_29 = arith.constant 0 : index
    %c0_30 = arith.constant 0 : index
    %c36 = arith.constant 36 : index
    %27 = vector.load %arg1[%c0_29, %c0_30, %c36] : memref<1x3x1280xf32, #tpu.memory_space<vmem>>, vector<1x3x1024xf32>
    %28 = vector.shape_cast %27 : vector<1x3x1024xf32> to vector<3x1024xf32>
    %c27 = arith.constant 27 : index
    %c0_31 = arith.constant 0 : index
    %29 = vector.load %arg13[%c27, %c0_31] : memref<80x1024xf32, #tpu.memory_space<vmem>>, vector<3x1024xf32>
    tpu.vector_store %arg13[%c27, %c0_31], %28 {strides = array<i32>} : memref<80x1024xf32, #tpu.memory_space<vmem>>, vector<3x1024xf32>,
    %c0_32 = arith.constant 0 : index
    %c0_33 = arith.constant 0 : index
    %c64 = arith.constant 64 : index
    %30 = vector.load %arg1[%c0_32, %c0_33, %c64] : memref<1x3x1280xf32, #tpu.memory_space<vmem>>, vector<1x3x1024xf32>
    %31 = vector.shape_cast %30 : vector<1x3x1024xf32> to vector<3x1024xf32>
    %c30 = arith.constant 30 : index
    %c0_34 = arith.constant 0 : index
    %32 = vector.load %arg13[%c30, %c0_34] : memref<80x1024xf32, #tpu.memory_space<vmem>>, vector<3x1024xf32>
    tpu.vector_store %arg13[%c30, %c0_34], %31 {strides = array<i32>} : memref<80x1024xf32, #tpu.memory_space<vmem>>, vector<3x1024xf32>,
    %c0_35 = arith.constant 0 : index
    %c0_36 = arith.constant 0 : index
    %c65 = arith.constant 65 : index
    %33 = vector.load %arg1[%c0_35, %c0_36, %c65] : memref<1x3x1280xf32, #tpu.memory_space<vmem>>, vector<1x3x1024xf32>
    %34 = vector.shape_cast %33 : vector<1x3x1024xf32> to vector<3x1024xf32>
    %c33_37 = arith.constant 33 : index
    %c0_38 = arith.constant 0 : index
    %35 = vector.load %arg13[%c33_37, %c0_38] : memref<80x1024xf32, #tpu.memory_space<vmem>>, vector<3x1024xf32>
    tpu.vector_store %arg13[%c33_37, %c0_38], %34 {strides = array<i32>} : memref<80x1024xf32, #tpu.memory_space<vmem>>, vector<3x1024xf32>,
    %c0_39 = arith.constant 0 : index
    %c0_40 = arith.constant 0 : index
    %c66 = arith.constant 66 : index
    %36 = vector.load %arg1[%c0_39, %c0_40, %c66] : memref<1x3x1280xf32, #tpu.memory_space<vmem>>, vector<1x3x1024xf32>
    %37 = vector.shape_cast %36 : vector<1x3x1024xf32> to vector<3x1024xf32>
    %c36_41 = arith.constant 36 : index
    %c0_42 = arith.constant 0 : index
    %38 = vector.load %arg13[%c36_41, %c0_42] : memref<80x1024xf32, #tpu.memory_space<vmem>>, vector<3x1024xf32>
    tpu.vector_store %arg13[%c36_41, %c0_42], %37 {strides = array<i32>} : memref<80x1024xf32, #tpu.memory_space<vmem>>, vector<3x1024xf32>,
    %c0_43 = arith.constant 0 : index
    %c0_44 = arith.constant 0 : index
    %c67 = arith.constant 67 : index
    %39 = vector.load %arg1[%c0_43, %c0_44, %c67] : memref<1x3x1280xf32, #tpu.memory_space<vmem>>, vector<1x3x1024xf32>
    %40 = vector.shape_cast %39 : vector<1x3x1024xf32> to vector<3x1024xf32>
    %c39 = arith.constant 39 : index
    %c0_45 = arith.constant 0 : index
    %41 = vector.load %arg13[%c39, %c0_45] : memref<80x1024xf32, #tpu.memory_space<vmem>>, vector<3x1024xf32>
    tpu.vector_store %arg13[%c39, %c0_45], %40 {strides = array<i32>} : memref<80x1024xf32, #tpu.memory_space<vmem>>, vector<3x1024xf32>,
    %c0_46 = arith.constant 0 : index
    %c0_47 = arith.constant 0 : index
    %c68 = arith.constant 68 : index
    %42 = vector.load %arg1[%c0_46, %c0_47, %c68] : memref<1x3x1280xf32, #tpu.memory_space<vmem>>, vector<1x3x1024xf32>
    %43 = vector.shape_cast %42 : vector<1x3x1024xf32> to vector<3x1024xf32>
    %c42 = arith.constant 42 : index
    %c0_48 = arith.constant 0 : index
    %44 = vector.load %arg13[%c42, %c0_48] : memref<80x1024xf32, #tpu.memory_space<vmem>>, vector<3x1024xf32>
    tpu.vector_store %arg13[%c42, %c0_48], %43 {strides = array<i32>} : memref<80x1024xf32, #tpu.memory_space<vmem>>, vector<3x1024xf32>,
    %c0_49 = arith.constant 0 : index
    %c0_50 = arith.constant 0 : index
    %c96 = arith.constant 96 : index
    %45 = vector.load %arg1[%c0_49, %c0_50, %c96] : memref<1x3x1280xf32, #tpu.memory_space<vmem>>, vector<1x3x1024xf32>
    %46 = vector.shape_cast %45 : vector<1x3x1024xf32> to vector<3x1024xf32>
    %c45 = arith.constant 45 : index
    %c0_51 = arith.constant 0 : index
    %47 = vector.load %arg13[%c45, %c0_51] : memref<80x1024xf32, #tpu.memory_space<vmem>>, vector<3x1024xf32>
    tpu.vector_store %arg13[%c45, %c0_51], %46 {strides = array<i32>} : memref<80x1024xf32, #tpu.memory_space<vmem>>, vector<3x1024xf32>,
    %c0_52 = arith.constant 0 : index
    %c0_53 = arith.constant 0 : index
    %c97 = arith.constant 97 : index
    %48 = vector.load %arg1[%c0_52, %c0_53, %c97] : memref<1x3x1280xf32, #tpu.memory_space<vmem>>, vector<1x3x1024xf32>
    %49 = vector.shape_cast %48 : vector<1x3x1024xf32> to vector<3x1024xf32>
    %c48 = arith.constant 48 : index
    %c0_54 = arith.constant 0 : index
    %50 = vector.load %arg13[%c48, %c0_54] : memref<80x1024xf32, #tpu.memory_space<vmem>>, vector<3x1024xf32>
    tpu.vector_store %arg13[%c48, %c0_54], %49 {strides = array<i32>} : memref<80x1024xf32, #tpu.memory_space<vmem>>, vector<3x1024xf32>,
    %c0_55 = arith.constant 0 : index
    %c0_56 = arith.constant 0 : index
    %c98 = arith.constant 98 : index
    %51 = vector.load %arg1[%c0_55, %c0_56, %c98] : memref<1x3x1280xf32, #tpu.memory_space<vmem>>, vector<1x3x1024xf32>
    %52 = vector.shape_cast %51 : vector<1x3x1024xf32> to vector<3x1024xf32>
    %c51 = arith.constant 51 : index
    %c0_57 = arith.constant 0 : index
    %53 = vector.load %arg13[%c51, %c0_57] : memref<80x1024xf32, #tpu.memory_space<vmem>>, vector<3x1024xf32>
    tpu.vector_store %arg13[%c51, %c0_57], %52 {strides = array<i32>} : memref<80x1024xf32, #tpu.memory_space<vmem>>, vector<3x1024xf32>,
    %c0_58 = arith.constant 0 : index
    %c0_59 = arith.constant 0 : index
    %c99 = arith.constant 99 : index
    %54 = vector.load %arg1[%c0_58, %c0_59, %c99] : memref<1x3x1280xf32, #tpu.memory_space<vmem>>, vector<1x3x1024xf32>
    %55 = vector.shape_cast %54 : vector<1x3x1024xf32> to vector<3x1024xf32>
    %c54 = arith.constant 54 : index
    %c0_60 = arith.constant 0 : index
    %56 = vector.load %arg13[%c54, %c0_60] : memref<80x1024xf32, #tpu.memory_space<vmem>>, vector<3x1024xf32>
    tpu.vector_store %arg13[%c54, %c0_60], %55 {strides = array<i32>} : memref<80x1024xf32, #tpu.memory_space<vmem>>, vector<3x1024xf32>,
    %c0_61 = arith.constant 0 : index
    %c0_62 = arith.constant 0 : index
    %c100 = arith.constant 100 : index
    %57 = vector.load %arg1[%c0_61, %c0_62, %c100] : memref<1x3x1280xf32, #tpu.memory_space<vmem>>, vector<1x3x1024xf32>
    %58 = vector.shape_cast %57 : vector<1x3x1024xf32> to vector<3x1024xf32>
    %c57 = arith.constant 57 : index
    %c0_63 = arith.constant 0 : index
    %59 = vector.load %arg13[%c57, %c0_63] : memref<80x1024xf32, #tpu.memory_space<vmem>>, vector<3x1024xf32>
    tpu.vector_store %arg13[%c57, %c0_63], %58 {strides = array<i32>} : memref<80x1024xf32, #tpu.memory_space<vmem>>, vector<3x1024xf32>,
    %c0_64 = arith.constant 0 : index
    %c0_65 = arith.constant 0 : index
    %c128 = arith.constant 128 : index
    %60 = vector.load %arg1[%c0_64, %c0_65, %c128] : memref<1x3x1280xf32, #tpu.memory_space<vmem>>, vector<1x3x1024xf32>
    %61 = vector.shape_cast %60 : vector<1x3x1024xf32> to vector<3x1024xf32>
    %c60 = arith.constant 60 : index
    %c0_66 = arith.constant 0 : index
    %62 = vector.load %arg13[%c60, %c0_66] : memref<80x1024xf32, #tpu.memory_space<vmem>>, vector<3x1024xf32>
    tpu.vector_store %arg13[%c60, %c0_66], %61 {strides = array<i32>} : memref<80x1024xf32, #tpu.memory_space<vmem>>, vector<3x1024xf32>,
    %c0_67 = arith.constant 0 : index
    %c0_68 = arith.constant 0 : index
    %c129 = arith.constant 129 : index
    %63 = vector.load %arg1[%c0_67, %c0_68, %c129] : memref<1x3x1280xf32, #tpu.memory_space<vmem>>, vector<1x3x1024xf32>
    %64 = vector.shape_cast %63 : vector<1x3x1024xf32> to vector<3x1024xf32>
    %c63 = arith.constant 63 : index
    %c0_69 = arith.constant 0 : index
    %65 = vector.load %arg13[%c63, %c0_69] : memref<80x1024xf32, #tpu.memory_space<vmem>>, vector<3x1024xf32>
    tpu.vector_store %arg13[%c63, %c0_69], %64 {strides = array<i32>} : memref<80x1024xf32, #tpu.memory_space<vmem>>, vector<3x1024xf32>,
    %c0_70 = arith.constant 0 : index
    %c0_71 = arith.constant 0 : index
    %c130 = arith.constant 130 : index
    %66 = vector.load %arg1[%c0_70, %c0_71, %c130] : memref<1x3x1280xf32, #tpu.memory_space<vmem>>, vector<1x3x1024xf32>
    %67 = vector.shape_cast %66 : vector<1x3x1024xf32> to vector<3x1024xf32>
    %c66_72 = arith.constant 66 : index
    %c0_73 = arith.constant 0 : index
    %68 = vector.load %arg13[%c66_72, %c0_73] : memref<80x1024xf32, #tpu.memory_space<vmem>>, vector<3x1024xf32>
    tpu.vector_store %arg13[%c66_72, %c0_73], %67 {strides = array<i32>} : memref<80x1024xf32, #tpu.memory_space<vmem>>, vector<3x1024xf32>,
    %c0_74 = arith.constant 0 : index
    %c0_75 = arith.constant 0 : index
    %c131 = arith.constant 131 : index
    %69 = vector.load %arg1[%c0_74, %c0_75, %c131] : memref<1x3x1280xf32, #tpu.memory_space<vmem>>, vector<1x3x1024xf32>
    %70 = vector.shape_cast %69 : vector<1x3x1024xf32> to vector<3x1024xf32>
    %c69 = arith.constant 69 : index
    %c0_76 = arith.constant 0 : index
    %71 = vector.load %arg13[%c69, %c0_76] : memref<80x1024xf32, #tpu.memory_space<vmem>>, vector<3x1024xf32>
    tpu.vector_store %arg13[%c69, %c0_76], %70 {strides = array<i32>} : memref<80x1024xf32, #tpu.memory_space<vmem>>, vector<3x1024xf32>,
    %c0_77 = arith.constant 0 : index
    %c0_78 = arith.constant 0 : index
    %c132 = arith.constant 132 : index
    %72 = vector.load %arg1[%c0_77, %c0_78, %c132] : memref<1x3x1280xf32, #tpu.memory_space<vmem>>, vector<1x3x1024xf32>
    %73 = vector.shape_cast %72 : vector<1x3x1024xf32> to vector<3x1024xf32>
    %c72 = arith.constant 72 : index
    %c0_79 = arith.constant 0 : index
    %74 = vector.load %arg13[%c72, %c0_79] : memref<80x1024xf32, #tpu.memory_space<vmem>>, vector<3x1024xf32>
    tpu.vector_store %arg13[%c72, %c0_79], %73 {strides = array<i32>} : memref<80x1024xf32, #tpu.memory_space<vmem>>, vector<3x1024xf32>,
    %c0_80 = arith.constant 0 : index
    %c0_81 = arith.constant 0 : index
    %75 = vector.load %arg2[%c0_80, %c0_81] : memref<6x75xf32, #tpu.memory_space<vmem>>, vector<6x75xf32>
    %c0_82 = arith.constant 0 : index
    %c0_83 = arith.constant 0 : index
    %76 = vector.load %arg13[%c0_82, %c0_83] : memref<80x1024xf32, #tpu.memory_space<vmem>>, vector<75x1024xf32>
    %cst = arith.constant dense<0.000000e+00> : vector<6x1024xf32>
    %77 = tpu.matmul %75, %76, %cst {dimension_numbers = #tpu.dot_dimension_numbers<[1], [0], [0], [1], [0, 0, 1, 1], [], []>} : vector<6x75xf32>, vector<75x1024xf32>, vector<6x1024xf32> -> vector<6x1024xf32>
    %c0_84 = arith.constant 0 : index
    %c0_85 = arith.constant 0 : index
    %78 = vector.load %arg3[%c0_84, %c0_85] : memref<6x1xf32, #tpu.memory_space<vmem>>, vector<6x1xf32>
    %79 = vector.broadcast %78 : vector<6x1xf32> to vector<6x1024xf32>
    %80 = arith.addf %77, %79 : vector<6x1024xf32>
    %cst_86 = arith.constant 0.000000e+00 : f32
    %81 = vector.broadcast %cst_86 : f32 to vector<6x1024xf32>
    %82 = arith.maximumf %80, %81 : vector<6x1024xf32>
    %c0_87 = arith.constant 0 : index
    %c0_88 = arith.constant 0 : index
    %83 = vector.load %arg15[%c0_87, %c0_88] : memref<8x1024xf32, #tpu.memory_space<vmem>>, vector<6x1024xf32>
    tpu.vector_store %arg15[%c0_87, %c0_88], %82 {strides = array<i32>} : memref<8x1024xf32, #tpu.memory_space<vmem>>, vector<6x1024xf32>,
    %c0_89 = arith.constant 0 : index
    %c0_90 = arith.constant 0 : index
    %84 = vector.load %arg15[%c0_89, %c0_90] : memref<8x1024xf32, #tpu.memory_space<vmem>>, vector<6x991xf32>
    %c0_91 = arith.constant 0 : index
    %c1_92 = arith.constant 1 : index
    %85 = vector.load %arg15[%c0_91, %c1_92] : memref<8x1024xf32, #tpu.memory_space<vmem>>, vector<6x991xf32>
    %86 = arith.maximumf %84, %85 : vector<6x991xf32>
    %c0_93 = arith.constant 0 : index
    %c32_94 = arith.constant 32 : index
    %87 = vector.load %arg15[%c0_93, %c32_94] : memref<8x1024xf32, #tpu.memory_space<vmem>>, vector<6x991xf32>
    %c0_95 = arith.constant 0 : index
    %c33_96 = arith.constant 33 : index
    %88 = vector.load %arg15[%c0_95, %c33_96] : memref<8x1024xf32, #tpu.memory_space<vmem>>, vector<6x991xf32>
    %89 = arith.maximumf %87, %88 : vector<6x991xf32>
    %90 = arith.maximumf %86, %89 : vector<6x991xf32>
    %c0_97 = arith.constant 0 : index
    %c0_98 = arith.constant 0 : index
    %91 = vector.load %arg6[%c0_97, %c0_98] : memref<991x256xf32, #tpu.memory_space<vmem>>, vector<991x256xf32>
    %cst_99 = arith.constant dense<0.000000e+00> : vector<6x256xf32>
    %92 = tpu.matmul %90, %91, %cst_99 {dimension_numbers = #tpu.dot_dimension_numbers<[1], [0], [0], [1], [0, 0, 1, 1], [], []>} : vector<6x991xf32>, vector<991x256xf32>, vector<6x256xf32> -> vector<6x256xf32>
    %c0_100 = arith.constant 0 : index
    %c0_101 = arith.constant 0 : index
    %93 = vector.load %arg16[%c0_100, %c0_101] : memref<8x256xf32, #tpu.memory_space<vmem>>, vector<6x256xf32>
    tpu.vector_store %arg16[%c0_100, %c0_101], %92 {strides = array<i32>} : memref<8x256xf32, #tpu.memory_space<vmem>>, vector<6x256xf32>,
    %c0_102 = arith.constant 0 : index
    %c0_103 = arith.constant 0 : index
    %94 = vector.load %arg16[%c0_102, %c0_103] : memref<8x256xf32, #tpu.memory_space<vmem>>, vector<6x196xf32>
    %c0_104 = arith.constant 0 : index
    %c0_105 = arith.constant 0 : index
    %95 = vector.load %arg14[%c0_104, %c0_105] : memref<152x256xf32, #tpu.memory_space<vmem>>, vector<6x196xf32>
    tpu.vector_store %arg14[%c0_104, %c0_105], %94 {strides = array<i32>} : memref<152x256xf32, #tpu.memory_space<vmem>>, vector<6x196xf32>,
    %c0_106 = arith.constant 0 : index
    %c1_107 = arith.constant 1 : index
    %96 = vector.load %arg16[%c0_106, %c1_107] : memref<8x256xf32, #tpu.memory_space<vmem>>, vector<6x196xf32>
    %c6_108 = arith.constant 6 : index
    %c0_109 = arith.constant 0 : index
    %97 = vector.load %arg14[%c6_108, %c0_109] : memref<152x256xf32, #tpu.memory_space<vmem>>, vector<6x196xf32>
    tpu.vector_store %arg14[%c6_108, %c0_109], %96 {strides = array<i32>} : memref<152x256xf32, #tpu.memory_space<vmem>>, vector<6x196xf32>,
    %c0_110 = arith.constant 0 : index
    %c2_111 = arith.constant 2 : index
    %98 = vector.load %arg16[%c0_110, %c2_111] : memref<8x256xf32, #tpu.memory_space<vmem>>, vector<6x196xf32>
    %c12_112 = arith.constant 12 : index
    %c0_113 = arith.constant 0 : index
    %99 = vector.load %arg14[%c12_112, %c0_113] : memref<152x256xf32, #tpu.memory_space<vmem>>, vector<6x196xf32>
    tpu.vector_store %arg14[%c12_112, %c0_113], %98 {strides = array<i32>} : memref<152x256xf32, #tpu.memory_space<vmem>>, vector<6x196xf32>,
    %c0_114 = arith.constant 0 : index
    %c3_115 = arith.constant 3 : index
    %100 = vector.load %arg16[%c0_114, %c3_115] : memref<8x256xf32, #tpu.memory_space<vmem>>, vector<6x196xf32>
    %c18_116 = arith.constant 18 : index
    %c0_117 = arith.constant 0 : index
    %101 = vector.load %arg14[%c18_116, %c0_117] : memref<152x256xf32, #tpu.memory_space<vmem>>, vector<6x196xf32>
    tpu.vector_store %arg14[%c18_116, %c0_117], %100 {strides = array<i32>} : memref<152x256xf32, #tpu.memory_space<vmem>>, vector<6x196xf32>,
    %c0_118 = arith.constant 0 : index
    %c4_119 = arith.constant 4 : index
    %102 = vector.load %arg16[%c0_118, %c4_119] : memref<8x256xf32, #tpu.memory_space<vmem>>, vector<6x196xf32>
    %c24_120 = arith.constant 24 : index
    %c0_121 = arith.constant 0 : index
    %103 = vector.load %arg14[%c24_120, %c0_121] : memref<152x256xf32, #tpu.memory_space<vmem>>, vector<6x196xf32>
    tpu.vector_store %arg14[%c24_120, %c0_121], %102 {strides = array<i32>} : memref<152x256xf32, #tpu.memory_space<vmem>>, vector<6x196xf32>,
    %c0_122 = arith.constant 0 : index
    %c14 = arith.constant 14 : index
    %104 = vector.load %arg16[%c0_122, %c14] : memref<8x256xf32, #tpu.memory_space<vmem>>, vector<6x196xf32>
    %c30_123 = arith.constant 30 : index
    %c0_124 = arith.constant 0 : index
    %105 = vector.load %arg14[%c30_123, %c0_124] : memref<152x256xf32, #tpu.memory_space<vmem>>, vector<6x196xf32>
    tpu.vector_store %arg14[%c30_123, %c0_124], %104 {strides = array<i32>} : memref<152x256xf32, #tpu.memory_space<vmem>>, vector<6x196xf32>,
    %c0_125 = arith.constant 0 : index
    %c15_126 = arith.constant 15 : index
    %106 = vector.load %arg16[%c0_125, %c15_126] : memref<8x256xf32, #tpu.memory_space<vmem>>, vector<6x196xf32>
    %c36_127 = arith.constant 36 : index
    %c0_128 = arith.constant 0 : index
    %107 = vector.load %arg14[%c36_127, %c0_128] : memref<152x256xf32, #tpu.memory_space<vmem>>, vector<6x196xf32>
    tpu.vector_store %arg14[%c36_127, %c0_128], %106 {strides = array<i32>} : memref<152x256xf32, #tpu.memory_space<vmem>>, vector<6x196xf32>,
    %c0_129 = arith.constant 0 : index
    %c16 = arith.constant 16 : index
    %108 = vector.load %arg16[%c0_129, %c16] : memref<8x256xf32, #tpu.memory_space<vmem>>, vector<6x196xf32>
    %c42_130 = arith.constant 42 : index
    %c0_131 = arith.constant 0 : index
    %109 = vector.load %arg14[%c42_130, %c0_131] : memref<152x256xf32, #tpu.memory_space<vmem>>, vector<6x196xf32>
    tpu.vector_store %arg14[%c42_130, %c0_131], %108 {strides = array<i32>} : memref<152x256xf32, #tpu.memory_space<vmem>>, vector<6x196xf32>,
    %c0_132 = arith.constant 0 : index
    %c17 = arith.constant 17 : index
    %110 = vector.load %arg16[%c0_132, %c17] : memref<8x256xf32, #tpu.memory_space<vmem>>, vector<6x196xf32>
    %c48_133 = arith.constant 48 : index
    %c0_134 = arith.constant 0 : index
    %111 = vector.load %arg14[%c48_133, %c0_134] : memref<152x256xf32, #tpu.memory_space<vmem>>, vector<6x196xf32>
    tpu.vector_store %arg14[%c48_133, %c0_134], %110 {strides = array<i32>} : memref<152x256xf32, #tpu.memory_space<vmem>>, vector<6x196xf32>,
    %c0_135 = arith.constant 0 : index
    %c18_136 = arith.constant 18 : index
    %112 = vector.load %arg16[%c0_135, %c18_136] : memref<8x256xf32, #tpu.memory_space<vmem>>, vector<6x196xf32>
    %c54_137 = arith.constant 54 : index
    %c0_138 = arith.constant 0 : index
    %113 = vector.load %arg14[%c54_137, %c0_138] : memref<152x256xf32, #tpu.memory_space<vmem>>, vector<6x196xf32>
    tpu.vector_store %arg14[%c54_137, %c0_138], %112 {strides = array<i32>} : memref<152x256xf32, #tpu.memory_space<vmem>>, vector<6x196xf32>,
    %c0_139 = arith.constant 0 : index
    %c28 = arith.constant 28 : index
    %114 = vector.load %arg16[%c0_139, %c28] : memref<8x256xf32, #tpu.memory_space<vmem>>, vector<6x196xf32>
    %c60_140 = arith.constant 60 : index
    %c0_141 = arith.constant 0 : index
    %115 = vector.load %arg14[%c60_140, %c0_141] : memref<152x256xf32, #tpu.memory_space<vmem>>, vector<6x196xf32>
    tpu.vector_store %arg14[%c60_140, %c0_141], %114 {strides = array<i32>} : memref<152x256xf32, #tpu.memory_space<vmem>>, vector<6x196xf32>,
    %c0_142 = arith.constant 0 : index
    %c29 = arith.constant 29 : index
    %116 = vector.load %arg16[%c0_142, %c29] : memref<8x256xf32, #tpu.memory_space<vmem>>, vector<6x196xf32>
    %c66_143 = arith.constant 66 : index
    %c0_144 = arith.constant 0 : index
    %117 = vector.load %arg14[%c66_143, %c0_144] : memref<152x256xf32, #tpu.memory_space<vmem>>, vector<6x196xf32>
    tpu.vector_store %arg14[%c66_143, %c0_144], %116 {strides = array<i32>} : memref<152x256xf32, #tpu.memory_space<vmem>>, vector<6x196xf32>,
    %c0_145 = arith.constant 0 : index
    %c30_146 = arith.constant 30 : index
    %118 = vector.load %arg16[%c0_145, %c30_146] : memref<8x256xf32, #tpu.memory_space<vmem>>, vector<6x196xf32>
    %c72_147 = arith.constant 72 : index
    %c0_148 = arith.constant 0 : index
    %119 = vector.load %arg14[%c72_147, %c0_148] : memref<152x256xf32, #tpu.memory_space<vmem>>, vector<6x196xf32>
    tpu.vector_store %arg14[%c72_147, %c0_148], %118 {strides = array<i32>} : memref<152x256xf32, #tpu.memory_space<vmem>>, vector<6x196xf32>,
    %c0_149 = arith.constant 0 : index
    %c31 = arith.constant 31 : index
    %120 = vector.load %arg16[%c0_149, %c31] : memref<8x256xf32, #tpu.memory_space<vmem>>, vector<6x196xf32>
    %c78 = arith.constant 78 : index
    %c0_150 = arith.constant 0 : index
    %121 = vector.load %arg14[%c78, %c0_150] : memref<152x256xf32, #tpu.memory_space<vmem>>, vector<6x196xf32>
    tpu.vector_store %arg14[%c78, %c0_150], %120 {strides = array<i32>} : memref<152x256xf32, #tpu.memory_space<vmem>>, vector<6x196xf32>,
    %c0_151 = arith.constant 0 : index
    %c32_152 = arith.constant 32 : index
    %122 = vector.load %arg16[%c0_151, %c32_152] : memref<8x256xf32, #tpu.memory_space<vmem>>, vector<6x196xf32>
    %c84 = arith.constant 84 : index
    %c0_153 = arith.constant 0 : index
    %123 = vector.load %arg14[%c84, %c0_153] : memref<152x256xf32, #tpu.memory_space<vmem>>, vector<6x196xf32>
    tpu.vector_store %arg14[%c84, %c0_153], %122 {strides = array<i32>} : memref<152x256xf32, #tpu.memory_space<vmem>>, vector<6x196xf32>,
    %c0_154 = arith.constant 0 : index
    %c42_155 = arith.constant 42 : index
    %124 = vector.load %arg16[%c0_154, %c42_155] : memref<8x256xf32, #tpu.memory_space<vmem>>, vector<6x196xf32>
    %c90 = arith.constant 90 : index
    %c0_156 = arith.constant 0 : index
    %125 = vector.load %arg14[%c90, %c0_156] : memref<152x256xf32, #tpu.memory_space<vmem>>, vector<6x196xf32>
    tpu.vector_store %arg14[%c90, %c0_156], %124 {strides = array<i32>} : memref<152x256xf32, #tpu.memory_space<vmem>>, vector<6x196xf32>,
    %c0_157 = arith.constant 0 : index
    %c43 = arith.constant 43 : index
    %126 = vector.load %arg16[%c0_157, %c43] : memref<8x256xf32, #tpu.memory_space<vmem>>, vector<6x196xf32>
    %c96_158 = arith.constant 96 : index
    %c0_159 = arith.constant 0 : index
    %127 = vector.load %arg14[%c96_158, %c0_159] : memref<152x256xf32, #tpu.memory_space<vmem>>, vector<6x196xf32>
    tpu.vector_store %arg14[%c96_158, %c0_159], %126 {strides = array<i32>} : memref<152x256xf32, #tpu.memory_space<vmem>>, vector<6x196xf32>,
    %c0_160 = arith.constant 0 : index
    %c44 = arith.constant 44 : index
    %128 = vector.load %arg16[%c0_160, %c44] : memref<8x256xf32, #tpu.memory_space<vmem>>, vector<6x196xf32>
    %c102 = arith.constant 102 : index
    %c0_161 = arith.constant 0 : index
    %129 = vector.load %arg14[%c102, %c0_161] : memref<152x256xf32, #tpu.memory_space<vmem>>, vector<6x196xf32>
    tpu.vector_store %arg14[%c102, %c0_161], %128 {strides = array<i32>} : memref<152x256xf32, #tpu.memory_space<vmem>>, vector<6x196xf32>,
    %c0_162 = arith.constant 0 : index
    %c45_163 = arith.constant 45 : index
    %130 = vector.load %arg16[%c0_162, %c45_163] : memref<8x256xf32, #tpu.memory_space<vmem>>, vector<6x196xf32>
    %c108 = arith.constant 108 : index
    %c0_164 = arith.constant 0 : index
    %131 = vector.load %arg14[%c108, %c0_164] : memref<152x256xf32, #tpu.memory_space<vmem>>, vector<6x196xf32>
    tpu.vector_store %arg14[%c108, %c0_164], %130 {strides = array<i32>} : memref<152x256xf32, #tpu.memory_space<vmem>>, vector<6x196xf32>,
    %c0_165 = arith.constant 0 : index
    %c46 = arith.constant 46 : index
    %132 = vector.load %arg16[%c0_165, %c46] : memref<8x256xf32, #tpu.memory_space<vmem>>, vector<6x196xf32>
    %c114 = arith.constant 114 : index
    %c0_166 = arith.constant 0 : index
    %133 = vector.load %arg14[%c114, %c0_166] : memref<152x256xf32, #tpu.memory_space<vmem>>, vector<6x196xf32>
    tpu.vector_store %arg14[%c114, %c0_166], %132 {strides = array<i32>} : memref<152x256xf32, #tpu.memory_space<vmem>>, vector<6x196xf32>,
    %c0_167 = arith.constant 0 : index
    %c56 = arith.constant 56 : index
    %134 = vector.load %arg16[%c0_167, %c56] : memref<8x256xf32, #tpu.memory_space<vmem>>, vector<6x196xf32>
    %c120 = arith.constant 120 : index
    %c0_168 = arith.constant 0 : index
    %135 = vector.load %arg14[%c120, %c0_168] : memref<152x256xf32, #tpu.memory_space<vmem>>, vector<6x196xf32>
    tpu.vector_store %arg14[%c120, %c0_168], %134 {strides = array<i32>} : memref<152x256xf32, #tpu.memory_space<vmem>>, vector<6x196xf32>,
    %c0_169 = arith.constant 0 : index
    %c57_170 = arith.constant 57 : index
    %136 = vector.load %arg16[%c0_169, %c57_170] : memref<8x256xf32, #tpu.memory_space<vmem>>, vector<6x196xf32>
    %c126 = arith.constant 126 : index
    %c0_171 = arith.constant 0 : index
    %137 = vector.load %arg14[%c126, %c0_171] : memref<152x256xf32, #tpu.memory_space<vmem>>, vector<6x196xf32>
    tpu.vector_store %arg14[%c126, %c0_171], %136 {strides = array<i32>} : memref<152x256xf32, #tpu.memory_space<vmem>>, vector<6x196xf32>,
    %c0_172 = arith.constant 0 : index
    %c58 = arith.constant 58 : index
    %138 = vector.load %arg16[%c0_172, %c58] : memref<8x256xf32, #tpu.memory_space<vmem>>, vector<6x196xf32>
    %c132_173 = arith.constant 132 : index
    %c0_174 = arith.constant 0 : index
    %139 = vector.load %arg14[%c132_173, %c0_174] : memref<152x256xf32, #tpu.memory_space<vmem>>, vector<6x196xf32>
    tpu.vector_store %arg14[%c132_173, %c0_174], %138 {strides = array<i32>} : memref<152x256xf32, #tpu.memory_space<vmem>>, vector<6x196xf32>,
    %c0_175 = arith.constant 0 : index
    %c59 = arith.constant 59 : index
    %140 = vector.load %arg16[%c0_175, %c59] : memref<8x256xf32, #tpu.memory_space<vmem>>, vector<6x196xf32>
    %c138 = arith.constant 138 : index
    %c0_176 = arith.constant 0 : index
    %141 = vector.load %arg14[%c138, %c0_176] : memref<152x256xf32, #tpu.memory_space<vmem>>, vector<6x196xf32>
    tpu.vector_store %arg14[%c138, %c0_176], %140 {strides = array<i32>} : memref<152x256xf32, #tpu.memory_space<vmem>>, vector<6x196xf32>,
    %c0_177 = arith.constant 0 : index
    %c60_178 = arith.constant 60 : index
    %142 = vector.load %arg16[%c0_177, %c60_178] : memref<8x256xf32, #tpu.memory_space<vmem>>, vector<6x196xf32>
    %c144 = arith.constant 144 : index
    %c0_179 = arith.constant 0 : index
    %143 = vector.load %arg14[%c144, %c0_179] : memref<152x256xf32, #tpu.memory_space<vmem>>, vector<6x196xf32>
    tpu.vector_store %arg14[%c144, %c0_179], %142 {strides = array<i32>} : memref<152x256xf32, #tpu.memory_space<vmem>>, vector<6x196xf32>,
    %c0_180 = arith.constant 0 : index
    %c0_181 = arith.constant 0 : index
    %144 = vector.load %arg4[%c0_180, %c0_181] : memref<16x150xf32, #tpu.memory_space<vmem>>, vector<16x150xf32>
    %c0_182 = arith.constant 0 : index
    %c0_183 = arith.constant 0 : index
    %145 = vector.load %arg14[%c0_182, %c0_183] : memref<152x256xf32, #tpu.memory_space<vmem>>, vector<150x196xf32>
    %cst_184 = arith.constant dense<0.000000e+00> : vector<16x196xf32>
    %146 = tpu.matmul %144, %145, %cst_184 {dimension_numbers = #tpu.dot_dimension_numbers<[1], [0], [0], [1], [0, 0, 1, 1], [], []>} : vector<16x150xf32>, vector<150x196xf32>, vector<16x196xf32> -> vector<16x196xf32>
    %c0_185 = arith.constant 0 : index
    %c0_186 = arith.constant 0 : index
    %147 = vector.load %arg5[%c0_185, %c0_186] : memref<16x1xf32, #tpu.memory_space<vmem>>, vector<16x1xf32>
    %148 = vector.broadcast %147 : vector<16x1xf32> to vector<16x196xf32>
    %149 = arith.addf %146, %148 : vector<16x196xf32>
    %cst_187 = arith.constant 0.000000e+00 : f32
    %150 = vector.broadcast %cst_187 : f32 to vector<16x196xf32>
    %151 = arith.maximumf %149, %150 : vector<16x196xf32>
    %c0_188 = arith.constant 0 : index
    %c0_189 = arith.constant 0 : index
    %152 = vector.load %arg17[%c0_188, %c0_189] : memref<16x256xf32, #tpu.memory_space<vmem>>, vector<16x196xf32>
    tpu.vector_store %arg17[%c0_188, %c0_189], %151 {strides = array<i32>} : memref<16x256xf32, #tpu.memory_space<vmem>>, vector<16x196xf32>,
    %c0_190 = arith.constant 0 : index
    %c0_191 = arith.constant 0 : index
    %153 = vector.load %arg17[%c0_190, %c0_191] : memref<16x256xf32, #tpu.memory_space<vmem>>, vector<16x181xf32>
    %c0_192 = arith.constant 0 : index
    %c1_193 = arith.constant 1 : index
    %154 = vector.load %arg17[%c0_192, %c1_193] : memref<16x256xf32, #tpu.memory_space<vmem>>, vector<16x181xf32>
    %155 = arith.maximumf %153, %154 : vector<16x181xf32>
    %c0_194 = arith.constant 0 : index
    %c14_195 = arith.constant 14 : index
    %156 = vector.load %arg17[%c0_194, %c14_195] : memref<16x256xf32, #tpu.memory_space<vmem>>, vector<16x181xf32>
    %c0_196 = arith.constant 0 : index
    %c15_197 = arith.constant 15 : index
    %157 = vector.load %arg17[%c0_196, %c15_197] : memref<16x256xf32, #tpu.memory_space<vmem>>, vector<16x181xf32>
    %158 = arith.maximumf %156, %157 : vector<16x181xf32>
    %159 = arith.maximumf %155, %158 : vector<16x181xf32>
    %c0_198 = arith.constant 0 : index
    %c0_199 = arith.constant 0 : index
    %160 = vector.load %arg7[%c0_198, %c0_199] : memref<181x32xf32, #tpu.memory_space<vmem>>, vector<181x32xf32>
    %cst_200 = arith.constant dense<0.000000e+00> : vector<16x32xf32>
    %161 = tpu.matmul %159, %160, %cst_200 {dimension_numbers = #tpu.dot_dimension_numbers<[1], [0], [0], [1], [0, 0, 1, 1], [], []>} : vector<16x181xf32>, vector<181x32xf32>, vector<16x32xf32> -> vector<16x32xf32>
    %c0_201 = arith.constant 0 : index
    %c0_202 = arith.constant 0 : index
    %162 = vector.load %arg18[%c0_201, %c0_202] : memref<16x32xf32, #tpu.memory_space<vmem>>, vector<16x32xf32>
    tpu.vector_store %arg18[%c0_201, %c0_202], %161 {strides = array<i32>} : memref<16x32xf32, #tpu.memory_space<vmem>>, vector<16x32xf32>,
    %c0_203 = arith.constant 0 : index
    %c0_204 = arith.constant 0 : index
    %163 = vector.load %arg9[%c0_203, %c0_204] : memref<1x128xf32, #tpu.memory_space<vmem>>, vector<1x128xf32>
    %c0_205 = arith.constant 0 : index
    %c0_206 = arith.constant 0 : index
    %164 = vector.load %arg18[%c0_205, %c0_206] : memref<16x32xf32, #tpu.memory_space<vmem>>, vector<1x32xf32>
    %c0_207 = arith.constant 0 : index
    %c0_208 = arith.constant 0 : index
    %c0_209 = arith.constant 0 : index
    %165 = vector.load %arg8[%c0_207, %c0_208, %c0_209] : memref<16x32x128xf32, #tpu.memory_space<vmem>>, vector<1x32x128xf32>
    %166 = vector.shape_cast %165 : vector<1x32x128xf32> to vector<32x128xf32>
    %cst_210 = arith.constant dense<0.000000e+00> : vector<1x128xf32>
    %167 = tpu.matmul %164, %166, %cst_210 {dimension_numbers = #tpu.dot_dimension_numbers<[1], [0], [0], [1], [0, 0, 1, 1], [], []>} : vector<1x32xf32>, vector<32x128xf32>, vector<1x128xf32> -> vector<1x128xf32>
    %168 = arith.addf %163, %167 : vector<1x128xf32>
    %c1_211 = arith.constant 1 : index
    %c0_212 = arith.constant 0 : index
    %169 = vector.load %arg18[%c1_211, %c0_212] : memref<16x32xf32, #tpu.memory_space<vmem>>, vector<1x32xf32>
    %c1_213 = arith.constant 1 : index
    %c0_214 = arith.constant 0 : index
    %c0_215 = arith.constant 0 : index
    %170 = vector.load %arg8[%c1_213, %c0_214, %c0_215] : memref<16x32x128xf32, #tpu.memory_space<vmem>>, vector<1x32x128xf32>
    %171 = vector.shape_cast %170 : vector<1x32x128xf32> to vector<32x128xf32>
    %cst_216 = arith.constant dense<0.000000e+00> : vector<1x128xf32>
    %172 = tpu.matmul %169, %171, %cst_216 {dimension_numbers = #tpu.dot_dimension_numbers<[1], [0], [0], [1], [0, 0, 1, 1], [], []>} : vector<1x32xf32>, vector<32x128xf32>, vector<1x128xf32> -> vector<1x128xf32>
    %173 = arith.addf %168, %172 : vector<1x128xf32>
    %c2_217 = arith.constant 2 : index
    %c0_218 = arith.constant 0 : index
    %174 = vector.load %arg18[%c2_217, %c0_218] : memref<16x32xf32, #tpu.memory_space<vmem>>, vector<1x32xf32>
    %c2_219 = arith.constant 2 : index
    %c0_220 = arith.constant 0 : index
    %c0_221 = arith.constant 0 : index
    %175 = vector.load %arg8[%c2_219, %c0_220, %c0_221] : memref<16x32x128xf32, #tpu.memory_space<vmem>>, vector<1x32x128xf32>
    %176 = vector.shape_cast %175 : vector<1x32x128xf32> to vector<32x128xf32>
    %cst_222 = arith.constant dense<0.000000e+00> : vector<1x128xf32>
    %177 = tpu.matmul %174, %176, %cst_222 {dimension_numbers = #tpu.dot_dimension_numbers<[1], [0], [0], [1], [0, 0, 1, 1], [], []>} : vector<1x32xf32>, vector<32x128xf32>, vector<1x128xf32> -> vector<1x128xf32>
    %178 = arith.addf %173, %177 : vector<1x128xf32>
    %c3_223 = arith.constant 3 : index
    %c0_224 = arith.constant 0 : index
    %179 = vector.load %arg18[%c3_223, %c0_224] : memref<16x32xf32, #tpu.memory_space<vmem>>, vector<1x32xf32>
    %c3_225 = arith.constant 3 : index
    %c0_226 = arith.constant 0 : index
    %c0_227 = arith.constant 0 : index
    %180 = vector.load %arg8[%c3_225, %c0_226, %c0_227] : memref<16x32x128xf32, #tpu.memory_space<vmem>>, vector<1x32x128xf32>
    %181 = vector.shape_cast %180 : vector<1x32x128xf32> to vector<32x128xf32>
    %cst_228 = arith.constant dense<0.000000e+00> : vector<1x128xf32>
    %182 = tpu.matmul %179, %181, %cst_228 {dimension_numbers = #tpu.dot_dimension_numbers<[1], [0], [0], [1], [0, 0, 1, 1], [], []>} : vector<1x32xf32>, vector<32x128xf32>, vector<1x128xf32> -> vector<1x128xf32>
    %183 = arith.addf %178, %182 : vector<1x128xf32>
    %c4_229 = arith.constant 4 : index
    %c0_230 = arith.constant 0 : index
    %184 = vector.load %arg18[%c4_229, %c0_230] : memref<16x32xf32, #tpu.memory_space<vmem>>, vector<1x32xf32>
    %c4_231 = arith.constant 4 : index
    %c0_232 = arith.constant 0 : index
    %c0_233 = arith.constant 0 : index
    %185 = vector.load %arg8[%c4_231, %c0_232, %c0_233] : memref<16x32x128xf32, #tpu.memory_space<vmem>>, vector<1x32x128xf32>
    %186 = vector.shape_cast %185 : vector<1x32x128xf32> to vector<32x128xf32>
    %cst_234 = arith.constant dense<0.000000e+00> : vector<1x128xf32>
    %187 = tpu.matmul %184, %186, %cst_234 {dimension_numbers = #tpu.dot_dimension_numbers<[1], [0], [0], [1], [0, 0, 1, 1], [], []>} : vector<1x32xf32>, vector<32x128xf32>, vector<1x128xf32> -> vector<1x128xf32>
    %188 = arith.addf %183, %187 : vector<1x128xf32>
    %c5 = arith.constant 5 : index
    %c0_235 = arith.constant 0 : index
    %189 = vector.load %arg18[%c5, %c0_235] : memref<16x32xf32, #tpu.memory_space<vmem>>, vector<1x32xf32>
    %c5_236 = arith.constant 5 : index
    %c0_237 = arith.constant 0 : index
    %c0_238 = arith.constant 0 : index
    %190 = vector.load %arg8[%c5_236, %c0_237, %c0_238] : memref<16x32x128xf32, #tpu.memory_space<vmem>>, vector<1x32x128xf32>
    %191 = vector.shape_cast %190 : vector<1x32x128xf32> to vector<32x128xf32>
    %cst_239 = arith.constant dense<0.000000e+00> : vector<1x128xf32>
    %192 = tpu.matmul %189, %191, %cst_239 {dimension_numbers = #tpu.dot_dimension_numbers<[1], [0], [0], [1], [0, 0, 1, 1], [], []>} : vector<1x32xf32>, vector<32x128xf32>, vector<1x128xf32> -> vector<1x128xf32>
    %193 = arith.addf %188, %192 : vector<1x128xf32>
    %c6_240 = arith.constant 6 : index
    %c0_241 = arith.constant 0 : index
    %194 = vector.load %arg18[%c6_240, %c0_241] : memref<16x32xf32, #tpu.memory_space<vmem>>, vector<1x32xf32>
    %c6_242 = arith.constant 6 : index
    %c0_243 = arith.constant 0 : index
    %c0_244 = arith.constant 0 : index
    %195 = vector.load %arg8[%c6_242, %c0_243, %c0_244] : memref<16x32x128xf32, #tpu.memory_space<vmem>>, vector<1x32x128xf32>
    %196 = vector.shape_cast %195 : vector<1x32x128xf32> to vector<32x128xf32>
    %cst_245 = arith.constant dense<0.000000e+00> : vector<1x128xf32>
    %197 = tpu.matmul %194, %196, %cst_245 {dimension_numbers = #tpu.dot_dimension_numbers<[1], [0], [0], [1], [0, 0, 1, 1], [], []>} : vector<1x32xf32>, vector<32x128xf32>, vector<1x128xf32> -> vector<1x128xf32>
    %198 = arith.addf %193, %197 : vector<1x128xf32>
    %c7 = arith.constant 7 : index
    %c0_246 = arith.constant 0 : index
    %199 = vector.load %arg18[%c7, %c0_246] : memref<16x32xf32, #tpu.memory_space<vmem>>, vector<1x32xf32>
    %c7_247 = arith.constant 7 : index
    %c0_248 = arith.constant 0 : index
    %c0_249 = arith.constant 0 : index
    %200 = vector.load %arg8[%c7_247, %c0_248, %c0_249] : memref<16x32x128xf32, #tpu.memory_space<vmem>>, vector<1x32x128xf32>
    %201 = vector.shape_cast %200 : vector<1x32x128xf32> to vector<32x128xf32>
    %cst_250 = arith.constant dense<0.000000e+00> : vector<1x128xf32>
    %202 = tpu.matmul %199, %201, %cst_250 {dimension_numbers = #tpu.dot_dimension_numbers<[1], [0], [0], [1], [0, 0, 1, 1], [], []>} : vector<1x32xf32>, vector<32x128xf32>, vector<1x128xf32> -> vector<1x128xf32>
    %203 = arith.addf %198, %202 : vector<1x128xf32>
    %c8 = arith.constant 8 : index
    %c0_251 = arith.constant 0 : index
    %204 = vector.load %arg18[%c8, %c0_251] : memref<16x32xf32, #tpu.memory_space<vmem>>, vector<1x32xf32>
    %c8_252 = arith.constant 8 : index
    %c0_253 = arith.constant 0 : index
    %c0_254 = arith.constant 0 : index
    %205 = vector.load %arg8[%c8_252, %c0_253, %c0_254] : memref<16x32x128xf32, #tpu.memory_space<vmem>>, vector<1x32x128xf32>
    %206 = vector.shape_cast %205 : vector<1x32x128xf32> to vector<32x128xf32>
    %cst_255 = arith.constant dense<0.000000e+00> : vector<1x128xf32>
    %207 = tpu.matmul %204, %206, %cst_255 {dimension_numbers = #tpu.dot_dimension_numbers<[1], [0], [0], [1], [0, 0, 1, 1], [], []>} : vector<1x32xf32>, vector<32x128xf32>, vector<1x128xf32> -> vector<1x128xf32>
    %208 = arith.addf %203, %207 : vector<1x128xf32>
    %c9_256 = arith.constant 9 : index
    %c0_257 = arith.constant 0 : index
    %209 = vector.load %arg18[%c9_256, %c0_257] : memref<16x32xf32, #tpu.memory_space<vmem>>, vector<1x32xf32>
    %c9_258 = arith.constant 9 : index
    %c0_259 = arith.constant 0 : index
    %c0_260 = arith.constant 0 : index
    %210 = vector.load %arg8[%c9_258, %c0_259, %c0_260] : memref<16x32x128xf32, #tpu.memory_space<vmem>>, vector<1x32x128xf32>
    %211 = vector.shape_cast %210 : vector<1x32x128xf32> to vector<32x128xf32>
    %cst_261 = arith.constant dense<0.000000e+00> : vector<1x128xf32>
    %212 = tpu.matmul %209, %211, %cst_261 {dimension_numbers = #tpu.dot_dimension_numbers<[1], [0], [0], [1], [0, 0, 1, 1], [], []>} : vector<1x32xf32>, vector<32x128xf32>, vector<1x128xf32> -> vector<1x128xf32>
    %213 = arith.addf %208, %212 : vector<1x128xf32>
    %c10 = arith.constant 10 : index
    %c0_262 = arith.constant 0 : index
    %214 = vector.load %arg18[%c10, %c0_262] : memref<16x32xf32, #tpu.memory_space<vmem>>, vector<1x32xf32>
    %c10_263 = arith.constant 10 : index
    %c0_264 = arith.constant 0 : index
    %c0_265 = arith.constant 0 : index
    %215 = vector.load %arg8[%c10_263, %c0_264, %c0_265] : memref<16x32x128xf32, #tpu.memory_space<vmem>>, vector<1x32x128xf32>
    %216 = vector.shape_cast %215 : vector<1x32x128xf32> to vector<32x128xf32>
    %cst_266 = arith.constant dense<0.000000e+00> : vector<1x128xf32>
    %217 = tpu.matmul %214, %216, %cst_266 {dimension_numbers = #tpu.dot_dimension_numbers<[1], [0], [0], [1], [0, 0, 1, 1], [], []>} : vector<1x32xf32>, vector<32x128xf32>, vector<1x128xf32> -> vector<1x128xf32>
    %218 = arith.addf %213, %217 : vector<1x128xf32>
    %c11 = arith.constant 11 : index
    %c0_267 = arith.constant 0 : index
    %219 = vector.load %arg18[%c11, %c0_267] : memref<16x32xf32, #tpu.memory_space<vmem>>, vector<1x32xf32>
    %c11_268 = arith.constant 11 : index
    %c0_269 = arith.constant 0 : index
    %c0_270 = arith.constant 0 : index
    %220 = vector.load %arg8[%c11_268, %c0_269, %c0_270] : memref<16x32x128xf32, #tpu.memory_space<vmem>>, vector<1x32x128xf32>
    %221 = vector.shape_cast %220 : vector<1x32x128xf32> to vector<32x128xf32>
    %cst_271 = arith.constant dense<0.000000e+00> : vector<1x128xf32>
    %222 = tpu.matmul %219, %221, %cst_271 {dimension_numbers = #tpu.dot_dimension_numbers<[1], [0], [0], [1], [0, 0, 1, 1], [], []>} : vector<1x32xf32>, vector<32x128xf32>, vector<1x128xf32> -> vector<1x128xf32>
    %223 = arith.addf %218, %222 : vector<1x128xf32>
    %c12_272 = arith.constant 12 : index
    %c0_273 = arith.constant 0 : index
    %224 = vector.load %arg18[%c12_272, %c0_273] : memref<16x32xf32, #tpu.memory_space<vmem>>, vector<1x32xf32>
    %c12_274 = arith.constant 12 : index
    %c0_275 = arith.constant 0 : index
    %c0_276 = arith.constant 0 : index
    %225 = vector.load %arg8[%c12_274, %c0_275, %c0_276] : memref<16x32x128xf32, #tpu.memory_space<vmem>>, vector<1x32x128xf32>
    %226 = vector.shape_cast %225 : vector<1x32x128xf32> to vector<32x128xf32>
    %cst_277 = arith.constant dense<0.000000e+00> : vector<1x128xf32>
    %227 = tpu.matmul %224, %226, %cst_277 {dimension_numbers = #tpu.dot_dimension_numbers<[1], [0], [0], [1], [0, 0, 1, 1], [], []>} : vector<1x32xf32>, vector<32x128xf32>, vector<1x128xf32> -> vector<1x128xf32>
    %228 = arith.addf %223, %227 : vector<1x128xf32>
    %c13 = arith.constant 13 : index
    %c0_278 = arith.constant 0 : index
    %229 = vector.load %arg18[%c13, %c0_278] : memref<16x32xf32, #tpu.memory_space<vmem>>, vector<1x32xf32>
    %c13_279 = arith.constant 13 : index
    %c0_280 = arith.constant 0 : index
    %c0_281 = arith.constant 0 : index
    %230 = vector.load %arg8[%c13_279, %c0_280, %c0_281] : memref<16x32x128xf32, #tpu.memory_space<vmem>>, vector<1x32x128xf32>
    %231 = vector.shape_cast %230 : vector<1x32x128xf32> to vector<32x128xf32>
    %cst_282 = arith.constant dense<0.000000e+00> : vector<1x128xf32>
    %232 = tpu.matmul %229, %231, %cst_282 {dimension_numbers = #tpu.dot_dimension_numbers<[1], [0], [0], [1], [0, 0, 1, 1], [], []>} : vector<1x32xf32>, vector<32x128xf32>, vector<1x128xf32> -> vector<1x128xf32>
    %233 = arith.addf %228, %232 : vector<1x128xf32>
    %c14_283 = arith.constant 14 : index
    %c0_284 = arith.constant 0 : index
    %234 = vector.load %arg18[%c14_283, %c0_284] : memref<16x32xf32, #tpu.memory_space<vmem>>, vector<1x32xf32>
    %c14_285 = arith.constant 14 : index
    %c0_286 = arith.constant 0 : index
    %c0_287 = arith.constant 0 : index
    %235 = vector.load %arg8[%c14_285, %c0_286, %c0_287] : memref<16x32x128xf32, #tpu.memory_space<vmem>>, vector<1x32x128xf32>
    %236 = vector.shape_cast %235 : vector<1x32x128xf32> to vector<32x128xf32>
    %cst_288 = arith.constant dense<0.000000e+00> : vector<1x128xf32>
    %237 = tpu.matmul %234, %236, %cst_288 {dimension_numbers = #tpu.dot_dimension_numbers<[1], [0], [0], [1], [0, 0, 1, 1], [], []>} : vector<1x32xf32>, vector<32x128xf32>, vector<1x128xf32> -> vector<1x128xf32>
    %238 = arith.addf %233, %237 : vector<1x128xf32>
    %c15_289 = arith.constant 15 : index
    %c0_290 = arith.constant 0 : index
    %239 = vector.load %arg18[%c15_289, %c0_290] : memref<16x32xf32, #tpu.memory_space<vmem>>, vector<1x32xf32>
    %c15_291 = arith.constant 15 : index
    %c0_292 = arith.constant 0 : index
    %c0_293 = arith.constant 0 : index
    %240 = vector.load %arg8[%c15_291, %c0_292, %c0_293] : memref<16x32x128xf32, #tpu.memory_space<vmem>>, vector<1x32x128xf32>
    %241 = vector.shape_cast %240 : vector<1x32x128xf32> to vector<32x128xf32>
    %cst_294 = arith.constant dense<0.000000e+00> : vector<1x128xf32>
    %242 = tpu.matmul %239, %241, %cst_294 {dimension_numbers = #tpu.dot_dimension_numbers<[1], [0], [0], [1], [0, 0, 1, 1], [], []>} : vector<1x32xf32>, vector<32x128xf32>, vector<1x128xf32> -> vector<1x128xf32>
    %243 = arith.addf %238, %242 : vector<1x128xf32>
    %cst_295 = arith.constant 0.000000e+00 : f32
    %244 = vector.broadcast %cst_295 : f32 to vector<1x128xf32>
    %245 = arith.maximumf %243, %244 : vector<1x128xf32>
    %c0_296 = arith.constant 0 : index
    %c0_297 = arith.constant 0 : index
    %246 = vector.load %arg10[%c0_296, %c0_297] : memref<128x128xf32, #tpu.memory_space<vmem>>, vector<128x128xf32>
    %cst_298 = arith.constant dense<0.000000e+00> : vector<1x128xf32>
    %247 = tpu.matmul %245, %246, %cst_298 {dimension_numbers = #tpu.dot_dimension_numbers<[1], [0], [0], [1], [0, 0, 1, 1], [], []>} : vector<1x128xf32>, vector<128x128xf32>, vector<1x128xf32> -> vector<1x128xf32>
    %c0_299 = arith.constant 0 : index
    %c0_300 = arith.constant 0 : index
    %248 = vector.load %arg11[%c0_299, %c0_300] : memref<1x128xf32, #tpu.memory_space<vmem>>, vector<1x128xf32>
    %249 = arith.addf %247, %248 : vector<1x128xf32>
    %250 = vector.shape_cast %249 : vector<1x128xf32> to vector<1x128xf32>
    %251 = vector.broadcast %250 : vector<1x128xf32> to vector<8x128xf32>
    %c0_301 = arith.constant 0 : index
    %c0_302 = arith.constant 0 : index
    %c0_303 = arith.constant 0 : index
    %252 = vector.load %arg12[%c0_301, %c0_302, %c0_303] : memref<1x8x128xf32, #tpu.memory_space<vmem>>, vector<1x8x128xf32>
    %253 = vector.shape_cast %252 : vector<1x8x128xf32> to vector<8x128xf32>
    %254 = vector.shape_cast %251 : vector<8x128xf32> to vector<1x8x128xf32>
    tpu.vector_store %arg12[%c0_301, %c0_302, %c0_303], %254 {strides = array<i32>} : memref<1x8x128xf32, #tpu.memory_space<vmem>>, vector<1x8x128xf32>,
    return
  }
  func.func @transform_0(%arg0: i32) -> (i32, i32, i32) {
    %c0_i32 = arith.constant 0 : i32
    %c0_i32_0 = arith.constant 0 : i32
    %c0_i32_1 = arith.constant 0 : i32
    return %arg0, %c0_i32, %c0_i32_0 : i32, i32, i32
  }
  func.func @transform_1(%arg0: i32) -> (i32, i32) {
    %c0_i32 = arith.constant 0 : i32
    %c0_i32_0 = arith.constant 0 : i32
    %c0_i32_1 = arith.constant 0 : i32
    return %c0_i32, %c0_i32_0 : i32, i32
  }
  func.func @transform_2(%arg0: i32) -> (i32, i32) {
    %c0_i32 = arith.constant 0 : i32
    %c0_i32_0 = arith.constant 0 : i32
    %c0_i32_1 = arith.constant 0 : i32
    return %c0_i32, %c0_i32_0 : i32, i32
  }
  func.func @transform_3(%arg0: i32) -> (i32, i32) {
    %c0_i32 = arith.constant 0 : i32
    %c0_i32_0 = arith.constant 0 : i32
    %c0_i32_1 = arith.constant 0 : i32
    return %c0_i32, %c0_i32_0 : i32, i32
  }
  func.func @transform_4(%arg0: i32) -> (i32, i32) {
    %c0_i32 = arith.constant 0 : i32
    %c0_i32_0 = arith.constant 0 : i32
    %c0_i32_1 = arith.constant 0 : i32
    return %c0_i32, %c0_i32_0 : i32, i32
  }
  func.func @transform_5(%arg0: i32) -> (i32, i32) {
    %c0_i32 = arith.constant 0 : i32
    %c0_i32_0 = arith.constant 0 : i32
    %c0_i32_1 = arith.constant 0 : i32
    return %c0_i32, %c0_i32_0 : i32, i32
  }
  func.func @transform_6(%arg0: i32) -> (i32, i32) {
    %c0_i32 = arith.constant 0 : i32
    %c0_i32_0 = arith.constant 0 : i32
    %c0_i32_1 = arith.constant 0 : i32
    return %c0_i32, %c0_i32_0 : i32, i32
  }
  func.func @transform_7(%arg0: i32) -> (i32, i32, i32) {
    %c0_i32 = arith.constant 0 : i32
    %c0_i32_0 = arith.constant 0 : i32
    %c0_i32_1 = arith.constant 0 : i32
    %c0_i32_2 = arith.constant 0 : i32
    return %c0_i32, %c0_i32_0, %c0_i32_1 : i32, i32, i32
  }
  func.func @transform_8(%arg0: i32) -> (i32, i32) {
    %c0_i32 = arith.constant 0 : i32
    %c0_i32_0 = arith.constant 0 : i32
    %c0_i32_1 = arith.constant 0 : i32
    return %c0_i32, %c0_i32_0 : i32, i32
  }
  func.func @transform_9(%arg0: i32) -> (i32, i32) {
    %c0_i32 = arith.constant 0 : i32
    %c0_i32_0 = arith.constant 0 : i32
    %c0_i32_1 = arith.constant 0 : i32
    return %c0_i32, %c0_i32_0 : i32, i32
  }
  func.func @transform_10(%arg0: i32) -> (i32, i32) {
    %c0_i32 = arith.constant 0 : i32
    %c0_i32_0 = arith.constant 0 : i32
    %c0_i32_1 = arith.constant 0 : i32
    return %c0_i32, %c0_i32_0 : i32, i32
  }
  func.func @transform_11(%arg0: i32) -> (i32, i32, i32) {
    %c0_i32 = arith.constant 0 : i32
    %c0_i32_0 = arith.constant 0 : i32
    %c0_i32_1 = arith.constant 0 : i32
    return %arg0, %c0_i32, %c0_i32_0 : i32, i32, i32
  }
}

</mosaic_0001>

<llo_original>
// kernel: simplenet_forward.1
$region0: #{simplenet_forward.1}
  #allocation0 [shape = 'u32[]', space=smem, size = 0x4, offset = 0x4, fixed_abs, tag = 'smem constant byte address 0x4 - core index']
  #allocation1 [shape = 'u32[72,128]{1,0:T(1,128)}', space=vmem, size = 0x9000, scoped, tag = 'internal scratch']
  #allocation2 [shape = 'f32[80,1024]{1,0:T(8,128)}', space=vmem, size = 0x50000, scoped, tag = 'scratch operand']
  #allocation3 [shape = 'f32[152,256]{1,0:T(8,128)}', space=vmem, size = 0x26000, scoped, tag = 'scratch operand']
  #allocation4 [shape = 'f32[8,1024]{1,0:T(8,128)}', space=vmem, size = 0x8000, scoped, tag = 'scratch operand']
  #allocation5 [shape = 'f32[8,256]{1,0:T(8,128)}', space=vmem, size = 0x2000, scoped, tag = 'scratch operand']
  #allocation6 [shape = 'f32[16,256]{1,0:T(8,128)}', space=vmem, size = 0x4000, scoped, tag = 'scratch operand']
  #allocation7 [shape = 'f32[16,32]{1,0:T(8,128)}', space=vmem, size = 0x2000, scoped, tag = 'scratch operand']
  %s0 = inlined_call_operand.vmem [shape: f32[2,3,1280], index: 0, kind: input, shape index: {}]
  %s1 = inlined_call_operand.vmem [shape: f32[6,75], index: 1, kind: input, shape index: {}]
  %s2 = inlined_call_operand.vmem [shape: f32[6,1], index: 2, kind: input, shape index: {}]
  %s3 = inlined_call_operand.vmem [shape: f32[16,150], index: 3, kind: input, shape index: {}]
  %s4 = inlined_call_operand.vmem [shape: f32[16,1], index: 4, kind: input, shape index: {}]
  %s5 = inlined_call_operand.hbm [shape: f32[991,256], index: 5, kind: input, shape index: {}]
  %s6 = inlined_call_operand.vmem [shape: f32[181,32], index: 6, kind: input, shape index: {}]
  %s7 = inlined_call_operand.hbm [shape: f32[16,32,128], index: 7, kind: input, shape index: {}]
  %s8 = inlined_call_operand.vmem [shape: f32[1,128], index: 8, kind: input, shape index: {}]
  %s9 = inlined_call_operand.vmem [shape: f32[128,128], index: 9, kind: input, shape index: {}]
  %s10 = inlined_call_operand.vmem [shape: f32[1,128], index: 10, kind: input, shape index: {}]
  %s11 = inlined_call_operand.vmem [shape: f32[2,8,128], index: 11, kind: output, shape index: {}]
  %s12 = sld [smem:[#allocation0]]
  $region85: #{simplenet_forward.1} parent=0
    _
  %s14 = ssub.s32 1, %s12
  %s15 = scalar_select 0, %s14, %s12
  $region1: #{simplenet_forward.1} parent=0
    #allocation8 [shape = 'u8[1015808]{0}', space=vmem, size = 0xf8000, scoped, tag = 'input window, operand 5, single buffered']
    #allocation9 [shape = 's32[2]{0}', space=sflag, size = 0x8, scoped, tag = 'scoped memory for simplenet_forward.1']
    #allocation10 [shape = 'u8[262144]{0}', space=vmem, size = 0x40000, scoped, tag = 'input window, operand 7, single buffered']
    #allocation11 [shape = 's32[1]{0}', space=sflag, size = 0x4, scoped, tag = 'scoped memory for simplenet_forward.1']
    %16 = vsyncpa [#allocation9], 0
    %17 = vsyncpa [#allocation11], 0
    loop: start=0, step=1, limit=4
    $region2: #{simplenet_forward.1} parent=1 // loop_pre_header
      _
    $region3: #{simplenet_forward.1} parent=1 // loop_header
      %s19 = sphi 0, %s23
      %p20 = scmp.ge.s32.totalorder %s19, 4
      %s29 = sphi 0, %s31
      %s32 = sphi 0, %s29
      %s33 = sphi 0, %s32
      %s49 = sphi 0, %s33
      %s53 = sphi 0, %s53
      %s55 = sphi 0, %s53
      %s56 = sphi 0, %s55
      %s70 = sphi 0, %s56
      %s74 = sphi 0, %s74
      %s76 = sphi 0, %s74
      %s77 = sphi 0, %s76
      %s91 = sphi 0, %s77
      %s95 = sphi 0, %s95
      %s97 = sphi 0, %s95
      %s98 = sphi 0, %s97
      %s112 = sphi 0, %s98
      %s116 = sphi 0, %s116
      %s118 = sphi 0, %s116
      %s119 = sphi 0, %s118
      %s133 = sphi 0, %s119
      %s137 = sphi 0, %s137
      %s139 = sphi 0, %s137
      %s140 = sphi 0, %s139
      %s154 = sphi 0, %s140
      %s158 = sphi 0, %s158
      %s160 = sphi 0, %s158
      %s161 = sphi 0, %s160
      %s175 = sphi 0, %s161
      %s179 = sphi 0, %s179
      %s181 = sphi 0, %s179
      %s182 = sphi 0, %s181
      %s196 = sphi 0, %s182
      %s200 = sphi 0, %s200
      %s202 = sphi 0, %s200
      %s203 = sphi 0, %s202
      %s217 = sphi 0, %s203
      %s221 = sphi 0, %s221
      %s223 = sphi 0, %s221
      %s224 = sphi 0, %s223
      %s238 = sphi 0, %s224
      %s242 = sphi 0, %s242
      %s244 = sphi 0, %s242
      %s245 = sphi 0, %s244
      %s259 = sphi 0, %s245
      %s265 = sphi 0, %s267
      %s268 = sphi 0, %s265
      %s269 = sphi 0, %s268
      %s285 = sphi 0, %s269
    $region4: #{simplenet_forward.1} parent=1 // loop_header_branch
      %22 = sbr.rel (%p20) target = $region8
    $region5: #{simplenet_forward.1} parent=1 // loop_body
      %s24 = ssub.s32 %s19, 1
      %s25 = ssub.s32 %s19, 2
      %s26 = sadd.s32 %s19, 1
      %s27 = ssub.s32 %s19, %s26
      %p28 = scmp.eq.s32.totalorder %s27, 0
      %s30 = sadd.s32 %s29, 1
      %s31 = scalar_select %p28, %s29, %s30
      %p34 = pneg %p28
      %p35 = scmp.eq.s32.totalorder %s19, 1
      %p36 = por %p34, %p35
      %p37 = scmp.ne.s32.totalorder %s29, %s32
      %p38 = scmp.eq.s32.totalorder %s19, 0
      %p39 = por %p37, %p38
      %p40 = scmp.ne.s32.totalorder %s29, %s32
      %p41 = scmp.eq.s32.totalorder %s24, 1
      %p42 = por %p40, %p41
      %p43 = scmp.ne.s32.totalorder %s32, %s33
      %p44 = scmp.eq.s32.totalorder %s24, 0
      %p45 = por %p43, %p44
      %p46 = scmp.ne.s32.totalorder %s32, %s33
      %p47 = scmp.eq.s32.totalorder %s25, 1
      %p48 = por %p46, %p47
      %p50 = scmp.ne.s32.totalorder %s33, %s49
      %p51 = scmp.eq.s32.totalorder %s25, 0
      %p52 = por %p50, %p51
      %s54 = sadd.s32 %s53, 1
      %p57 = scmp.eq.s32.totalorder %s19, 1
      %p58 = scmp.ne.s32.totalorder %s53, %s55
      %p59 = scmp.eq.s32.totalorder %s19, 0
      %p60 = por %p58, %p59
      %p61 = scmp.ne.s32.totalorder %s53, %s55
      %p62 = scmp.eq.s32.totalorder %s24, 1
      %p63 = por %p61, %p62
      %p64 = scmp.ne.s32.totalorder %s55, %s56
      %p65 = scmp.eq.s32.totalorder %s24, 0
      %p66 = por %p64, %p65
      %p67 = scmp.ne.s32.totalorder %s55, %s56
      %p68 = scmp.eq.s32.totalorder %s25, 1
      %p69 = por %p67, %p68
      %p71 = scmp.ne.s32.totalorder %s56, %s70
      %p72 = scmp.eq.s32.totalorder %s25, 0
      %p73 = por %p71, %p72
      %s75 = sadd.s32 %s74, 1
      %p78 = scmp.eq.s32.totalorder %s19, 1
      %p79 = scmp.ne.s32.totalorder %s74, %s76
      %p80 = scmp.eq.s32.totalorder %s19, 0
      %p81 = por %p79, %p80
      %p82 = scmp.ne.s32.totalorder %s74, %s76
      %p83 = scmp.eq.s32.totalorder %s24, 1
      %p84 = por %p82, %p83
      %p85 = scmp.ne.s32.totalorder %s76, %s77
      %p86 = scmp.eq.s32.totalorder %s24, 0
      %p87 = por %p85, %p86
      %p88 = scmp.ne.s32.totalorder %s76, %s77
      %p89 = scmp.eq.s32.totalorder %s25, 1
      %p90 = por %p88, %p89
      %p92 = scmp.ne.s32.totalorder %s77, %s91
      %p93 = scmp.eq.s32.totalorder %s25, 0
      %p94 = por %p92, %p93
      %s96 = sadd.s32 %s95, 1
      %p99 = scmp.eq.s32.totalorder %s19, 1
      %p100 = scmp.ne.s32.totalorder %s95, %s97
      %p101 = scmp.eq.s32.totalorder %s19, 0
      %p102 = por %p100, %p101
      %p103 = scmp.ne.s32.totalorder %s95, %s97
      %p104 = scmp.eq.s32.totalorder %s24, 1
      %p105 = por %p103, %p104
      %p106 = scmp.ne.s32.totalorder %s97, %s98
      %p107 = scmp.eq.s32.totalorder %s24, 0
      %p108 = por %p106, %p107
      %p109 = scmp.ne.s32.totalorder %s97, %s98
      %p110 = scmp.eq.s32.totalorder %s25, 1
      %p111 = por %p109, %p110
      %p113 = scmp.ne.s32.totalorder %s98, %s112
      %p114 = scmp.eq.s32.totalorder %s25, 0
      %p115 = por %p113, %p114
      %s117 = sadd.s32 %s116, 1
      %p120 = scmp.eq.s32.totalorder %s19, 1
      %p121 = scmp.ne.s32.totalorder %s116, %s118
      %p122 = scmp.eq.s32.totalorder %s19, 0
      %p123 = por %p121, %p122
      %p124 = scmp.ne.s32.totalorder %s116, %s118
      %p125 = scmp.eq.s32.totalorder %s24, 1
      %p126 = por %p124, %p125
      %p127 = scmp.ne.s32.totalorder %s118, %s119
      %p128 = scmp.eq.s32.totalorder %s24, 0
      %p129 = por %p127, %p128
      %p130 = scmp.ne.s32.totalorder %s118, %s119
      %p131 = scmp.eq.s32.totalorder %s25, 1
      %p132 = por %p130, %p131
      %p134 = scmp.ne.s32.totalorder %s119, %s133
      %p135 = scmp.eq.s32.totalorder %s25, 0
      %p136 = por %p134, %p135
      %s138 = sadd.s32 %s137, 1
      %p141 = scmp.eq.s32.totalorder %s19, 1
      %p142 = scmp.ne.s32.totalorder %s137, %s139
      %p143 = scmp.eq.s32.totalorder %s19, 0
      %p144 = por %p142, %p143
      %p145 = scmp.ne.s32.totalorder %s137, %s139
      %p146 = scmp.eq.s32.totalorder %s24, 1
      %p147 = por %p145, %p146
      %p148 = scmp.ne.s32.totalorder %s139, %s140
      %p149 = scmp.eq.s32.totalorder %s24, 0
      %p150 = por %p148, %p149
      %p151 = scmp.ne.s32.totalorder %s139, %s140
      %p152 = scmp.eq.s32.totalorder %s25, 1
      %p153 = por %p151, %p152
      %p155 = scmp.ne.s32.totalorder %s140, %s154
      %p156 = scmp.eq.s32.totalorder %s25, 0
      %p157 = por %p155, %p156
      %s159 = sadd.s32 %s158, 1
      %p162 = scmp.eq.s32.totalorder %s19, 1
      %p163 = scmp.ne.s32.totalorder %s158, %s160
      %p164 = scmp.eq.s32.totalorder %s19, 0
      %p165 = por %p163, %p164
      %p166 = scmp.ne.s32.totalorder %s158, %s160
      %p167 = scmp.eq.s32.totalorder %s24, 1
      %p168 = por %p166, %p167
      %p169 = scmp.ne.s32.totalorder %s160, %s161
      %p170 = scmp.eq.s32.totalorder %s24, 0
      %p171 = por %p169, %p170
      %p172 = scmp.ne.s32.totalorder %s160, %s161
      %p173 = scmp.eq.s32.totalorder %s25, 1
      %p174 = por %p172, %p173
      %p176 = scmp.ne.s32.totalorder %s161, %s175
      %p177 = scmp.eq.s32.totalorder %s25, 0
      %p178 = por %p176, %p177
      %s180 = sadd.s32 %s179, 1
      %p183 = scmp.eq.s32.totalorder %s19, 1
      %p184 = scmp.ne.s32.totalorder %s179, %s181
      %p185 = scmp.eq.s32.totalorder %s19, 0
      %p186 = por %p184, %p185
      %p187 = scmp.ne.s32.totalorder %s179, %s181
      %p188 = scmp.eq.s32.totalorder %s24, 1
      %p189 = por %p187, %p188
      %p190 = scmp.ne.s32.totalorder %s181, %s182
      %p191 = scmp.eq.s32.totalorder %s24, 0
      %p192 = por %p190, %p191
      %p193 = scmp.ne.s32.totalorder %s181, %s182
      %p194 = scmp.eq.s32.totalorder %s25, 1
      %p195 = por %p193, %p194
      %p197 = scmp.ne.s32.totalorder %s182, %s196
      %p198 = scmp.eq.s32.totalorder %s25, 0
      %p199 = por %p197, %p198
      %s201 = sadd.s32 %s200, 1
      %p204 = scmp.eq.s32.totalorder %s19, 1
      %p205 = scmp.ne.s32.totalorder %s200, %s202
      %p206 = scmp.eq.s32.totalorder %s19, 0
      %p207 = por %p205, %p206
      %p208 = scmp.ne.s32.totalorder %s200, %s202
      %p209 = scmp.eq.s32.totalorder %s24, 1
      %p210 = por %p208, %p209
      %p211 = scmp.ne.s32.totalorder %s202, %s203
      %p212 = scmp.eq.s32.totalorder %s24, 0
      %p213 = por %p211, %p212
      %p214 = scmp.ne.s32.totalorder %s202, %s203
      %p215 = scmp.eq.s32.totalorder %s25, 1
      %p216 = por %p214, %p215
      %p218 = scmp.ne.s32.totalorder %s203, %s217
      %p219 = scmp.eq.s32.totalorder %s25, 0
      %p220 = por %p218, %p219
      %s222 = sadd.s32 %s221, 1
      %p225 = scmp.eq.s32.totalorder %s19, 1
      %p226 = scmp.ne.s32.totalorder %s221, %s223
      %p227 = scmp.eq.s32.totalorder %s19, 0
      %p228 = por %p226, %p227
      %p229 = scmp.ne.s32.totalorder %s221, %s223
      %p230 = scmp.eq.s32.totalorder %s24, 1
      %p231 = por %p229, %p230
      %p232 = scmp.ne.s32.totalorder %s223, %s224
      %p233 = scmp.eq.s32.totalorder %s24, 0
      %p234 = por %p232, %p233
      %p235 = scmp.ne.s32.totalorder %s223, %s224
      %p236 = scmp.eq.s32.totalorder %s25, 1
      %p237 = por %p235, %p236
      %p239 = scmp.ne.s32.totalorder %s224, %s238
      %p240 = scmp.eq.s32.totalorder %s25, 0
      %p241 = por %p239, %p240
      %s243 = sadd.s32 %s242, 1
      %p246 = scmp.eq.s32.totalorder %s19, 1
      %p247 = scmp.ne.s32.totalorder %s242, %s244
      %p248 = scmp.eq.s32.totalorder %s19, 0
      %p249 = por %p247, %p248
      %p250 = scmp.ne.s32.totalorder %s242, %s244
      %p251 = scmp.eq.s32.totalorder %s24, 1
      %p252 = por %p250, %p251
      %p253 = scmp.ne.s32.totalorder %s244, %s245
      %p254 = scmp.eq.s32.totalorder %s24, 0
      %p255 = por %p253, %p254
      %p256 = scmp.ne.s32.totalorder %s244, %s245
      %p257 = scmp.eq.s32.totalorder %s25, 1
      %p258 = por %p256, %p257
      %p260 = scmp.ne.s32.totalorder %s245, %s259
      %p261 = scmp.eq.s32.totalorder %s25, 0
      %p262 = por %p260, %p261
      %s263 = ssub.s32 %s19, %s26
      %p264 = scmp.eq.s32.totalorder %s263, 0
      %s266 = sadd.s32 %s265, 1
      %s267 = scalar_select %p264, %s265, %s266
      %p270 = pneg %p264
      %p271 = scmp.eq.s32.totalorder %s19, 1
      %p272 = por %p270, %p271
      %p273 = scmp.ne.s32.totalorder %s265, %s268
      %p274 = scmp.eq.s32.totalorder %s19, 0
      %p275 = por %p273, %p274
      %p276 = scmp.ne.s32.totalorder %s265, %s268
      %p277 = scmp.eq.s32.totalorder %s24, 1
      %p278 = por %p276, %p277
      %p279 = scmp.ne.s32.totalorder %s268, %s269
      %p280 = scmp.eq.s32.totalorder %s24, 0
      %p281 = por %p279, %p280
      %p282 = scmp.ne.s32.totalorder %s268, %s269
      %p283 = scmp.eq.s32.totalorder %s25, 1
      %p284 = por %p282, %p283
      %p286 = scmp.ne.s32.totalorder %s269, %s285
      %p287 = scmp.eq.s32.totalorder %s25, 0
      %p288 = por %p286, %p287
      %p289 = scmp.le.s32.totalorder 1, %s19
      %p290 = scmp.lt.s32.totalorder %s19, 3
      %p291 = pnand %p289, %p290
      %p292 = pneg %p291
      // Predicated region
      $region9: #{simplenet_forward.1} parent=5 // pred_check
        _
      $region10: #{simplenet_forward.1} parent=5 // pred_check_branch
        %294 = sbr.rel (%p291) target = $region12
      $region11: #{simplenet_forward.1} parent=5 // pred_region
        %s295 = ssub.s32 %s19, 1
        // Predicated region
        $region13: #{simplenet_forward.1} parent=11 // pred_check
          %p296 = pneg %p66
        $region14: #{simplenet_forward.1} parent=11 // pred_check_branch
          %298 = sbr.rel (%p296) target = $region16
        $region15: #{simplenet_forward.1} parent=11 // pred_region
          _
        $region16: #{simplenet_forward.1} parent=11 // pred_fallthru
          _
        // Predicated region
        $region17: #{simplenet_forward.1} parent=11 // pred_check
          %p299 = pneg %p87
        $region18: #{simplenet_forward.1} parent=11 // pred_check_branch
          %301 = sbr.rel (%p299) target = $region20
        $region19: #{simplenet_forward.1} parent=11 // pred_region
          _
        $region20: #{simplenet_forward.1} parent=11 // pred_fallthru
          _
        // Predicated region
        $region21: #{simplenet_forward.1} parent=11 // pred_check
          %p302 = pneg %p108
        $region22: #{simplenet_forward.1} parent=11 // pred_check_branch
          %304 = sbr.rel (%p302) target = $region24
        $region23: #{simplenet_forward.1} parent=11 // pred_region
          _
        $region24: #{simplenet_forward.1} parent=11 // pred_fallthru
          _
        // Predicated region
        $region25: #{simplenet_forward.1} parent=11 // pred_check
          %p305 = pneg %p129
        $region26: #{simplenet_forward.1} parent=11 // pred_check_branch
          %307 = sbr.rel (%p305) target = $region28
        $region27: #{simplenet_forward.1} parent=11 // pred_region
          _
        $region28: #{simplenet_forward.1} parent=11 // pred_fallthru
          _
        // Predicated region
        $region29: #{simplenet_forward.1} parent=11 // pred_check
          %p308 = pneg %p150
        $region30: #{simplenet_forward.1} parent=11 // pred_check_branch
          %310 = sbr.rel (%p308) target = $region32
        $region31: #{simplenet_forward.1} parent=11 // pred_region
          %312 = vsyncadd [#allocation9], 0
          %s313 = sshll.u32 %s5, 4
          %s314 = int_to_ptr.hbm [resolvable:$true] %s313
          %s315 = sshll.u32 [#allocation8], 4
          %s316 = int_to_ptr.vmem [resolvable:$true] %s315
          %321 = dma.hbm_to_vmem [thread:$0]  %s314, 31744, %s316, [#allocation9], 256, 256, 16
        $region32: #{simplenet_forward.1} parent=11 // pred_fallthru
          _
        // Predicated region
        $region33: #{simplenet_forward.1} parent=11 // pred_check
          %p322 = pneg %p171
        $region34: #{simplenet_forward.1} parent=11 // pred_check_branch
          %324 = sbr.rel (%p322) target = $region36
        $region35: #{simplenet_forward.1} parent=11 // pred_region
          _
        $region36: #{simplenet_forward.1} parent=11 // pred_fallthru
          _
        // Predicated region
        $region37: #{simplenet_forward.1} parent=11 // pred_check
          %p325 = pneg %p192
        $region38: #{simplenet_forward.1} parent=11 // pred_check_branch
          %327 = sbr.rel (%p325) target = $region40
        $region39: #{simplenet_forward.1} parent=11 // pred_region
          %329 = vsyncadd [#allocation11], 0
          %s330 = sshll.u32 %s7, 4
          %s331 = int_to_ptr.hbm [resolvable:$true] %s330
          %s332 = sshll.u32 [#allocation10], 4
          %s333 = int_to_ptr.vmem [resolvable:$true] %s332
          %338 = dma.hbm_to_vmem [thread:$0]  %s331, 8192, %s333, [#allocation11], 128, 128, 8
        $region40: #{simplenet_forward.1} parent=11 // pred_fallthru
          _
        // Predicated region
        $region41: #{simplenet_forward.1} parent=11 // pred_check
          %p339 = pneg %p213
        $region42: #{simplenet_forward.1} parent=11 // pred_check_branch
          %341 = sbr.rel (%p339) target = $region44
        $region43: #{simplenet_forward.1} parent=11 // pred_region
          _
        $region44: #{simplenet_forward.1} parent=11 // pred_fallthru
          _
        // Predicated region
        $region45: #{simplenet_forward.1} parent=11 // pred_check
          %p342 = pneg %p234
        $region46: #{simplenet_forward.1} parent=11 // pred_check_branch
          %344 = sbr.rel (%p342) target = $region48
        $region47: #{simplenet_forward.1} parent=11 // pred_region
          _
        $region48: #{simplenet_forward.1} parent=11 // pred_fallthru
          _
        // Predicated region
        $region49: #{simplenet_forward.1} parent=11 // pred_check
          %p345 = pneg %p255
        $region50: #{simplenet_forward.1} parent=11 // pred_check_branch
          %347 = sbr.rel (%p345) target = $region52
        $region51: #{simplenet_forward.1} parent=11 // pred_region
          _
        $region52: #{simplenet_forward.1} parent=11 // pred_fallthru
          _
      $region12: #{simplenet_forward.1} parent=5 // pred_fallthru
        _
      %p348 = scmp.lt.s32.totalorder %s19, 2
      // Predicated region
      $region53: #{simplenet_forward.1} parent=5 // pred_check
        %p349 = pneg %p348
      $region54: #{simplenet_forward.1} parent=5 // pred_check_branch
        %351 = sbr.rel (%p349) target = $region56
      $region55: #{simplenet_forward.1} parent=5 // pred_region
        // Predicated region
        $region57: #{simplenet_forward.1} parent=55 // pred_check
          %p352 = pneg %p39
        $region58: #{simplenet_forward.1} parent=55 // pred_check_branch
          %354 = sbr.rel (%p352) target = $region60
        $region59: #{simplenet_forward.1} parent=55 // pred_region
          %p355 = scmp.lt.s32.totalorder %s19, 1
          %s356 = scalar_select %p355, %s19, 1
          %s357 = smul.addr %s356, 10
          %s358 = smul.addr %s357, 4
          %s359 = scalar_lea.vmem %s0, %s358
        $region60: #{simplenet_forward.1} parent=55 // pred_fallthru
          _
      $region56: #{simplenet_forward.1} parent=5 // pred_fallthru
        _
      %p360 = scmp.le.s32.totalorder 1, %s19
      %p361 = scmp.lt.s32.totalorder %s19, 3
      %p362 = pnand %p360, %p361
      %p363 = pneg %p362
      // Predicated region
      $region61: #{simplenet_forward.1} parent=5 // pred_check
        _
      $region62: #{simplenet_forward.1} parent=5 // pred_check_branch
        %365 = sbr.rel (%p362) target = $region64
      $region63: #{simplenet_forward.1} parent=5 // pred_region
        %s366 = ssub.s32 %s19, 1
        // Predicated region
        $region65: #{simplenet_forward.1} parent=63 // pred_check
          %p367 = pneg %p150
        $region66: #{simplenet_forward.1} parent=63 // pred_check_branch
          %369 = sbr.rel (%p367) target = $region68
        $region67: #{simplenet_forward.1} parent=63 // pred_region
          %371 = dma.done [#allocation9], 31744
        $region68: #{simplenet_forward.1} parent=63 // pred_fallthru
          _
        // Predicated region
        $region69: #{simplenet_forward.1} parent=63 // pred_check
          %p372 = pneg %p192
        $region70: #{simplenet_forward.1} parent=63 // pred_check_branch
          %374 = sbr.rel (%p372) target = $region72
        $region71: #{simplenet_forward.1} parent=63 // pred_region
          %376 = dma.done [#allocation11], 8192
        $region72: #{simplenet_forward.1} parent=63 // pred_fallthru
          _
        %p377 = scmp.lt.s32.totalorder %s24, 1
        %s378 = scalar_select %p377, %s24, 1
        %s379 = smul.addr %s378, 10
        %s380 = smul.addr %s379, 4
        %s381 = scalar_lea.vmem %s0, %s380
        %p382 = pneg %p45
        %p383 = pneg %p42
        %p384 = pneg %p66
        %p385 = pneg %p63
        %p386 = pneg %p87
        %p387 = pneg %p84
        %p388 = pneg %p108
        %p389 = pneg %p105
        %p390 = pneg %p129
        %p391 = pneg %p126
        %p392 = pneg %p150
        %p393 = pneg %p147
        %p394 = pneg %p171
        %p395 = pneg %p168
        %p396 = pneg %p192
        %p397 = pneg %p189
        %p398 = pneg %p213
        %p399 = pneg %p210
        %p400 = pneg %p234
        %p401 = pneg %p231
        %p402 = pneg %p255
        %p403 = pneg %p252
        %p404 = pneg %p281
        %p405 = pneg %p278
        %p406 = scmp.lt.s32.totalorder %s24, 1
        %s407 = scalar_select %p406, %s24, 1
        %s408 = smul.addr %s407, 8
        %s409 = scalar_lea.vmem %s11, %s408
        %p410 = scmp.lt.s32.totalorder %s24, 1
        %s411 = scalar_select %p410, %s24, 1
        %s412 = smul.addr %s411, 10
        %s413 = smul.addr %s412, 4
        %s414 = scalar_lea.vmem %s0, %s413
        %p415 = scmp.lt.s32.totalorder %s24, 1
        %s416 = scalar_select %p415, %s24, 1
        %s417 = smul.addr %s416, 8
        %s418 = scalar_lea.vmem %s11, %s417
        %v419 = vld [vmem:[%s414] sm:$0x77]
        %v420 = vld [vmem:[%s414 + $0x8] sm:$0x77]
        %v421 = vld [vmem:[%s414 + $0x10] sm:$0x77]
        %v422 = vld [vmem:[%s414 + $0x18] sm:$0x77]
        %427 = vst [vmem:[#allocation1] ss:$2 sm:$0xff] %v419
        %s428 = scalar_lea.vmem [#allocation1], 16
        %429 = vst [vmem:[%s428] ss:$2 sm:$0xff] %v420
        %s430 = scalar_lea.vmem [#allocation1], 32
        %431 = vst [vmem:[%s430] ss:$2 sm:$0xff] %v421
        %s432 = scalar_lea.vmem [#allocation1], 48
        %433 = vst [vmem:[%s432] ss:$2 sm:$0xff] %v422
        %v434 = vld.sshfl [vmem:[#allocation1] sm:$0xff pattern:$0x75316420]
        %v435 = vld.sshfl [vmem:[#allocation1 + $0x8] sm:$0xff pattern:$0x75316420]
        %v436 = vld.sshfl [vmem:[#allocation1 + $0x10] sm:$0xff pattern:$0x75316420]
        %v437 = vld.sshfl [vmem:[#allocation1 + $0x18] sm:$0xff pattern:$0x75316420]
        %v438 = vld.sshfl [vmem:[#allocation1 + $0x20] sm:$0xff pattern:$0x75316420]
        %v439 = vld.sshfl [vmem:[#allocation1 + $0x28] sm:$0xff pattern:$0x75316420]
        %v440 = vld.sshfl [vmem:[#allocation1 + $0x30] sm:$0xff pattern:$0x75316420]
        %v441 = vld.sshfl [vmem:[#allocation1 + $0x38] sm:$0xff pattern:$0x75316420]
        %450 = vst [vmem:[#allocation2] sm:$0x7] %v434
        %451 = vst [vmem:[#allocation2 + $0x8] sm:$0x7] %v435
        %452 = vst [vmem:[#allocation2 + $0x10] sm:$0x7] %v436
        %453 = vst [vmem:[#allocation2 + $0x18] sm:$0x7] %v437
        %454 = vst [vmem:[#allocation2 + $0x20] sm:$0x7] %v438
        %455 = vst [vmem:[#allocation2 + $0x28] sm:$0x7] %v439
        %456 = vst [vmem:[#allocation2 + $0x30] sm:$0x7] %v440
        %457 = vst [vmem:[#allocation2 + $0x38] sm:$0x7] %v441
        %v458 = vld [vmem:[%s414] sm:$0x77]
        %v459 = vld [vmem:[%s414 + $0x8] sm:$0x77]
        %v460 = vld [vmem:[%s414 + $0x10] sm:$0x77]
        %v461 = vld [vmem:[%s414 + $0x18] sm:$0x77]
        %v462 = vld [vmem:[%s414 + $0x20] sm:$0x7]
        %468 = vst [vmem:[#allocation1] ss:$2 sm:$0xff] %v458
        %s469 = scalar_lea.vmem [#allocation1], 16
        %470 = vst [vmem:[%s469] ss:$2 sm:$0xff] %v459
        %s471 = scalar_lea.vmem [#allocation1], 32
        %472 = vst [vmem:[%s471] ss:$2 sm:$0xff] %v460
        %s473 = scalar_lea.vmem [#allocation1], 48
        %474 = vst [vmem:[%s473] ss:$2 sm:$0xff] %v461
        %v475 = vld.sshfl [vmem:[#allocation1] sm:$0xff pattern:$0x75316420]
        %v476 = vld.sshfl [vmem:[#allocation1 + $0x8] sm:$0xff pattern:$0x75316420]
        %v477 = vld.sshfl [vmem:[#allocation1 + $0x10] sm:$0xff pattern:$0x75316420]
        %v478 = vld.sshfl [vmem:[#allocation1 + $0x18] sm:$0xff pattern:$0x75316420]
        %v479 = vld.sshfl [vmem:[#allocation1 + $0x20] sm:$0xff pattern:$0x75316420]
        %v480 = vld.sshfl [vmem:[#allocation1 + $0x28] sm:$0xff pattern:$0x75316420]
        %v481 = vld.sshfl [vmem:[#allocation1 + $0x30] sm:$0xff pattern:$0x75316420]
        %v482 = vld.sshfl [vmem:[#allocation1 + $0x38] sm:$0xff pattern:$0x75316420]
        %483 = vst [vmem:[#allocation1] ss:$2 sm:$0xff] %v462
        %v484 = vld.sshfl [vmem:[#allocation1] sm:$0xff pattern:$0x75316420]
        %v485 = vrot.slane %v475, 5
        %v486 = vrot.slane %v476, 5
        %v487 = vrot.slane %v477, 5
        %v488 = vrot.slane %v478, 5
        %v489 = vrot.slane %v479, 5
        %v490 = vrot.slane %v480, 5
        %v491 = vrot.slane %v481, 5
        %v492 = vrot.slane %v482, 5
        %v493 = vrot.slane %v484, 5
        %494 = vrot.lane.b32.xlu0 %v485, 127
        %v495 = vpop.permute.xlu0 %494
        %496 = vrot.lane.b32.xlu0 %v486, 127
        %v497 = vpop.permute.xlu0 %496
        %498 = vrot.lane.b32.xlu0 %v487, 127
        %v499 = vpop.permute.xlu0 %498
        %500 = vrot.lane.b32.xlu0 %v488, 127
        %v501 = vpop.permute.xlu0 %500
        %502 = vrot.lane.b32.xlu0 %v489, 127
        %v503 = vpop.permute.xlu0 %502
        %504 = vrot.lane.b32.xlu0 %v490, 127
        %v505 = vpop.permute.xlu0 %504
        %506 = vrot.lane.b32.xlu0 %v491, 127
        %v507 = vpop.permute.xlu0 %506
        %508 = vrot.lane.b32.xlu0 %v492, 127
        %v509 = vpop.permute.xlu0 %508
        %510 = vrot.lane.b32.xlu0 %v493, 127
        %v511 = vpop.permute.xlu0 %510
        %vm512 = vcmask 1039360
        %v513 = vsel %vm512, %v495, %v497
        %v514 = vsel %vm512, %v497, %v499
        %v515 = vsel %vm512, %v499, %v501
        %v516 = vsel %vm512, %v501, %v503
        %v517 = vsel %vm512, %v503, %v505
        %v518 = vsel %vm512, %v505, %v507
        %v519 = vsel %vm512, %v507, %v509
        %v520 = vsel %vm512, %v509, %v511
        %529 = vst [vmem:[#allocation2] sm:$0x38] %v513
        %530 = vst [vmem:[#allocation2 + $0x8] sm:$0x38] %v514
        %531 = vst [vmem:[#allocation2 + $0x10] sm:$0x38] %v515
        %532 = vst [vmem:[#allocation2 + $0x18] sm:$0x38] %v516
        %533 = vst [vmem:[#allocation2 + $0x20] sm:$0x38] %v517
        %534 = vst [vmem:[#allocation2 + $0x28] sm:$0x38] %v518
        %535 = vst [vmem:[#allocation2 + $0x30] sm:$0x38] %v519
        %536 = vst [vmem:[#allocation2 + $0x38] sm:$0x38] %v520
        %v537 = vld [vmem:[%s414] sm:$0x77]
        %v538 = vld [vmem:[%s414 + $0x8] sm:$0x77]
        %v539 = vld [vmem:[%s414 + $0x10] sm:$0x77]
        %v540 = vld [vmem:[%s414 + $0x18] sm:$0x77]
        %v541 = vld [vmem:[%s414 + $0x20] sm:$0x7]
        %547 = vst [vmem:[#allocation1] ss:$2 sm:$0xff] %v537
        %s548 = scalar_lea.vmem [#allocation1], 16
        %549 = vst [vmem:[%s548] ss:$2 sm:$0xff] %v538
        %s550 = scalar_lea.vmem [#allocation1], 32
        %551 = vst [vmem:[%s550] ss:$2 sm:$0xff] %v539
        %s552 = scalar_lea.vmem [#allocation1], 48
        %553 = vst [vmem:[%s552] ss:$2 sm:$0xff] %v540
        %v554 = vld.sshfl [vmem:[#allocation1] sm:$0xff pattern:$0x75316420]
        %v555 = vld.sshfl [vmem:[#allocation1 + $0x8] sm:$0xff pattern:$0x75316420]
        %v556 = vld.sshfl [vmem:[#allocation1 + $0x10] sm:$0xff pattern:$0x75316420]
        %v557 = vld.sshfl [vmem:[#allocation1 + $0x18] sm:$0xff pattern:$0x75316420]
        %v558 = vld.sshfl [vmem:[#allocation1 + $0x20] sm:$0xff pattern:$0x75316420]
        %v559 = vld.sshfl [vmem:[#allocation1 + $0x28] sm:$0xff pattern:$0x75316420]
        %v560 = vld.sshfl [vmem:[#allocation1 + $0x30] sm:$0xff pattern:$0x75316420]
        %v561 = vld.sshfl [vmem:[#allocation1 + $0x38] sm:$0xff pattern:$0x75316420]
        %562 = vst [vmem:[#allocation1] ss:$2 sm:$0xff] %v541
        %v563 = vld.sshfl [vmem:[#allocation1] sm:$0xff pattern:$0x75316420]
        %v564 = vrot.slane %v554, 2
        %v565 = vrot.slane %v555, 2
        %v566 = vrot.slane %v556, 2
        %v567 = vrot.slane %v557, 2
        %v568 = vrot.slane %v558, 2
        %v569 = vrot.slane %v559, 2
        %v570 = vrot.slane %v560, 2
        %v571 = vrot.slane %v561, 2
        %v572 = vrot.slane %v563, 2
        %573 = vrot.lane.b32.xlu0 %v564, 126
        %v574 = vpop.permute.xlu0 %573
        %575 = vrot.lane.b32.xlu0 %v565, 126
        %v576 = vpop.permute.xlu0 %575
        %577 = vrot.lane.b32.xlu0 %v566, 126
        %v578 = vpop.permute.xlu0 %577
        %579 = vrot.lane.b32.xlu0 %v567, 126
        %v580 = vpop.permute.xlu0 %579
        %581 = vrot.lane.b32.xlu0 %v568, 126
        %v582 = vpop.permute.xlu0 %581
        %583 = vrot.lane.b32.xlu0 %v569, 126
        %v584 = vpop.permute.xlu0 %583
        %585 = vrot.lane.b32.xlu0 %v570, 126
        %v586 = vpop.permute.xlu0 %585
        %587 = vrot.lane.b32.xlu0 %v571, 126
        %v588 = vpop.permute.xlu0 %587
        %589 = vrot.lane.b32.xlu0 %v572, 126
        %v590 = vpop.permute.xlu0 %589
        %vm591 = vcmask 1031168
        %v592 = vsel %vm591, %v574, %v576
        %v593 = vsel %vm591, %v576, %v578
        %v594 = vsel %vm591, %v578, %v580
        %v595 = vsel %vm591, %v580, %v582
        %v596 = vsel %vm591, %v582, %v584
        %v597 = vsel %vm591, %v584, %v586
        %v598 = vsel %vm591, %v586, %v588
        %v599 = vsel %vm591, %v588, %v590
        %608 = vst [vmem:[#allocation2] sm:$0xc0] %v592
        %609 = vst [vmem:[#allocation2 + $0x8] sm:$0xc0] %v593
        %610 = vst [vmem:[#allocation2 + $0x10] sm:$0xc0] %v594
        %611 = vst [vmem:[#allocation2 + $0x18] sm:$0xc0] %v595
        %612 = vst [vmem:[#allocation2 + $0x20] sm:$0xc0] %v596
        %613 = vst [vmem:[#allocation2 + $0x28] sm:$0xc0] %v597
        %614 = vst [vmem:[#allocation2 + $0x30] sm:$0xc0] %v598
        %615 = vst [vmem:[#allocation2 + $0x38] sm:$0xc0] %v599
        %616 = vst [vmem:[#allocation2 + $0x40] sm:$0x1] %v592
        %617 = vst [vmem:[#allocation2 + $0x48] sm:$0x1] %v593
        %618 = vst [vmem:[#allocation2 + $0x50] sm:$0x1] %v594
        %619 = vst [vmem:[#allocation2 + $0x58] sm:$0x1] %v595
        %620 = vst [vmem:[#allocation2 + $0x60] sm:$0x1] %v596
        %621 = vst [vmem:[#allocation2 + $0x68] sm:$0x1] %v597
        %622 = vst [vmem:[#allocation2 + $0x70] sm:$0x1] %v598
        %623 = vst [vmem:[#allocation2 + $0x78] sm:$0x1] %v599
        %v624 = vld [vmem:[%s414] sm:$0x77]
        %v625 = vld [vmem:[%s414 + $0x8] sm:$0x77]
        %v626 = vld [vmem:[%s414 + $0x10] sm:$0x77]
        %v627 = vld [vmem:[%s414 + $0x18] sm:$0x77]
        %v628 = vld [vmem:[%s414 + $0x20] sm:$0x7]
        %634 = vst [vmem:[#allocation1] ss:$2 sm:$0xff] %v624
        %s635 = scalar_lea.vmem [#allocation1], 16
        %636 = vst [vmem:[%s635] ss:$2 sm:$0xff] %v625
        %s637 = scalar_lea.vmem [#allocation1], 32
        %638 = vst [vmem:[%s637] ss:$2 sm:$0xff] %v626
        %s639 = scalar_lea.vmem [#allocation1], 48
        %640 = vst [vmem:[%s639] ss:$2 sm:$0xff] %v627
        %v641 = vld.sshfl [vmem:[#allocation1] sm:$0xff pattern:$0x75316420]
        %v642 = vld.sshfl [vmem:[#allocation1 + $0x8] sm:$0xff pattern:$0x75316420]
        %v643 = vld.sshfl [vmem:[#allocation1 + $0x10] sm:$0xff pattern:$0x75316420]
        %v644 = vld.sshfl [vmem:[#allocation1 + $0x18] sm:$0xff pattern:$0x75316420]
        %v645 = vld.sshfl [vmem:[#allocation1 + $0x20] sm:$0xff pattern:$0x75316420]
        %v646 = vld.sshfl [vmem:[#allocation1 + $0x28] sm:$0xff pattern:$0x75316420]
        %v647 = vld.sshfl [vmem:[#allocation1 + $0x30] sm:$0xff pattern:$0x75316420]
        %v648 = vld.sshfl [vmem:[#allocation1 + $0x38] sm:$0xff pattern:$0x75316420]
        %649 = vst [vmem:[#allocation1] ss:$2 sm:$0xff] %v628
        %v650 = vld.sshfl [vmem:[#allocation1] sm:$0xff pattern:$0x75316420]
        %v651 = vrot.slane %v641, 7
        %v652 = vrot.slane %v642, 7
        %v653 = vrot.slane %v643, 7
        %v654 = vrot.slane %v644, 7
        %v655 = vrot.slane %v645, 7
        %v656 = vrot.slane %v646, 7
        %v657 = vrot.slane %v647, 7
        %v658 = vrot.slane %v648, 7
        %v659 = vrot.slane %v650, 7
        %660 = vrot.lane.b32.xlu0 %v651, 125
        %v661 = vpop.permute.xlu0 %660
        %662 = vrot.lane.b32.xlu0 %v652, 125
        %v663 = vpop.permute.xlu0 %662
        %664 = vrot.lane.b32.xlu0 %v653, 125
        %v665 = vpop.permute.xlu0 %664
        %666 = vrot.lane.b32.xlu0 %v654, 125
        %v667 = vpop.permute.xlu0 %666
        %668 = vrot.lane.b32.xlu0 %v655, 125
        %v669 = vpop.permute.xlu0 %668
        %670 = vrot.lane.b32.xlu0 %v656, 125
        %v671 = vpop.permute.xlu0 %670
        %672 = vrot.lane.b32.xlu0 %v657, 125
        %v673 = vpop.permute.xlu0 %672
        %674 = vrot.lane.b32.xlu0 %v658, 125
        %v675 = vpop.permute.xlu0 %674
        %676 = vrot.lane.b32.xlu0 %v659, 125
        %v677 = vpop.permute.xlu0 %676
        %vm678 = vcmask 1022976
        %v679 = vsel %vm678, %v661, %v663
        %v680 = vsel %vm678, %v663, %v665
        %v681 = vsel %vm678, %v665, %v667
        %v682 = vsel %vm678, %v667, %v669
        %v683 = vsel %vm678, %v669, %v671
        %v684 = vsel %vm678, %v671, %v673
        %v685 = vsel %vm678, %v673, %v675
        %v686 = vsel %vm678, %v675, %v677
        %695 = vst [vmem:[#allocation2 + $0x40] sm:$0xe] %v679
        %696 = vst [vmem:[#allocation2 + $0x48] sm:$0xe] %v680
        %697 = vst [vmem:[#allocation2 + $0x50] sm:$0xe] %v681
        %698 = vst [vmem:[#allocation2 + $0x58] sm:$0xe] %v682
        %699 = vst [vmem:[#allocation2 + $0x60] sm:$0xe] %v683
        %700 = vst [vmem:[#allocation2 + $0x68] sm:$0xe] %v684
        %701 = vst [vmem:[#allocation2 + $0x70] sm:$0xe] %v685
        %702 = vst [vmem:[#allocation2 + $0x78] sm:$0xe] %v686
        %v703 = vld [vmem:[%s414] sm:$0x77]
        %v704 = vld [vmem:[%s414 + $0x8] sm:$0x77]
        %v705 = vld [vmem:[%s414 + $0x10] sm:$0x77]
        %v706 = vld [vmem:[%s414 + $0x18] sm:$0x77]
        %v707 = vld [vmem:[%s414 + $0x20] sm:$0x7]
        %s713 = scalar_lea.vmem [#allocation1], 1
        %714 = vst [vmem:[%s713] ss:$2 sm:$0xff] %v703
        %s715 = scalar_lea.vmem [#allocation1], 17
        %716 = vst [vmem:[%s715] ss:$2 sm:$0xff] %v704
        %s717 = scalar_lea.vmem [#allocation1], 33
        %718 = vst [vmem:[%s717] ss:$2 sm:$0xff] %v705
        %s719 = scalar_lea.vmem [#allocation1], 49
        %720 = vst [vmem:[%s719] ss:$2 sm:$0xff] %v706
        %v721 = vld.sshfl [vmem:[#allocation1] sm:$0xff pattern:$0x75316420]
        %v722 = vld.sshfl [vmem:[#allocation1 + $0x8] sm:$0xff pattern:$0x75316420]
        %v723 = vld.sshfl [vmem:[#allocation1 + $0x10] sm:$0xff pattern:$0x75316420]
        %v724 = vld.sshfl [vmem:[#allocation1 + $0x18] sm:$0xff pattern:$0x75316420]
        %v725 = vld.sshfl [vmem:[#allocation1 + $0x20] sm:$0xff pattern:$0x75316420]
        %v726 = vld.sshfl [vmem:[#allocation1 + $0x28] sm:$0xff pattern:$0x75316420]
        %v727 = vld.sshfl [vmem:[#allocation1 + $0x30] sm:$0xff pattern:$0x75316420]
        %v728 = vld.sshfl [vmem:[#allocation1 + $0x38] sm:$0xff pattern:$0x75316420]
        %729 = vst [vmem:[%s713] ss:$2 sm:$0xff] %v707
        %v730 = vld.sshfl [vmem:[#allocation1] sm:$0xff pattern:$0x75316420]
        %731 = vrot.lane.b32.xlu0 %v721, 124
        %v732 = vpop.permute.xlu0 %731
        %733 = vrot.lane.b32.xlu0 %v722, 124
        %v734 = vpop.permute.xlu0 %733
        %735 = vrot.lane.b32.xlu0 %v723, 124
        %v736 = vpop.permute.xlu0 %735
        %737 = vrot.lane.b32.xlu0 %v724, 124
        %v738 = vpop.permute.xlu0 %737
        %739 = vrot.lane.b32.xlu0 %v725, 124
        %v740 = vpop.permute.xlu0 %739
        %741 = vrot.lane.b32.xlu0 %v726, 124
        %v742 = vpop.permute.xlu0 %741
        %743 = vrot.lane.b32.xlu0 %v727, 124
        %v744 = vpop.permute.xlu0 %743
        %745 = vrot.lane.b32.xlu0 %v728, 124
        %v746 = vpop.permute.xlu0 %745
        %747 = vrot.lane.b32.xlu0 %v730, 124
        %v748 = vpop.permute.xlu0 %747
        %vm749 = vcmask 1014784
        %v750 = vsel %vm749, %v732, %v734
        %v751 = vsel %vm749, %v734, %v736
        %v752 = vsel %vm749, %v736, %v738
        %v753 = vsel %vm749, %v738, %v740
        %v754 = vsel %vm749, %v740, %v742
        %v755 = vsel %vm749, %v742, %v744
        %v756 = vsel %vm749, %v744, %v746
        %v757 = vsel %vm749, %v746, %v748
        %766 = vst [vmem:[#allocation2 + $0x40] sm:$0x70] %v750
        %767 = vst [vmem:[#allocation2 + $0x48] sm:$0x70] %v751
        %768 = vst [vmem:[#allocation2 + $0x50] sm:$0x70] %v752
        %769 = vst [vmem:[#allocation2 + $0x58] sm:$0x70] %v753
        %770 = vst [vmem:[#allocation2 + $0x60] sm:$0x70] %v754
        %771 = vst [vmem:[#allocation2 + $0x68] sm:$0x70] %v755
        %772 = vst [vmem:[#allocation2 + $0x70] sm:$0x70] %v756
        %773 = vst [vmem:[#allocation2 + $0x78] sm:$0x70] %v757
        %v774 = vld [vmem:[%s414] sm:$0x77]
        %v775 = vld [vmem:[%s414 + $0x8] sm:$0x77]
        %v776 = vld [vmem:[%s414 + $0x10] sm:$0x77]
        %v777 = vld [vmem:[%s414 + $0x18] sm:$0x77]
        %v778 = vld [vmem:[%s414 + $0x20] sm:$0x7]
        %784 = vst [vmem:[#allocation1] ss:$2 sm:$0xff] %v774
        %s785 = scalar_lea.vmem [#allocation1], 16
        %786 = vst [vmem:[%s785] ss:$2 sm:$0xff] %v775
        %s787 = scalar_lea.vmem [#allocation1], 32
        %788 = vst [vmem:[%s787] ss:$2 sm:$0xff] %v776
        %s789 = scalar_lea.vmem [#allocation1], 48
        %790 = vst [vmem:[%s789] ss:$2 sm:$0xff] %v777
        %v791 = vld.sshfl [vmem:[#allocation1] sm:$0xff pattern:$0x75316420]
        %v792 = vld.sshfl [vmem:[#allocation1 + $0x8] sm:$0xff pattern:$0x75316420]
        %v793 = vld.sshfl [vmem:[#allocation1 + $0x10] sm:$0xff pattern:$0x75316420]
        %v794 = vld.sshfl [vmem:[#allocation1 + $0x18] sm:$0xff pattern:$0x75316420]
        %v795 = vld.sshfl [vmem:[#allocation1 + $0x20] sm:$0xff pattern:$0x75316420]
        %v796 = vld.sshfl [vmem:[#allocation1 + $0x28] sm:$0xff pattern:$0x75316420]
        %v797 = vld.sshfl [vmem:[#allocation1 + $0x30] sm:$0xff pattern:$0x75316420]
        %v798 = vld.sshfl [vmem:[#allocation1 + $0x38] sm:$0xff pattern:$0x75316420]
        %799 = vst [vmem:[#allocation1] ss:$2 sm:$0xff] %v778
        %v800 = vld.sshfl [vmem:[#allocation1] sm:$0xff pattern:$0x75316420]
        %v801 = vrot.slane %v791, 1
        %v802 = vrot.slane %v792, 1
        %v803 = vrot.slane %v793, 1
        %v804 = vrot.slane %v794, 1
        %v805 = vrot.slane %v795, 1
        %v806 = vrot.slane %v796, 1
        %v807 = vrot.slane %v797, 1
        %v808 = vrot.slane %v798, 1
        %v809 = vrot.slane %v800, 1
        %810 = vrot.lane.b32.xlu0 %v801, 96
        %v811 = vpop.permute.xlu0 %810
        %812 = vrot.lane.b32.xlu0 %v802, 96
        %v813 = vpop.permute.xlu0 %812
        %814 = vrot.lane.b32.xlu0 %v803, 96
        %v815 = vpop.permute.xlu0 %814
        %816 = vrot.lane.b32.xlu0 %v804, 96
        %v817 = vpop.permute.xlu0 %816
        %818 = vrot.lane.b32.xlu0 %v805, 96
        %v819 = vpop.permute.xlu0 %818
        %820 = vrot.lane.b32.xlu0 %v806, 96
        %v821 = vpop.permute.xlu0 %820
        %822 = vrot.lane.b32.xlu0 %v807, 96
        %v823 = vpop.permute.xlu0 %822
        %824 = vrot.lane.b32.xlu0 %v808, 96
        %v825 = vpop.permute.xlu0 %824
        %826 = vrot.lane.b32.xlu0 %v809, 96
        %v827 = vpop.permute.xlu0 %826
        %vm828 = vcmask 785408
        %v829 = vsel %vm828, %v811, %v813
        %v830 = vsel %vm828, %v813, %v815
        %v831 = vsel %vm828, %v815, %v817
        %v832 = vsel %vm828, %v817, %v819
        %v833 = vsel %vm828, %v819, %v821
        %v834 = vsel %vm828, %v821, %v823
        %v835 = vsel %vm828, %v823, %v825
        %v836 = vsel %vm828, %v825, %v827
        %845 = vst [vmem:[#allocation2 + $0x40] sm:$0x80] %v829
        %846 = vst [vmem:[#allocation2 + $0x48] sm:$0x80] %v830
        %847 = vst [vmem:[#allocation2 + $0x50] sm:$0x80] %v831
        %848 = vst [vmem:[#allocation2 + $0x58] sm:$0x80] %v832
        %849 = vst [vmem:[#allocation2 + $0x60] sm:$0x80] %v833
        %850 = vst [vmem:[#allocation2 + $0x68] sm:$0x80] %v834
        %851 = vst [vmem:[#allocation2 + $0x70] sm:$0x80] %v835
        %852 = vst [vmem:[#allocation2 + $0x78] sm:$0x80] %v836
        %853 = vst [vmem:[#allocation2 + $0x80] sm:$0x3] %v829
        %854 = vst [vmem:[#allocation2 + $0x88] sm:$0x3] %v830
        %855 = vst [vmem:[#allocation2 + $0x90] sm:$0x3] %v831
        %856 = vst [vmem:[#allocation2 + $0x98] sm:$0x3] %v832
        %857 = vst [vmem:[#allocation2 + $0xa0] sm:$0x3] %v833
        %858 = vst [vmem:[#allocation2 + $0xa8] sm:$0x3] %v834
        %859 = vst [vmem:[#allocation2 + $0xb0] sm:$0x3] %v835
        %860 = vst [vmem:[#allocation2 + $0xb8] sm:$0x3] %v836
        %v861 = vld [vmem:[%s414] sm:$0x77]
        %v862 = vld [vmem:[%s414 + $0x8] sm:$0x77]
        %v863 = vld [vmem:[%s414 + $0x10] sm:$0x77]
        %v864 = vld [vmem:[%s414 + $0x18] sm:$0x77]
        %v865 = vld [vmem:[%s414 + $0x20] sm:$0x7]
        %871 = vst [vmem:[#allocation1] ss:$2 sm:$0xff] %v861
        %s872 = scalar_lea.vmem [#allocation1], 16
        %873 = vst [vmem:[%s872] ss:$2 sm:$0xff] %v862
        %s874 = scalar_lea.vmem [#allocation1], 32
        %875 = vst [vmem:[%s874] ss:$2 sm:$0xff] %v863
        %s876 = scalar_lea.vmem [#allocation1], 48
        %877 = vst [vmem:[%s876] ss:$2 sm:$0xff] %v864
        %v878 = vld.sshfl [vmem:[#allocation1] sm:$0xff pattern:$0x75316420]
        %v879 = vld.sshfl [vmem:[#allocation1 + $0x8] sm:$0xff pattern:$0x75316420]
        %v880 = vld.sshfl [vmem:[#allocation1 + $0x10] sm:$0xff pattern:$0x75316420]
        %v881 = vld.sshfl [vmem:[#allocation1 + $0x18] sm:$0xff pattern:$0x75316420]
        %v882 = vld.sshfl [vmem:[#allocation1 + $0x20] sm:$0xff pattern:$0x75316420]
        %v883 = vld.sshfl [vmem:[#allocation1 + $0x28] sm:$0xff pattern:$0x75316420]
        %v884 = vld.sshfl [vmem:[#allocation1 + $0x30] sm:$0xff pattern:$0x75316420]
        %v885 = vld.sshfl [vmem:[#allocation1 + $0x38] sm:$0xff pattern:$0x75316420]
        %886 = vst [vmem:[#allocation1] ss:$2 sm:$0xff] %v865
        %v887 = vld.sshfl [vmem:[#allocation1] sm:$0xff pattern:$0x75316420]
        %v888 = vrot.slane %v878, 6
        %v889 = vrot.slane %v879, 6
        %v890 = vrot.slane %v880, 6
        %v891 = vrot.slane %v881, 6
        %v892 = vrot.slane %v882, 6
        %v893 = vrot.slane %v883, 6
        %v894 = vrot.slane %v884, 6
        %v895 = vrot.slane %v885, 6
        %v896 = vrot.slane %v887, 6
        %897 = vrot.lane.b32.xlu0 %v888, 95
        %v898 = vpop.permute.xlu0 %897
        %899 = vrot.lane.b32.xlu0 %v889, 95
        %v900 = vpop.permute.xlu0 %899
        %901 = vrot.lane.b32.xlu0 %v890, 95
        %v902 = vpop.permute.xlu0 %901
        %903 = vrot.lane.b32.xlu0 %v891, 95
        %v904 = vpop.permute.xlu0 %903
        %905 = vrot.lane.b32.xlu0 %v892, 95
        %v906 = vpop.permute.xlu0 %905
        %907 = vrot.lane.b32.xlu0 %v893, 95
        %v908 = vpop.permute.xlu0 %907
        %909 = vrot.lane.b32.xlu0 %v894, 95
        %v910 = vpop.permute.xlu0 %909
        %911 = vrot.lane.b32.xlu0 %v895, 95
        %v912 = vpop.permute.xlu0 %911
        %913 = vrot.lane.b32.xlu0 %v896, 95
        %v914 = vpop.permute.xlu0 %913
        %vm915 = vcmask 777216
        %v916 = vsel %vm915, %v898, %v900
        %v917 = vsel %vm915, %v900, %v902
        %v918 = vsel %vm915, %v902, %v904
        %v919 = vsel %vm915, %v904, %v906
        %v920 = vsel %vm915, %v906, %v908
        %v921 = vsel %vm915, %v908, %v910
        %v922 = vsel %vm915, %v910, %v912
        %v923 = vsel %vm915, %v912, %v914
        %932 = vst [vmem:[#allocation2 + $0x80] sm:$0x1c] %v916
        %933 = vst [vmem:[#allocation2 + $0x88] sm:$0x1c] %v917
        %934 = vst [vmem:[#allocation2 + $0x90] sm:$0x1c] %v918
        %935 = vst [vmem:[#allocation2 + $0x98] sm:$0x1c] %v919
        %936 = vst [vmem:[#allocation2 + $0xa0] sm:$0x1c] %v920
        %937 = vst [vmem:[#allocation2 + $0xa8] sm:$0x1c] %v921
        %938 = vst [vmem:[#allocation2 + $0xb0] sm:$0x1c] %v922
        %939 = vst [vmem:[#allocation2 + $0xb8] sm:$0x1c] %v923
        %v940 = vld [vmem:[%s414] sm:$0x77]
        %v941 = vld [vmem:[%s414 + $0x8] sm:$0x77]
        %v942 = vld [vmem:[%s414 + $0x10] sm:$0x77]
        %v943 = vld [vmem:[%s414 + $0x18] sm:$0x77]
        %v944 = vld [vmem:[%s414 + $0x20] sm:$0x7]
        %950 = vst [vmem:[#allocation1] ss:$2 sm:$0xff] %v940
        %s951 = scalar_lea.vmem [#allocation1], 16
        %952 = vst [vmem:[%s951] ss:$2 sm:$0xff] %v941
        %s953 = scalar_lea.vmem [#allocation1], 32
        %954 = vst [vmem:[%s953] ss:$2 sm:$0xff] %v942
        %s955 = scalar_lea.vmem [#allocation1], 48
        %956 = vst [vmem:[%s955] ss:$2 sm:$0xff] %v943
        %v957 = vld.sshfl [vmem:[#allocation1] sm:$0xff pattern:$0x75316420]
        %v958 = vld.sshfl [vmem:[#allocation1 + $0x8] sm:$0xff pattern:$0x75316420]
        %v959 = vld.sshfl [vmem:[#allocation1 + $0x10] sm:$0xff pattern:$0x75316420]
        %v960 = vld.sshfl [vmem:[#allocation1 + $0x18] sm:$0xff pattern:$0x75316420]
        %v961 = vld.sshfl [vmem:[#allocation1 + $0x20] sm:$0xff pattern:$0x75316420]
        %v962 = vld.sshfl [vmem:[#allocation1 + $0x28] sm:$0xff pattern:$0x75316420]
        %v963 = vld.sshfl [vmem:[#allocation1 + $0x30] sm:$0xff pattern:$0x75316420]
        %v964 = vld.sshfl [vmem:[#allocation1 + $0x38] sm:$0xff pattern:$0x75316420]
        %965 = vst [vmem:[#allocation1] ss:$2 sm:$0xff] %v944
        %v966 = vld.sshfl [vmem:[#allocation1] sm:$0xff pattern:$0x75316420]
        %v967 = vrot.slane %v957, 3
        %v968 = vrot.slane %v958, 3
        %v969 = vrot.slane %v959, 3
        %v970 = vrot.slane %v960, 3
        %v971 = vrot.slane %v961, 3
        %v972 = vrot.slane %v962, 3
        %v973 = vrot.slane %v963, 3
        %v974 = vrot.slane %v964, 3
        %v975 = vrot.slane %v966, 3
        %976 = vrot.lane.b32.xlu0 %v967, 94
        %v977 = vpop.permute.xlu0 %976
        %978 = vrot.lane.b32.xlu0 %v968, 94
        %v979 = vpop.permute.xlu0 %978
        %980 = vrot.lane.b32.xlu0 %v969, 94
        %v981 = vpop.permute.xlu0 %980
        %982 = vrot.lane.b32.xlu0 %v970, 94
        %v983 = vpop.permute.xlu0 %982
        %984 = vrot.lane.b32.xlu0 %v971, 94
        %v985 = vpop.permute.xlu0 %984
        %986 = vrot.lane.b32.xlu0 %v972, 94
        %v987 = vpop.permute.xlu0 %986
        %988 = vrot.lane.b32.xlu0 %v973, 94
        %v989 = vpop.permute.xlu0 %988
        %990 = vrot.lane.b32.xlu0 %v974, 94
        %v991 = vpop.permute.xlu0 %990
        %992 = vrot.lane.b32.xlu0 %v975, 94
        %v993 = vpop.permute.xlu0 %992
        %vm994 = vcmask 769024
        %v995 = vsel %vm994, %v977, %v979
        %v996 = vsel %vm994, %v979, %v981
        %v997 = vsel %vm994, %v981, %v983
        %v998 = vsel %vm994, %v983, %v985
        %v999 = vsel %vm994, %v985, %v987
        %v1000 = vsel %vm994, %v987, %v989
        %v1001 = vsel %vm994, %v989, %v991
        %v1002 = vsel %vm994, %v991, %v993
        %1011 = vst [vmem:[#allocation2 + $0x80] sm:$0xe0] %v995
        %1012 = vst [vmem:[#allocation2 + $0x88] sm:$0xe0] %v996
        %1013 = vst [vmem:[#allocation2 + $0x90] sm:$0xe0] %v997
        %1014 = vst [vmem:[#allocation2 + $0x98] sm:$0xe0] %v998
        %1015 = vst [vmem:[#allocation2 + $0xa0] sm:$0xe0] %v999
        %1016 = vst [vmem:[#allocation2 + $0xa8] sm:$0xe0] %v1000
        %1017 = vst [vmem:[#allocation2 + $0xb0] sm:$0xe0] %v1001
        %1018 = vst [vmem:[#allocation2 + $0xb8] sm:$0xe0] %v1002
        %v1019 = vld [vmem:[%s414] sm:$0x77]
        %v1020 = vld [vmem:[%s414 + $0x8] sm:$0x77]
        %v1021 = vld [vmem:[%s414 + $0x10] sm:$0x77]
        %v1022 = vld [vmem:[%s414 + $0x18] sm:$0x77]
        %v1023 = vld [vmem:[%s414 + $0x20] sm:$0x7]
        %1029 = vst [vmem:[#allocation1] ss:$2 sm:$0xff] %v1019
        %s1030 = scalar_lea.vmem [#allocation1], 16
        %1031 = vst [vmem:[%s1030] ss:$2 sm:$0xff] %v1020
        %s1032 = scalar_lea.vmem [#allocation1], 32
        %1033 = vst [vmem:[%s1032] ss:$2 sm:$0xff] %v1021
        %s1034 = scalar_lea.vmem [#allocation1], 48
        %1035 = vst [vmem:[%s1034] ss:$2 sm:$0xff] %v1022
        %v1036 = vld.sshfl [vmem:[#allocation1] sm:$0xff pattern:$0x75316420]
        %v1037 = vld.sshfl [vmem:[#allocation1 + $0x8] sm:$0xff pattern:$0x75316420]
        %v1038 = vld.sshfl [vmem:[#allocation1 + $0x10] sm:$0xff pattern:$0x75316420]
        %v1039 = vld.sshfl [vmem:[#allocation1 + $0x18] sm:$0xff pattern:$0x75316420]
        %v1040 = vld.sshfl [vmem:[#allocation1 + $0x20] sm:$0xff pattern:$0x75316420]
        %v1041 = vld.sshfl [vmem:[#allocation1 + $0x28] sm:$0xff pattern:$0x75316420]
        %v1042 = vld.sshfl [vmem:[#allocation1 + $0x30] sm:$0xff pattern:$0x75316420]
        %v1043 = vld.sshfl [vmem:[#allocation1 + $0x38] sm:$0xff pattern:$0x75316420]
        %1044 = vst [vmem:[#allocation1] ss:$2 sm:$0xff] %v1023
        %v1045 = vld.sshfl [vmem:[#allocation1] sm:$0xff pattern:$0x75316420]
        %1046 = vrot.lane.b32.xlu0 %v1036, 93
        %v1047 = vpop.permute.xlu0 %1046
        %1048 = vrot.lane.b32.xlu0 %v1037, 93
        %v1049 = vpop.permute.xlu0 %1048
        %1050 = vrot.lane.b32.xlu0 %v1038, 93
        %v1051 = vpop.permute.xlu0 %1050
        %1052 = vrot.lane.b32.xlu0 %v1039, 93
        %v1053 = vpop.permute.xlu0 %1052
        %1054 = vrot.lane.b32.xlu0 %v1040, 93
        %v1055 = vpop.permute.xlu0 %1054
        %1056 = vrot.lane.b32.xlu0 %v1041, 93
        %v1057 = vpop.permute.xlu0 %1056
        %1058 = vrot.lane.b32.xlu0 %v1042, 93
        %v1059 = vpop.permute.xlu0 %1058
        %1060 = vrot.lane.b32.xlu0 %v1043, 93
        %v1061 = vpop.permute.xlu0 %1060
        %1062 = vrot.lane.b32.xlu0 %v1045, 93
        %v1063 = vpop.permute.xlu0 %1062
        %vm1064 = vcmask 760832
        %v1065 = vsel %vm1064, %v1047, %v1049
        %v1066 = vsel %vm1064, %v1049, %v1051
        %v1067 = vsel %vm1064, %v1051, %v1053
        %v1068 = vsel %vm1064, %v1053, %v1055
        %v1069 = vsel %vm1064, %v1055, %v1057
        %v1070 = vsel %vm1064, %v1057, %v1059
        %v1071 = vsel %vm1064, %v1059, %v1061
        %v1072 = vsel %vm1064, %v1061, %v1063
        %1081 = vst [vmem:[#allocation2 + $0xc0] sm:$0x7] %v1065
        %1082 = vst [vmem:[#allocation2 + $0xc8] sm:$0x7] %v1066
        %1083 = vst [vmem:[#allocation2 + $0xd0] sm:$0x7] %v1067
        %1084 = vst [vmem:[#allocation2 + $0xd8] sm:$0x7] %v1068
        %1085 = vst [vmem:[#allocation2 + $0xe0] sm:$0x7] %v1069
        %1086 = vst [vmem:[#allocation2 + $0xe8] sm:$0x7] %v1070
        %1087 = vst [vmem:[#allocation2 + $0xf0] sm:$0x7] %v1071
        %1088 = vst [vmem:[#allocation2 + $0xf8] sm:$0x7] %v1072
        %v1089 = vld [vmem:[%s414] sm:$0x77]
        %v1090 = vld [vmem:[%s414 + $0x8] sm:$0x77]
        %v1091 = vld [vmem:[%s414 + $0x10] sm:$0x77]
        %v1092 = vld [vmem:[%s414 + $0x18] sm:$0x77]
        %v1093 = vld [vmem:[%s414 + $0x20] sm:$0x7]
        %1099 = vst [vmem:[#allocation1] ss:$2 sm:$0xff] %v1089
        %s1100 = scalar_lea.vmem [#allocation1], 16
        %1101 = vst [vmem:[%s1100] ss:$2 sm:$0xff] %v1090
        %s1102 = scalar_lea.vmem [#allocation1], 32
        %1103 = vst [vmem:[%s1102] ss:$2 sm:$0xff] %v1091
        %s1104 = scalar_lea.vmem [#allocation1], 48
        %1105 = vst [vmem:[%s1104] ss:$2 sm:$0xff] %v1092
        %v1106 = vld.sshfl [vmem:[#allocation1] sm:$0xff pattern:$0x75316420]
        %v1107 = vld.sshfl [vmem:[#allocation1 + $0x8] sm:$0xff pattern:$0x75316420]
        %v1108 = vld.sshfl [vmem:[#allocation1 + $0x10] sm:$0xff pattern:$0x75316420]
        %v1109 = vld.sshfl [vmem:[#allocation1 + $0x18] sm:$0xff pattern:$0x75316420]
        %v1110 = vld.sshfl [vmem:[#allocation1 + $0x20] sm:$0xff pattern:$0x75316420]
        %v1111 = vld.sshfl [vmem:[#allocation1 + $0x28] sm:$0xff pattern:$0x75316420]
        %v1112 = vld.sshfl [vmem:[#allocation1 + $0x30] sm:$0xff pattern:$0x75316420]
        %v1113 = vld.sshfl [vmem:[#allocation1 + $0x38] sm:$0xff pattern:$0x75316420]
        %1114 = vst [vmem:[#allocation1] ss:$2 sm:$0xff] %v1093
        %v1115 = vld.sshfl [vmem:[#allocation1] sm:$0xff pattern:$0x75316420]
        %v1116 = vrot.slane %v1106, 5
        %v1117 = vrot.slane %v1107, 5
        %v1118 = vrot.slane %v1108, 5
        %v1119 = vrot.slane %v1109, 5
        %v1120 = vrot.slane %v1110, 5
        %v1121 = vrot.slane %v1111, 5
        %v1122 = vrot.slane %v1112, 5
        %v1123 = vrot.slane %v1113, 5
        %v1124 = vrot.slane %v1115, 5
        %1125 = vrot.lane.b32.xlu0 %v1116, 92
        %v1126 = vpop.permute.xlu0 %1125
        %1127 = vrot.lane.b32.xlu0 %v1117, 92
        %v1128 = vpop.permute.xlu0 %1127
        %1129 = vrot.lane.b32.xlu0 %v1118, 92
        %v1130 = vpop.permute.xlu0 %1129
        %1131 = vrot.lane.b32.xlu0 %v1119, 92
        %v1132 = vpop.permute.xlu0 %1131
        %1133 = vrot.lane.b32.xlu0 %v1120, 92
        %v1134 = vpop.permute.xlu0 %1133
        %1135 = vrot.lane.b32.xlu0 %v1121, 92
        %v1136 = vpop.permute.xlu0 %1135
        %1137 = vrot.lane.b32.xlu0 %v1122, 92
        %v1138 = vpop.permute.xlu0 %1137
        %1139 = vrot.lane.b32.xlu0 %v1123, 92
        %v1140 = vpop.permute.xlu0 %1139
        %1141 = vrot.lane.b32.xlu0 %v1124, 92
        %v1142 = vpop.permute.xlu0 %1141
        %vm1143 = vcmask 752640
        %v1144 = vsel %vm1143, %v1126, %v1128
        %v1145 = vsel %vm1143, %v1128, %v1130
        %v1146 = vsel %vm1143, %v1130, %v1132
        %v1147 = vsel %vm1143, %v1132, %v1134
        %v1148 = vsel %vm1143, %v1134, %v1136
        %v1149 = vsel %vm1143, %v1136, %v1138
        %v1150 = vsel %vm1143, %v1138, %v1140
        %v1151 = vsel %vm1143, %v1140, %v1142
        %1160 = vst [vmem:[#allocation2 + $0xc0] sm:$0x38] %v1144
        %1161 = vst [vmem:[#allocation2 + $0xc8] sm:$0x38] %v1145
        %1162 = vst [vmem:[#allocation2 + $0xd0] sm:$0x38] %v1146
        %1163 = vst [vmem:[#allocation2 + $0xd8] sm:$0x38] %v1147
        %1164 = vst [vmem:[#allocation2 + $0xe0] sm:$0x38] %v1148
        %1165 = vst [vmem:[#allocation2 + $0xe8] sm:$0x38] %v1149
        %1166 = vst [vmem:[#allocation2 + $0xf0] sm:$0x38] %v1150
        %1167 = vst [vmem:[#allocation2 + $0xf8] sm:$0x38] %v1151
        %v1168 = vld [vmem:[%s414] sm:$0x77]
        %v1169 = vld [vmem:[%s414 + $0x8] sm:$0x77]
        %v1170 = vld [vmem:[%s414 + $0x10] sm:$0x77]
        %v1171 = vld [vmem:[%s414 + $0x18] sm:$0x77]
        %v1172 = vld [vmem:[%s414 + $0x20] sm:$0x7]
        %1178 = vst [vmem:[#allocation1] ss:$2 sm:$0xff] %v1168
        %s1179 = scalar_lea.vmem [#allocation1], 16
        %1180 = vst [vmem:[%s1179] ss:$2 sm:$0xff] %v1169
        %s1181 = scalar_lea.vmem [#allocation1], 32
        %1182 = vst [vmem:[%s1181] ss:$2 sm:$0xff] %v1170
        %s1183 = scalar_lea.vmem [#allocation1], 48
        %1184 = vst [vmem:[%s1183] ss:$2 sm:$0xff] %v1171
        %v1185 = vld.sshfl [vmem:[#allocation1] sm:$0xff pattern:$0x75316420]
        %v1186 = vld.sshfl [vmem:[#allocation1 + $0x8] sm:$0xff pattern:$0x75316420]
        %v1187 = vld.sshfl [vmem:[#allocation1 + $0x10] sm:$0xff pattern:$0x75316420]
        %v1188 = vld.sshfl [vmem:[#allocation1 + $0x18] sm:$0xff pattern:$0x75316420]
        %v1189 = vld.sshfl [vmem:[#allocation1 + $0x20] sm:$0xff pattern:$0x75316420]
        %v1190 = vld.sshfl [vmem:[#allocation1 + $0x28] sm:$0xff pattern:$0x75316420]
        %v1191 = vld.sshfl [vmem:[#allocation1 + $0x30] sm:$0xff pattern:$0x75316420]
        %v1192 = vld.sshfl [vmem:[#allocation1 + $0x38] sm:$0xff pattern:$0x75316420]
        %1193 = vst [vmem:[#allocation1] ss:$2 sm:$0xff] %v1172
        %v1194 = vld.sshfl [vmem:[#allocation1] sm:$0xff pattern:$0x75316420]
        %v1195 = vrot.slane %v1185, 2
        %v1196 = vrot.slane %v1186, 2
        %v1197 = vrot.slane %v1187, 2
        %v1198 = vrot.slane %v1188, 2
        %v1199 = vrot.slane %v1189, 2
        %v1200 = vrot.slane %v1190, 2
        %v1201 = vrot.slane %v1191, 2
        %v1202 = vrot.slane %v1192, 2
        %v1203 = vrot.slane %v1194, 2
        %1204 = vrot.lane.b32.xlu0 %v1195, 64
        %v1205 = vpop.permute.xlu0 %1204
        %1206 = vrot.lane.b32.xlu0 %v1196, 64
        %v1207 = vpop.permute.xlu0 %1206
        %1208 = vrot.lane.b32.xlu0 %v1197, 64
        %v1209 = vpop.permute.xlu0 %1208
        %1210 = vrot.lane.b32.xlu0 %v1198, 64
        %v1211 = vpop.permute.xlu0 %1210
        %1212 = vrot.lane.b32.xlu0 %v1199, 64
        %v1213 = vpop.permute.xlu0 %1212
        %1214 = vrot.lane.b32.xlu0 %v1200, 64
        %v1215 = vpop.permute.xlu0 %1214
        %1216 = vrot.lane.b32.xlu0 %v1201, 64
        %v1217 = vpop.permute.xlu0 %1216
        %1218 = vrot.lane.b32.xlu0 %v1202, 64
        %v1219 = vpop.permute.xlu0 %1218
        %1220 = vrot.lane.b32.xlu0 %v1203, 64
        %v1221 = vpop.permute.xlu0 %1220
        %vm1222 = vcmask 523264
        %v1223 = vsel %vm1222, %v1205, %v1207
        %v1224 = vsel %vm1222, %v1207, %v1209
        %v1225 = vsel %vm1222, %v1209, %v1211
        %v1226 = vsel %vm1222, %v1211, %v1213
        %v1227 = vsel %vm1222, %v1213, %v1215
        %v1228 = vsel %vm1222, %v1215, %v1217
        %v1229 = vsel %vm1222, %v1217, %v1219
        %v1230 = vsel %vm1222, %v1219, %v1221
        %1239 = vst [vmem:[#allocation2 + $0xc0] sm:$0xc0] %v1223
        %1240 = vst [vmem:[#allocation2 + $0xc8] sm:$0xc0] %v1224
        %1241 = vst [vmem:[#allocation2 + $0xd0] sm:$0xc0] %v1225
        %1242 = vst [vmem:[#allocation2 + $0xd8] sm:$0xc0] %v1226
        %1243 = vst [vmem:[#allocation2 + $0xe0] sm:$0xc0] %v1227
        %1244 = vst [vmem:[#allocation2 + $0xe8] sm:$0xc0] %v1228
        %1245 = vst [vmem:[#allocation2 + $0xf0] sm:$0xc0] %v1229
        %1246 = vst [vmem:[#allocation2 + $0xf8] sm:$0xc0] %v1230
        %1247 = vst [vmem:[#allocation2 + $0x100] sm:$0x1] %v1223
        %1248 = vst [vmem:[#allocation2 + $0x108] sm:$0x1] %v1224
        %1249 = vst [vmem:[#allocation2 + $0x110] sm:$0x1] %v1225
        %1250 = vst [vmem:[#allocation2 + $0x118] sm:$0x1] %v1226
        %1251 = vst [vmem:[#allocation2 + $0x120] sm:$0x1] %v1227
        %1252 = vst [vmem:[#allocation2 + $0x128] sm:$0x1] %v1228
        %1253 = vst [vmem:[#allocation2 + $0x130] sm:$0x1] %v1229
        %1254 = vst [vmem:[#allocation2 + $0x138] sm:$0x1] %v1230
        %v1255 = vld [vmem:[%s414] sm:$0x77]
        %v1256 = vld [vmem:[%s414 + $0x8] sm:$0x77]
        %v1257 = vld [vmem:[%s414 + $0x10] sm:$0x77]
        %v1258 = vld [vmem:[%s414 + $0x18] sm:$0x77]
        %v1259 = vld [vmem:[%s414 + $0x20] sm:$0x7]
        %1265 = vst [vmem:[#allocation1] ss:$2 sm:$0xff] %v1255
        %s1266 = scalar_lea.vmem [#allocation1], 16
        %1267 = vst [vmem:[%s1266] ss:$2 sm:$0xff] %v1256
        %s1268 = scalar_lea.vmem [#allocation1], 32
        %1269 = vst [vmem:[%s1268] ss:$2 sm:$0xff] %v1257
        %s1270 = scalar_lea.vmem [#allocation1], 48
        %1271 = vst [vmem:[%s1270] ss:$2 sm:$0xff] %v1258
        %v1272 = vld.sshfl [vmem:[#allocation1] sm:$0xff pattern:$0x75316420]
        %v1273 = vld.sshfl [vmem:[#allocation1 + $0x8] sm:$0xff pattern:$0x75316420]
        %v1274 = vld.sshfl [vmem:[#allocation1 + $0x10] sm:$0xff pattern:$0x75316420]
        %v1275 = vld.sshfl [vmem:[#allocation1 + $0x18] sm:$0xff pattern:$0x75316420]
        %v1276 = vld.sshfl [vmem:[#allocation1 + $0x20] sm:$0xff pattern:$0x75316420]
        %v1277 = vld.sshfl [vmem:[#allocation1 + $0x28] sm:$0xff pattern:$0x75316420]
        %v1278 = vld.sshfl [vmem:[#allocation1 + $0x30] sm:$0xff pattern:$0x75316420]
        %v1279 = vld.sshfl [vmem:[#allocation1 + $0x38] sm:$0xff pattern:$0x75316420]
        %1280 = vst [vmem:[#allocation1] ss:$2 sm:$0xff] %v1259
        %v1281 = vld.sshfl [vmem:[#allocation1] sm:$0xff pattern:$0x75316420]
        %v1282 = vrot.slane %v1272, 7
        %v1283 = vrot.slane %v1273, 7
        %v1284 = vrot.slane %v1274, 7
        %v1285 = vrot.slane %v1275, 7
        %v1286 = vrot.slane %v1276, 7
        %v1287 = vrot.slane %v1277, 7
        %v1288 = vrot.slane %v1278, 7
        %v1289 = vrot.slane %v1279, 7
        %v1290 = vrot.slane %v1281, 7
        %1291 = vrot.lane.b32.xlu0 %v1282, 63
        %v1292 = vpop.permute.xlu0 %1291
        %1293 = vrot.lane.b32.xlu0 %v1283, 63
        %v1294 = vpop.permute.xlu0 %1293
        %1295 = vrot.lane.b32.xlu0 %v1284, 63
        %v1296 = vpop.permute.xlu0 %1295
        %1297 = vrot.lane.b32.xlu0 %v1285, 63
        %v1298 = vpop.permute.xlu0 %1297
        %1299 = vrot.lane.b32.xlu0 %v1286, 63
        %v1300 = vpop.permute.xlu0 %1299
        %1301 = vrot.lane.b32.xlu0 %v1287, 63
        %v1302 = vpop.permute.xlu0 %1301
        %1303 = vrot.lane.b32.xlu0 %v1288, 63
        %v1304 = vpop.permute.xlu0 %1303
        %1305 = vrot.lane.b32.xlu0 %v1289, 63
        %v1306 = vpop.permute.xlu0 %1305
        %1307 = vrot.lane.b32.xlu0 %v1290, 63
        %v1308 = vpop.permute.xlu0 %1307
        %vm1309 = vcmask 515072
        %v1310 = vsel %vm1309, %v1292, %v1294
        %v1311 = vsel %vm1309, %v1294, %v1296
        %v1312 = vsel %vm1309, %v1296, %v1298
        %v1313 = vsel %vm1309, %v1298, %v1300
        %v1314 = vsel %vm1309, %v1300, %v1302
        %v1315 = vsel %vm1309, %v1302, %v1304
        %v1316 = vsel %vm1309, %v1304, %v1306
        %v1317 = vsel %vm1309, %v1306, %v1308
        %1326 = vst [vmem:[#allocation2 + $0x100] sm:$0xe] %v1310
        %1327 = vst [vmem:[#allocation2 + $0x108] sm:$0xe] %v1311
        %1328 = vst [vmem:[#allocation2 + $0x110] sm:$0xe] %v1312
        %1329 = vst [vmem:[#allocation2 + $0x118] sm:$0xe] %v1313
        %1330 = vst [vmem:[#allocation2 + $0x120] sm:$0xe] %v1314
        %1331 = vst [vmem:[#allocation2 + $0x128] sm:$0xe] %v1315
        %1332 = vst [vmem:[#allocation2 + $0x130] sm:$0xe] %v1316
        %1333 = vst [vmem:[#allocation2 + $0x138] sm:$0xe] %v1317
        %v1334 = vld [vmem:[%s414] sm:$0x77]
        %v1335 = vld [vmem:[%s414 + $0x8] sm:$0x77]
        %v1336 = vld [vmem:[%s414 + $0x10] sm:$0x77]
        %v1337 = vld [vmem:[%s414 + $0x18] sm:$0x77]
        %v1338 = vld [vmem:[%s414 + $0x20] sm:$0x7]
        %s1344 = scalar_lea.vmem [#allocation1], 1
        %1345 = vst [vmem:[%s1344] ss:$2 sm:$0xff] %v1334
        %s1346 = scalar_lea.vmem [#allocation1], 17
        %1347 = vst [vmem:[%s1346] ss:$2 sm:$0xff] %v1335
        %s1348 = scalar_lea.vmem [#allocation1], 33
        %1349 = vst [vmem:[%s1348] ss:$2 sm:$0xff] %v1336
        %s1350 = scalar_lea.vmem [#allocation1], 49
        %1351 = vst [vmem:[%s1350] ss:$2 sm:$0xff] %v1337
        %v1352 = vld.sshfl [vmem:[#allocation1] sm:$0xff pattern:$0x75316420]
        %v1353 = vld.sshfl [vmem:[#allocation1 + $0x8] sm:$0xff pattern:$0x75316420]
        %v1354 = vld.sshfl [vmem:[#allocation1 + $0x10] sm:$0xff pattern:$0x75316420]
        %v1355 = vld.sshfl [vmem:[#allocation1 + $0x18] sm:$0xff pattern:$0x75316420]
        %v1356 = vld.sshfl [vmem:[#allocation1 + $0x20] sm:$0xff pattern:$0x75316420]
        %v1357 = vld.sshfl [vmem:[#allocation1 + $0x28] sm:$0xff pattern:$0x75316420]
        %v1358 = vld.sshfl [vmem:[#allocation1 + $0x30] sm:$0xff pattern:$0x75316420]
        %v1359 = vld.sshfl [vmem:[#allocation1 + $0x38] sm:$0xff pattern:$0x75316420]
        %1360 = vst [vmem:[%s1344] ss:$2 sm:$0xff] %v1338
        %v1361 = vld.sshfl [vmem:[#allocation1] sm:$0xff pattern:$0x75316420]
        %1362 = vrot.lane.b32.xlu0 %v1352, 62
        %v1363 = vpop.permute.xlu0 %1362
        %1364 = vrot.lane.b32.xlu0 %v1353, 62
        %v1365 = vpop.permute.xlu0 %1364
        %1366 = vrot.lane.b32.xlu0 %v1354, 62
        %v1367 = vpop.permute.xlu0 %1366
        %1368 = vrot.lane.b32.xlu0 %v1355, 62
        %v1369 = vpop.permute.xlu0 %1368
        %1370 = vrot.lane.b32.xlu0 %v1356, 62
        %v1371 = vpop.permute.xlu0 %1370
        %1372 = vrot.lane.b32.xlu0 %v1357, 62
        %v1373 = vpop.permute.xlu0 %1372
        %1374 = vrot.lane.b32.xlu0 %v1358, 62
        %v1375 = vpop.permute.xlu0 %1374
        %1376 = vrot.lane.b32.xlu0 %v1359, 62
        %v1377 = vpop.permute.xlu0 %1376
        %1378 = vrot.lane.b32.xlu0 %v1361, 62
        %v1379 = vpop.permute.xlu0 %1378
        %vm1380 = vcmask 506880
        %v1381 = vsel %vm1380, %v1363, %v1365
        %v1382 = vsel %vm1380, %v1365, %v1367
        %v1383 = vsel %vm1380, %v1367, %v1369
        %v1384 = vsel %vm1380, %v1369, %v1371
        %v1385 = vsel %vm1380, %v1371, %v1373
        %v1386 = vsel %vm1380, %v1373, %v1375
        %v1387 = vsel %vm1380, %v1375, %v1377
        %v1388 = vsel %vm1380, %v1377, %v1379
        %1397 = vst [vmem:[#allocation2 + $0x100] sm:$0x70] %v1381
        %1398 = vst [vmem:[#allocation2 + $0x108] sm:$0x70] %v1382
        %1399 = vst [vmem:[#allocation2 + $0x110] sm:$0x70] %v1383
        %1400 = vst [vmem:[#allocation2 + $0x118] sm:$0x70] %v1384
        %1401 = vst [vmem:[#allocation2 + $0x120] sm:$0x70] %v1385
        %1402 = vst [vmem:[#allocation2 + $0x128] sm:$0x70] %v1386
        %1403 = vst [vmem:[#allocation2 + $0x130] sm:$0x70] %v1387
        %1404 = vst [vmem:[#allocation2 + $0x138] sm:$0x70] %v1388
        %v1405 = vld [vmem:[%s414] sm:$0x77]
        %v1406 = vld [vmem:[%s414 + $0x8] sm:$0x77]
        %v1407 = vld [vmem:[%s414 + $0x10] sm:$0x77]
        %v1408 = vld [vmem:[%s414 + $0x18] sm:$0x77]
        %v1409 = vld [vmem:[%s414 + $0x20] sm:$0x7]
        %1415 = vst [vmem:[#allocation1] ss:$2 sm:$0xff] %v1405
        %s1416 = scalar_lea.vmem [#allocation1], 16
        %1417 = vst [vmem:[%s1416] ss:$2 sm:$0xff] %v1406
        %s1418 = scalar_lea.vmem [#allocation1], 32
        %1419 = vst [vmem:[%s1418] ss:$2 sm:$0xff] %v1407
        %s1420 = scalar_lea.vmem [#allocation1], 48
        %1421 = vst [vmem:[%s1420] ss:$2 sm:$0xff] %v1408
        %v1422 = vld.sshfl [vmem:[#allocation1] sm:$0xff pattern:$0x75316420]
        %v1423 = vld.sshfl [vmem:[#allocation1 + $0x8] sm:$0xff pattern:$0x75316420]
        %v1424 = vld.sshfl [vmem:[#allocation1 + $0x10] sm:$0xff pattern:$0x75316420]
        %v1425 = vld.sshfl [vmem:[#allocation1 + $0x18] sm:$0xff pattern:$0x75316420]
        %v1426 = vld.sshfl [vmem:[#allocation1 + $0x20] sm:$0xff pattern:$0x75316420]
        %v1427 = vld.sshfl [vmem:[#allocation1 + $0x28] sm:$0xff pattern:$0x75316420]
        %v1428 = vld.sshfl [vmem:[#allocation1 + $0x30] sm:$0xff pattern:$0x75316420]
        %v1429 = vld.sshfl [vmem:[#allocation1 + $0x38] sm:$0xff pattern:$0x75316420]
        %1430 = vst [vmem:[#allocation1] ss:$2 sm:$0xff] %v1409
        %v1431 = vld.sshfl [vmem:[#allocation1] sm:$0xff pattern:$0x75316420]
        %v1432 = vrot.slane %v1422, 1
        %v1433 = vrot.slane %v1423, 1
        %v1434 = vrot.slane %v1424, 1
        %v1435 = vrot.slane %v1425, 1
        %v1436 = vrot.slane %v1426, 1
        %v1437 = vrot.slane %v1427, 1
        %v1438 = vrot.slane %v1428, 1
        %v1439 = vrot.slane %v1429, 1
        %v1440 = vrot.slane %v1431, 1
        %1441 = vrot.lane.b32.xlu0 %v1432, 61
        %v1442 = vpop.permute.xlu0 %1441
        %1443 = vrot.lane.b32.xlu0 %v1433, 61
        %v1444 = vpop.permute.xlu0 %1443
        %1445 = vrot.lane.b32.xlu0 %v1434, 61
        %v1446 = vpop.permute.xlu0 %1445
        %1447 = vrot.lane.b32.xlu0 %v1435, 61
        %v1448 = vpop.permute.xlu0 %1447
        %1449 = vrot.lane.b32.xlu0 %v1436, 61
        %v1450 = vpop.permute.xlu0 %1449
        %1451 = vrot.lane.b32.xlu0 %v1437, 61
        %v1452 = vpop.permute.xlu0 %1451
        %1453 = vrot.lane.b32.xlu0 %v1438, 61
        %v1454 = vpop.permute.xlu0 %1453
        %1455 = vrot.lane.b32.xlu0 %v1439, 61
        %v1456 = vpop.permute.xlu0 %1455
        %1457 = vrot.lane.b32.xlu0 %v1440, 61
        %v1458 = vpop.permute.xlu0 %1457
        %vm1459 = vcmask 498688
        %v1460 = vsel %vm1459, %v1442, %v1444
        %v1461 = vsel %vm1459, %v1444, %v1446
        %v1462 = vsel %vm1459, %v1446, %v1448
        %v1463 = vsel %vm1459, %v1448, %v1450
        %v1464 = vsel %vm1459, %v1450, %v1452
        %v1465 = vsel %vm1459, %v1452, %v1454
        %v1466 = vsel %vm1459, %v1454, %v1456
        %v1467 = vsel %vm1459, %v1456, %v1458
        %1476 = vst [vmem:[#allocation2 + $0x100] sm:$0x80] %v1460
        %1477 = vst [vmem:[#allocation2 + $0x108] sm:$0x80] %v1461
        %1478 = vst [vmem:[#allocation2 + $0x110] sm:$0x80] %v1462
        %1479 = vst [vmem:[#allocation2 + $0x118] sm:$0x80] %v1463
        %1480 = vst [vmem:[#allocation2 + $0x120] sm:$0x80] %v1464
        %1481 = vst [vmem:[#allocation2 + $0x128] sm:$0x80] %v1465
        %1482 = vst [vmem:[#allocation2 + $0x130] sm:$0x80] %v1466
        %1483 = vst [vmem:[#allocation2 + $0x138] sm:$0x80] %v1467
        %1484 = vst [vmem:[#allocation2 + $0x140] sm:$0x3] %v1460
        %1485 = vst [vmem:[#allocation2 + $0x148] sm:$0x3] %v1461
        %1486 = vst [vmem:[#allocation2 + $0x150] sm:$0x3] %v1462
        %1487 = vst [vmem:[#allocation2 + $0x158] sm:$0x3] %v1463
        %1488 = vst [vmem:[#allocation2 + $0x160] sm:$0x3] %v1464
        %1489 = vst [vmem:[#allocation2 + $0x168] sm:$0x3] %v1465
        %1490 = vst [vmem:[#allocation2 + $0x170] sm:$0x3] %v1466
        %1491 = vst [vmem:[#allocation2 + $0x178] sm:$0x3] %v1467
        %v1492 = vld [vmem:[%s414] sm:$0x77]
        %v1493 = vld [vmem:[%s414 + $0x8] sm:$0x77]
        %v1494 = vld [vmem:[%s414 + $0x10] sm:$0x77]
        %v1495 = vld [vmem:[%s414 + $0x18] sm:$0x77]
        %v1496 = vld [vmem:[%s414 + $0x20] sm:$0x7]
        %1502 = vst [vmem:[#allocation1] ss:$2 sm:$0xff] %v1492
        %s1503 = scalar_lea.vmem [#allocation1], 16
        %1504 = vst [vmem:[%s1503] ss:$2 sm:$0xff] %v1493
        %s1505 = scalar_lea.vmem [#allocation1], 32
        %1506 = vst [vmem:[%s1505] ss:$2 sm:$0xff] %v1494
        %s1507 = scalar_lea.vmem [#allocation1], 48
        %1508 = vst [vmem:[%s1507] ss:$2 sm:$0xff] %v1495
        %v1509 = vld.sshfl [vmem:[#allocation1] sm:$0xff pattern:$0x75316420]
        %v1510 = vld.sshfl [vmem:[#allocation1 + $0x8] sm:$0xff pattern:$0x75316420]
        %v1511 = vld.sshfl [vmem:[#allocation1 + $0x10] sm:$0xff pattern:$0x75316420]
        %v1512 = vld.sshfl [vmem:[#allocation1 + $0x18] sm:$0xff pattern:$0x75316420]
        %v1513 = vld.sshfl [vmem:[#allocation1 + $0x20] sm:$0xff pattern:$0x75316420]
        %v1514 = vld.sshfl [vmem:[#allocation1 + $0x28] sm:$0xff pattern:$0x75316420]
        %v1515 = vld.sshfl [vmem:[#allocation1 + $0x30] sm:$0xff pattern:$0x75316420]
        %v1516 = vld.sshfl [vmem:[#allocation1 + $0x38] sm:$0xff pattern:$0x75316420]
        %1517 = vst [vmem:[#allocation1] ss:$2 sm:$0xff] %v1496
        %v1518 = vld.sshfl [vmem:[#allocation1] sm:$0xff pattern:$0x75316420]
        %v1519 = vrot.slane %v1509, 6
        %v1520 = vrot.slane %v1510, 6
        %v1521 = vrot.slane %v1511, 6
        %v1522 = vrot.slane %v1512, 6
        %v1523 = vrot.slane %v1513, 6
        %v1524 = vrot.slane %v1514, 6
        %v1525 = vrot.slane %v1515, 6
        %v1526 = vrot.slane %v1516, 6
        %v1527 = vrot.slane %v1518, 6
        %1528 = vrot.lane.b32.xlu0 %v1519, 60
        %v1529 = vpop.permute.xlu0 %1528
        %1530 = vrot.lane.b32.xlu0 %v1520, 60
        %v1531 = vpop.permute.xlu0 %1530
        %1532 = vrot.lane.b32.xlu0 %v1521, 60
        %v1533 = vpop.permute.xlu0 %1532
        %1534 = vrot.lane.b32.xlu0 %v1522, 60
        %v1535 = vpop.permute.xlu0 %1534
        %1536 = vrot.lane.b32.xlu0 %v1523, 60
        %v1537 = vpop.permute.xlu0 %1536
        %1538 = vrot.lane.b32.xlu0 %v1524, 60
        %v1539 = vpop.permute.xlu0 %1538
        %1540 = vrot.lane.b32.xlu0 %v1525, 60
        %v1541 = vpop.permute.xlu0 %1540
        %1542 = vrot.lane.b32.xlu0 %v1526, 60
        %v1543 = vpop.permute.xlu0 %1542
        %1544 = vrot.lane.b32.xlu0 %v1527, 60
        %v1545 = vpop.permute.xlu0 %1544
        %vm1546 = vcmask 490496
        %v1547 = vsel %vm1546, %v1529, %v1531
        %v1548 = vsel %vm1546, %v1531, %v1533
        %v1549 = vsel %vm1546, %v1533, %v1535
        %v1550 = vsel %vm1546, %v1535, %v1537
        %v1551 = vsel %vm1546, %v1537, %v1539
        %v1552 = vsel %vm1546, %v1539, %v1541
        %v1553 = vsel %vm1546, %v1541, %v1543
        %v1554 = vsel %vm1546, %v1543, %v1545
        %1563 = vst [vmem:[#allocation2 + $0x140] sm:$0x1c] %v1547
        %1564 = vst [vmem:[#allocation2 + $0x148] sm:$0x1c] %v1548
        %1565 = vst [vmem:[#allocation2 + $0x150] sm:$0x1c] %v1549
        %1566 = vst [vmem:[#allocation2 + $0x158] sm:$0x1c] %v1550
        %1567 = vst [vmem:[#allocation2 + $0x160] sm:$0x1c] %v1551
        %1568 = vst [vmem:[#allocation2 + $0x168] sm:$0x1c] %v1552
        %1569 = vst [vmem:[#allocation2 + $0x170] sm:$0x1c] %v1553
        %1570 = vst [vmem:[#allocation2 + $0x178] sm:$0x1c] %v1554
        %v1571 = vld [vmem:[%s414] sm:$0x77]
        %v1572 = vld [vmem:[%s414 + $0x8] sm:$0x77]
        %v1573 = vld [vmem:[%s414 + $0x10] sm:$0x77]
        %v1574 = vld [vmem:[%s414 + $0x18] sm:$0x77]
        %v1575 = vld [vmem:[%s414 + $0x20] sm:$0x7]
        %1581 = vst [vmem:[#allocation1] ss:$2 sm:$0xff] %v1571
        %s1582 = scalar_lea.vmem [#allocation1], 16
        %1583 = vst [vmem:[%s1582] ss:$2 sm:$0xff] %v1572
        %s1584 = scalar_lea.vmem [#allocation1], 32
        %1585 = vst [vmem:[%s1584] ss:$2 sm:$0xff] %v1573
        %s1586 = scalar_lea.vmem [#allocation1], 48
        %1587 = vst [vmem:[%s1586] ss:$2 sm:$0xff] %v1574
        %v1588 = vld.sshfl [vmem:[#allocation1] sm:$0xff pattern:$0x75316420]
        %v1589 = vld.sshfl [vmem:[#allocation1 + $0x8] sm:$0xff pattern:$0x75316420]
        %v1590 = vld.sshfl [vmem:[#allocation1 + $0x10] sm:$0xff pattern:$0x75316420]
        %v1591 = vld.sshfl [vmem:[#allocation1 + $0x18] sm:$0xff pattern:$0x75316420]
        %v1592 = vld.sshfl [vmem:[#allocation1 + $0x20] sm:$0xff pattern:$0x75316420]
        %v1593 = vld.sshfl [vmem:[#allocation1 + $0x28] sm:$0xff pattern:$0x75316420]
        %v1594 = vld.sshfl [vmem:[#allocation1 + $0x30] sm:$0xff pattern:$0x75316420]
        %v1595 = vld.sshfl [vmem:[#allocation1 + $0x38] sm:$0xff pattern:$0x75316420]
        %1596 = vst [vmem:[#allocation1] ss:$2 sm:$0xff] %v1575
        %v1597 = vld.sshfl [vmem:[#allocation1] sm:$0xff pattern:$0x75316420]
        %v1598 = vrot.slane %v1588, 3
        %v1599 = vrot.slane %v1589, 3
        %v1600 = vrot.slane %v1590, 3
        %v1601 = vrot.slane %v1591, 3
        %v1602 = vrot.slane %v1592, 3
        %v1603 = vrot.slane %v1593, 3
        %v1604 = vrot.slane %v1594, 3
        %v1605 = vrot.slane %v1595, 3
        %v1606 = vrot.slane %v1597, 3
        %1607 = vrot.lane.b32.xlu0 %v1598, 32
        %v1608 = vpop.permute.xlu0 %1607
        %1609 = vrot.lane.b32.xlu0 %v1599, 32
        %v1610 = vpop.permute.xlu0 %1609
        %1611 = vrot.lane.b32.xlu0 %v1600, 32
        %v1612 = vpop.permute.xlu0 %1611
        %1613 = vrot.lane.b32.xlu0 %v1601, 32
        %v1614 = vpop.permute.xlu0 %1613
        %1615 = vrot.lane.b32.xlu0 %v1602, 32
        %v1616 = vpop.permute.xlu0 %1615
        %1617 = vrot.lane.b32.xlu0 %v1603, 32
        %v1618 = vpop.permute.xlu0 %1617
        %1619 = vrot.lane.b32.xlu0 %v1604, 32
        %v1620 = vpop.permute.xlu0 %1619
        %1621 = vrot.lane.b32.xlu0 %v1605, 32
        %v1622 = vpop.permute.xlu0 %1621
        %1623 = vrot.lane.b32.xlu0 %v1606, 32
        %v1624 = vpop.permute.xlu0 %1623
        %vm1625 = vcmask 261120
        %v1626 = vsel %vm1625, %v1608, %v1610
        %v1627 = vsel %vm1625, %v1610, %v1612
        %v1628 = vsel %vm1625, %v1612, %v1614
        %v1629 = vsel %vm1625, %v1614, %v1616
        %v1630 = vsel %vm1625, %v1616, %v1618
        %v1631 = vsel %vm1625, %v1618, %v1620
        %v1632 = vsel %vm1625, %v1620, %v1622
        %v1633 = vsel %vm1625, %v1622, %v1624
        %1642 = vst [vmem:[#allocation2 + $0x140] sm:$0xe0] %v1626
        %1643 = vst [vmem:[#allocation2 + $0x148] sm:$0xe0] %v1627
        %1644 = vst [vmem:[#allocation2 + $0x150] sm:$0xe0] %v1628
        %1645 = vst [vmem:[#allocation2 + $0x158] sm:$0xe0] %v1629
        %1646 = vst [vmem:[#allocation2 + $0x160] sm:$0xe0] %v1630
        %1647 = vst [vmem:[#allocation2 + $0x168] sm:$0xe0] %v1631
        %1648 = vst [vmem:[#allocation2 + $0x170] sm:$0xe0] %v1632
        %1649 = vst [vmem:[#allocation2 + $0x178] sm:$0xe0] %v1633
        %v1650 = vld [vmem:[%s414] sm:$0x77]
        %v1651 = vld [vmem:[%s414 + $0x8] sm:$0x77]
        %v1652 = vld [vmem:[%s414 + $0x10] sm:$0x77]
        %v1653 = vld [vmem:[%s414 + $0x18] sm:$0x77]
        %v1654 = vld [vmem:[%s414 + $0x20] sm:$0x7]
        %1660 = vst [vmem:[#allocation1] ss:$2 sm:$0xff] %v1650
        %s1661 = scalar_lea.vmem [#allocation1], 16
        %1662 = vst [vmem:[%s1661] ss:$2 sm:$0xff] %v1651
        %s1663 = scalar_lea.vmem [#allocation1], 32
        %1664 = vst [vmem:[%s1663] ss:$2 sm:$0xff] %v1652
        %s1665 = scalar_lea.vmem [#allocation1], 48
        %1666 = vst [vmem:[%s1665] ss:$2 sm:$0xff] %v1653
        %v1667 = vld.sshfl [vmem:[#allocation1] sm:$0xff pattern:$0x75316420]
        %v1668 = vld.sshfl [vmem:[#allocation1 + $0x8] sm:$0xff pattern:$0x75316420]
        %v1669 = vld.sshfl [vmem:[#allocation1 + $0x10] sm:$0xff pattern:$0x75316420]
        %v1670 = vld.sshfl [vmem:[#allocation1 + $0x18] sm:$0xff pattern:$0x75316420]
        %v1671 = vld.sshfl [vmem:[#allocation1 + $0x20] sm:$0xff pattern:$0x75316420]
        %v1672 = vld.sshfl [vmem:[#allocation1 + $0x28] sm:$0xff pattern:$0x75316420]
        %v1673 = vld.sshfl [vmem:[#allocation1 + $0x30] sm:$0xff pattern:$0x75316420]
        %v1674 = vld.sshfl [vmem:[#allocation1 + $0x38] sm:$0xff pattern:$0x75316420]
        %1675 = vst [vmem:[#allocation1] ss:$2 sm:$0xff] %v1654
        %v1676 = vld.sshfl [vmem:[#allocation1] sm:$0xff pattern:$0x75316420]
        %1677 = vrot.lane.b32.xlu0 %v1667, 31
        %v1678 = vpop.permute.xlu0 %1677
        %1679 = vrot.lane.b32.xlu0 %v1668, 31
        %v1680 = vpop.permute.xlu0 %1679
        %1681 = vrot.lane.b32.xlu0 %v1669, 31
        %v1682 = vpop.permute.xlu0 %1681
        %1683 = vrot.lane.b32.xlu0 %v1670, 31
        %v1684 = vpop.permute.xlu0 %1683
        %1685 = vrot.lane.b32.xlu0 %v1671, 31
        %v1686 = vpop.permute.xlu0 %1685
        %1687 = vrot.lane.b32.xlu0 %v1672, 31
        %v1688 = vpop.permute.xlu0 %1687
        %1689 = vrot.lane.b32.xlu0 %v1673, 31
        %v1690 = vpop.permute.xlu0 %1689
        %1691 = vrot.lane.b32.xlu0 %v1674, 31
        %v1692 = vpop.permute.xlu0 %1691
        %1693 = vrot.lane.b32.xlu0 %v1676, 31
        %v1694 = vpop.permute.xlu0 %1693
        %vm1695 = vcmask 252928
        %v1696 = vsel %vm1695, %v1678, %v1680
        %v1697 = vsel %vm1695, %v1680, %v1682
        %v1698 = vsel %vm1695, %v1682, %v1684
        %v1699 = vsel %vm1695, %v1684, %v1686
        %v1700 = vsel %vm1695, %v1686, %v1688
        %v1701 = vsel %vm1695, %v1688, %v1690
        %v1702 = vsel %vm1695, %v1690, %v1692
        %v1703 = vsel %vm1695, %v1692, %v1694
        %1712 = vst [vmem:[#allocation2 + $0x180] sm:$0x7] %v1696
        %1713 = vst [vmem:[#allocation2 + $0x188] sm:$0x7] %v1697
        %1714 = vst [vmem:[#allocation2 + $0x190] sm:$0x7] %v1698
        %1715 = vst [vmem:[#allocation2 + $0x198] sm:$0x7] %v1699
        %1716 = vst [vmem:[#allocation2 + $0x1a0] sm:$0x7] %v1700
        %1717 = vst [vmem:[#allocation2 + $0x1a8] sm:$0x7] %v1701
        %1718 = vst [vmem:[#allocation2 + $0x1b0] sm:$0x7] %v1702
        %1719 = vst [vmem:[#allocation2 + $0x1b8] sm:$0x7] %v1703
        %v1720 = vld [vmem:[%s414] sm:$0x77]
        %v1721 = vld [vmem:[%s414 + $0x8] sm:$0x77]
        %v1722 = vld [vmem:[%s414 + $0x10] sm:$0x77]
        %v1723 = vld [vmem:[%s414 + $0x18] sm:$0x77]
        %v1724 = vld [vmem:[%s414 + $0x20] sm:$0x7]
        %1730 = vst [vmem:[#allocation1] ss:$2 sm:$0xff] %v1720
        %s1731 = scalar_lea.vmem [#allocation1], 16
        %1732 = vst [vmem:[%s1731] ss:$2 sm:$0xff] %v1721
        %s1733 = scalar_lea.vmem [#allocation1], 32
        %1734 = vst [vmem:[%s1733] ss:$2 sm:$0xff] %v1722
        %s1735 = scalar_lea.vmem [#allocation1], 48
        %1736 = vst [vmem:[%s1735] ss:$2 sm:$0xff] %v1723
        %v1737 = vld.sshfl [vmem:[#allocation1] sm:$0xff pattern:$0x75316420]
        %v1738 = vld.sshfl [vmem:[#allocation1 + $0x8] sm:$0xff pattern:$0x75316420]
        %v1739 = vld.sshfl [vmem:[#allocation1 + $0x10] sm:$0xff pattern:$0x75316420]
        %v1740 = vld.sshfl [vmem:[#allocation1 + $0x18] sm:$0xff pattern:$0x75316420]
        %v1741 = vld.sshfl [vmem:[#allocation1 + $0x20] sm:$0xff pattern:$0x75316420]
        %v1742 = vld.sshfl [vmem:[#allocation1 + $0x28] sm:$0xff pattern:$0x75316420]
        %v1743 = vld.sshfl [vmem:[#allocation1 + $0x30] sm:$0xff pattern:$0x75316420]
        %v1744 = vld.sshfl [vmem:[#allocation1 + $0x38] sm:$0xff pattern:$0x75316420]
        %1745 = vst [vmem:[#allocation1] ss:$2 sm:$0xff] %v1724
        %v1746 = vld.sshfl [vmem:[#allocation1] sm:$0xff pattern:$0x75316420]
        %v1747 = vrot.slane %v1737, 5
        %v1748 = vrot.slane %v1738, 5
        %v1749 = vrot.slane %v1739, 5
        %v1750 = vrot.slane %v1740, 5
        %v1751 = vrot.slane %v1741, 5
        %v1752 = vrot.slane %v1742, 5
        %v1753 = vrot.slane %v1743, 5
        %v1754 = vrot.slane %v1744, 5
        %v1755 = vrot.slane %v1746, 5
        %1756 = vrot.lane.b32.xlu0 %v1747, 30
        %v1757 = vpop.permute.xlu0 %1756
        %1758 = vrot.lane.b32.xlu0 %v1748, 30
        %v1759 = vpop.permute.xlu0 %1758
        %1760 = vrot.lane.b32.xlu0 %v1749, 30
        %v1761 = vpop.permute.xlu0 %1760
        %1762 = vrot.lane.b32.xlu0 %v1750, 30
        %v1763 = vpop.permute.xlu0 %1762
        %1764 = vrot.lane.b32.xlu0 %v1751, 30
        %v1765 = vpop.permute.xlu0 %1764
        %1766 = vrot.lane.b32.xlu0 %v1752, 30
        %v1767 = vpop.permute.xlu0 %1766
        %1768 = vrot.lane.b32.xlu0 %v1753, 30
        %v1769 = vpop.permute.xlu0 %1768
        %1770 = vrot.lane.b32.xlu0 %v1754, 30
        %v1771 = vpop.permute.xlu0 %1770
        %1772 = vrot.lane.b32.xlu0 %v1755, 30
        %v1773 = vpop.permute.xlu0 %1772
        %vm1774 = vcmask 244736
        %v1775 = vsel %vm1774, %v1757, %v1759
        %v1776 = vsel %vm1774, %v1759, %v1761
        %v1777 = vsel %vm1774, %v1761, %v1763
        %v1778 = vsel %vm1774, %v1763, %v1765
        %v1779 = vsel %vm1774, %v1765, %v1767
        %v1780 = vsel %vm1774, %v1767, %v1769
        %v1781 = vsel %vm1774, %v1769, %v1771
        %v1782 = vsel %vm1774, %v1771, %v1773
        %1791 = vst [vmem:[#allocation2 + $0x180] sm:$0x38] %v1775
        %1792 = vst [vmem:[#allocation2 + $0x188] sm:$0x38] %v1776
        %1793 = vst [vmem:[#allocation2 + $0x190] sm:$0x38] %v1777
        %1794 = vst [vmem:[#allocation2 + $0x198] sm:$0x38] %v1778
        %1795 = vst [vmem:[#allocation2 + $0x1a0] sm:$0x38] %v1779
        %1796 = vst [vmem:[#allocation2 + $0x1a8] sm:$0x38] %v1780
        %1797 = vst [vmem:[#allocation2 + $0x1b0] sm:$0x38] %v1781
        %1798 = vst [vmem:[#allocation2 + $0x1b8] sm:$0x38] %v1782
        %v1799 = vld [vmem:[%s414] sm:$0x77]
        %v1800 = vld [vmem:[%s414 + $0x8] sm:$0x77]
        %v1801 = vld [vmem:[%s414 + $0x10] sm:$0x77]
        %v1802 = vld [vmem:[%s414 + $0x18] sm:$0x77]
        %v1803 = vld [vmem:[%s414 + $0x20] sm:$0x7]
        %1809 = vst [vmem:[#allocation1] ss:$2 sm:$0xff] %v1799
        %s1810 = scalar_lea.vmem [#allocation1], 16
        %1811 = vst [vmem:[%s1810] ss:$2 sm:$0xff] %v1800
        %s1812 = scalar_lea.vmem [#allocation1], 32
        %1813 = vst [vmem:[%s1812] ss:$2 sm:$0xff] %v1801
        %s1814 = scalar_lea.vmem [#allocation1], 48
        %1815 = vst [vmem:[%s1814] ss:$2 sm:$0xff] %v1802
        %v1816 = vld.sshfl [vmem:[#allocation1] sm:$0xff pattern:$0x75316420]
        %v1817 = vld.sshfl [vmem:[#allocation1 + $0x8] sm:$0xff pattern:$0x75316420]
        %v1818 = vld.sshfl [vmem:[#allocation1 + $0x10] sm:$0xff pattern:$0x75316420]
        %v1819 = vld.sshfl [vmem:[#allocation1 + $0x18] sm:$0xff pattern:$0x75316420]
        %v1820 = vld.sshfl [vmem:[#allocation1 + $0x20] sm:$0xff pattern:$0x75316420]
        %v1821 = vld.sshfl [vmem:[#allocation1 + $0x28] sm:$0xff pattern:$0x75316420]
        %v1822 = vld.sshfl [vmem:[#allocation1 + $0x30] sm:$0xff pattern:$0x75316420]
        %v1823 = vld.sshfl [vmem:[#allocation1 + $0x38] sm:$0xff pattern:$0x75316420]
        %1824 = vst [vmem:[#allocation1] ss:$2 sm:$0xff] %v1803
        %v1825 = vld.sshfl [vmem:[#allocation1] sm:$0xff pattern:$0x75316420]
        %v1826 = vrot.slane %v1816, 2
        %v1827 = vrot.slane %v1817, 2
        %v1828 = vrot.slane %v1818, 2
        %v1829 = vrot.slane %v1819, 2
        %v1830 = vrot.slane %v1820, 2
        %v1831 = vrot.slane %v1821, 2
        %v1832 = vrot.slane %v1822, 2
        %v1833 = vrot.slane %v1823, 2
        %v1834 = vrot.slane %v1825, 2
        %1835 = vrot.lane.b32.xlu0 %v1826, 29
        %v1836 = vpop.permute.xlu0 %1835
        %1837 = vrot.lane.b32.xlu0 %v1827, 29
        %v1838 = vpop.permute.xlu0 %1837
        %1839 = vrot.lane.b32.xlu0 %v1828, 29
        %v1840 = vpop.permute.xlu0 %1839
        %1841 = vrot.lane.b32.xlu0 %v1829, 29
        %v1842 = vpop.permute.xlu0 %1841
        %1843 = vrot.lane.b32.xlu0 %v1830, 29
        %v1844 = vpop.permute.xlu0 %1843
        %1845 = vrot.lane.b32.xlu0 %v1831, 29
        %v1846 = vpop.permute.xlu0 %1845
        %1847 = vrot.lane.b32.xlu0 %v1832, 29
        %v1848 = vpop.permute.xlu0 %1847
        %1849 = vrot.lane.b32.xlu0 %v1833, 29
        %v1850 = vpop.permute.xlu0 %1849
        %1851 = vrot.lane.b32.xlu0 %v1834, 29
        %v1852 = vpop.permute.xlu0 %1851
        %vm1853 = vcmask 236544
        %v1854 = vsel %vm1853, %v1836, %v1838
        %v1855 = vsel %vm1853, %v1838, %v1840
        %v1856 = vsel %vm1853, %v1840, %v1842
        %v1857 = vsel %vm1853, %v1842, %v1844
        %v1858 = vsel %vm1853, %v1844, %v1846
        %v1859 = vsel %vm1853, %v1846, %v1848
        %v1860 = vsel %vm1853, %v1848, %v1850
        %v1861 = vsel %vm1853, %v1850, %v1852
        %1870 = vst [vmem:[#allocation2 + $0x180] sm:$0xc0] %v1854
        %1871 = vst [vmem:[#allocation2 + $0x188] sm:$0xc0] %v1855
        %1872 = vst [vmem:[#allocation2 + $0x190] sm:$0xc0] %v1856
        %1873 = vst [vmem:[#allocation2 + $0x198] sm:$0xc0] %v1857
        %1874 = vst [vmem:[#allocation2 + $0x1a0] sm:$0xc0] %v1858
        %1875 = vst [vmem:[#allocation2 + $0x1a8] sm:$0xc0] %v1859
        %1876 = vst [vmem:[#allocation2 + $0x1b0] sm:$0xc0] %v1860
        %1877 = vst [vmem:[#allocation2 + $0x1b8] sm:$0xc0] %v1861
        %1878 = vst [vmem:[#allocation2 + $0x1c0] sm:$0x1] %v1854
        %1879 = vst [vmem:[#allocation2 + $0x1c8] sm:$0x1] %v1855
        %1880 = vst [vmem:[#allocation2 + $0x1d0] sm:$0x1] %v1856
        %1881 = vst [vmem:[#allocation2 + $0x1d8] sm:$0x1] %v1857
        %1882 = vst [vmem:[#allocation2 + $0x1e0] sm:$0x1] %v1858
        %1883 = vst [vmem:[#allocation2 + $0x1e8] sm:$0x1] %v1859
        %1884 = vst [vmem:[#allocation2 + $0x1f0] sm:$0x1] %v1860
        %1885 = vst [vmem:[#allocation2 + $0x1f8] sm:$0x1] %v1861
        %v1886 = vld [vmem:[%s414] sm:$0x77]
        %v1887 = vld [vmem:[%s414 + $0x8] sm:$0x77]
        %v1888 = vld [vmem:[%s414 + $0x10] sm:$0x77]
        %v1889 = vld [vmem:[%s414 + $0x18] sm:$0x77]
        %v1890 = vld [vmem:[%s414 + $0x20] sm:$0x7]
        %1896 = vst [vmem:[#allocation1] ss:$2 sm:$0xff] %v1886
        %s1897 = scalar_lea.vmem [#allocation1], 16
        %1898 = vst [vmem:[%s1897] ss:$2 sm:$0xff] %v1887
        %s1899 = scalar_lea.vmem [#allocation1], 32
        %1900 = vst [vmem:[%s1899] ss:$2 sm:$0xff] %v1888
        %s1901 = scalar_lea.vmem [#allocation1], 48
        %1902 = vst [vmem:[%s1901] ss:$2 sm:$0xff] %v1889
        %v1903 = vld.sshfl [vmem:[#allocation1] sm:$0xff pattern:$0x75316420]
        %v1904 = vld.sshfl [vmem:[#allocation1 + $0x8] sm:$0xff pattern:$0x75316420]
        %v1905 = vld.sshfl [vmem:[#allocation1 + $0x10] sm:$0xff pattern:$0x75316420]
        %v1906 = vld.sshfl [vmem:[#allocation1 + $0x18] sm:$0xff pattern:$0x75316420]
        %v1907 = vld.sshfl [vmem:[#allocation1 + $0x20] sm:$0xff pattern:$0x75316420]
        %v1908 = vld.sshfl [vmem:[#allocation1 + $0x28] sm:$0xff pattern:$0x75316420]
        %v1909 = vld.sshfl [vmem:[#allocation1 + $0x30] sm:$0xff pattern:$0x75316420]
        %v1910 = vld.sshfl [vmem:[#allocation1 + $0x38] sm:$0xff pattern:$0x75316420]
        %1911 = vst [vmem:[#allocation1] ss:$2 sm:$0xff] %v1890
        %v1912 = vld.sshfl [vmem:[#allocation1] sm:$0xff pattern:$0x75316420]
        %v1913 = vrot.slane %v1903, 7
        %v1914 = vrot.slane %v1904, 7
        %v1915 = vrot.slane %v1905, 7
        %v1916 = vrot.slane %v1906, 7
        %v1917 = vrot.slane %v1907, 7
        %v1918 = vrot.slane %v1908, 7
        %v1919 = vrot.slane %v1909, 7
        %v1920 = vrot.slane %v1910, 7
        %v1921 = vrot.slane %v1912, 7
        %1922 = vrot.lane.b32.xlu0 %v1913, 28
        %v1923 = vpop.permute.xlu0 %1922
        %1924 = vrot.lane.b32.xlu0 %v1914, 28
        %v1925 = vpop.permute.xlu0 %1924
        %1926 = vrot.lane.b32.xlu0 %v1915, 28
        %v1927 = vpop.permute.xlu0 %1926
        %1928 = vrot.lane.b32.xlu0 %v1916, 28
        %v1929 = vpop.permute.xlu0 %1928
        %1930 = vrot.lane.b32.xlu0 %v1917, 28
        %v1931 = vpop.permute.xlu0 %1930
        %1932 = vrot.lane.b32.xlu0 %v1918, 28
        %v1933 = vpop.permute.xlu0 %1932
        %1934 = vrot.lane.b32.xlu0 %v1919, 28
        %v1935 = vpop.permute.xlu0 %1934
        %1936 = vrot.lane.b32.xlu0 %v1920, 28
        %v1937 = vpop.permute.xlu0 %1936
        %1938 = vrot.lane.b32.xlu0 %v1921, 28
        %v1939 = vpop.permute.xlu0 %1938
        %vm1940 = vcmask 228352
        %v1941 = vsel %vm1940, %v1923, %v1925
        %v1942 = vsel %vm1940, %v1925, %v1927
        %v1943 = vsel %vm1940, %v1927, %v1929
        %v1944 = vsel %vm1940, %v1929, %v1931
        %v1945 = vsel %vm1940, %v1931, %v1933
        %v1946 = vsel %vm1940, %v1933, %v1935
        %v1947 = vsel %vm1940, %v1935, %v1937
        %v1948 = vsel %vm1940, %v1937, %v1939
        %1957 = vst [vmem:[#allocation2 + $0x1c0] sm:$0xe] %v1941
        %1958 = vst [vmem:[#allocation2 + $0x1c8] sm:$0xe] %v1942
        %1959 = vst [vmem:[#allocation2 + $0x1d0] sm:$0xe] %v1943
        %1960 = vst [vmem:[#allocation2 + $0x1d8] sm:$0xe] %v1944
        %1961 = vst [vmem:[#allocation2 + $0x1e0] sm:$0xe] %v1945
        %1962 = vst [vmem:[#allocation2 + $0x1e8] sm:$0xe] %v1946
        %1963 = vst [vmem:[#allocation2 + $0x1f0] sm:$0xe] %v1947
        %1964 = vst [vmem:[#allocation2 + $0x1f8] sm:$0xe] %v1948
        %v1965 = vld [vmem:[%s414 + $0x4] sm:$0x77]
        %v1966 = vld [vmem:[%s414 + $0xc] sm:$0x77]
        %v1967 = vld [vmem:[%s414 + $0x14] sm:$0x77]
        %v1968 = vld [vmem:[%s414 + $0x1c] sm:$0x77]
        %s1973 = scalar_lea.vmem [#allocation1], 1
        %1974 = vst [vmem:[%s1973] ss:$2 sm:$0xff] %v1965
        %s1975 = scalar_lea.vmem [#allocation1], 17
        %1976 = vst [vmem:[%s1975] ss:$2 sm:$0xff] %v1966
        %s1977 = scalar_lea.vmem [#allocation1], 33
        %1978 = vst [vmem:[%s1977] ss:$2 sm:$0xff] %v1967
        %s1979 = scalar_lea.vmem [#allocation1], 49
        %1980 = vst [vmem:[%s1979] ss:$2 sm:$0xff] %v1968
        %v1981 = vld.sshfl [vmem:[#allocation1] sm:$0xff pattern:$0x75316420]
        %v1982 = vld.sshfl [vmem:[#allocation1 + $0x8] sm:$0xff pattern:$0x75316420]
        %v1983 = vld.sshfl [vmem:[#allocation1 + $0x10] sm:$0xff pattern:$0x75316420]
        %v1984 = vld.sshfl [vmem:[#allocation1 + $0x18] sm:$0xff pattern:$0x75316420]
        %v1985 = vld.sshfl [vmem:[#allocation1 + $0x20] sm:$0xff pattern:$0x75316420]
        %v1986 = vld.sshfl [vmem:[#allocation1 + $0x28] sm:$0xff pattern:$0x75316420]
        %v1987 = vld.sshfl [vmem:[#allocation1 + $0x30] sm:$0xff pattern:$0x75316420]
        %v1988 = vld.sshfl [vmem:[#allocation1 + $0x38] sm:$0xff pattern:$0x75316420]
        %1997 = vst [vmem:[#allocation2 + $0x1c0] sm:$0x70] %v1981
        %1998 = vst [vmem:[#allocation2 + $0x1c8] sm:$0x70] %v1982
        %1999 = vst [vmem:[#allocation2 + $0x1d0] sm:$0x70] %v1983
        %2000 = vst [vmem:[#allocation2 + $0x1d8] sm:$0x70] %v1984
        %2001 = vst [vmem:[#allocation2 + $0x1e0] sm:$0x70] %v1985
        %2002 = vst [vmem:[#allocation2 + $0x1e8] sm:$0x70] %v1986
        %2003 = vst [vmem:[#allocation2 + $0x1f0] sm:$0x70] %v1987
        %2004 = vst [vmem:[#allocation2 + $0x1f8] sm:$0x70] %v1988
        %v2005 = vld [vmem:[%s414 + $0x4] sm:$0x77]
        %v2006 = vld [vmem:[%s414 + $0xc] sm:$0x77]
        %v2007 = vld [vmem:[%s414 + $0x14] sm:$0x77]
        %v2008 = vld [vmem:[%s414 + $0x1c] sm:$0x77]
        %v2009 = vld [vmem:[%s414 + $0x24] sm:$0x7]
        %2015 = vst [vmem:[#allocation1] ss:$2 sm:$0xff] %v2005
        %s2016 = scalar_lea.vmem [#allocation1], 16
        %2017 = vst [vmem:[%s2016] ss:$2 sm:$0xff] %v2006
        %s2018 = scalar_lea.vmem [#allocation1], 32
        %2019 = vst [vmem:[%s2018] ss:$2 sm:$0xff] %v2007
        %s2020 = scalar_lea.vmem [#allocation1], 48
        %2021 = vst [vmem:[%s2020] ss:$2 sm:$0xff] %v2008
        %v2022 = vld.sshfl [vmem:[#allocation1] sm:$0xff pattern:$0x75316420]
        %v2023 = vld.sshfl [vmem:[#allocation1 + $0x8] sm:$0xff pattern:$0x75316420]
        %v2024 = vld.sshfl [vmem:[#allocation1 + $0x10] sm:$0xff pattern:$0x75316420]
        %v2025 = vld.sshfl [vmem:[#allocation1 + $0x18] sm:$0xff pattern:$0x75316420]
        %v2026 = vld.sshfl [vmem:[#allocation1 + $0x20] sm:$0xff pattern:$0x75316420]
        %v2027 = vld.sshfl [vmem:[#allocation1 + $0x28] sm:$0xff pattern:$0x75316420]
        %v2028 = vld.sshfl [vmem:[#allocation1 + $0x30] sm:$0xff pattern:$0x75316420]
        %v2029 = vld.sshfl [vmem:[#allocation1 + $0x38] sm:$0xff pattern:$0x75316420]
        %2030 = vst [vmem:[#allocation1] ss:$2 sm:$0xff] %v2009
        %v2031 = vld.sshfl [vmem:[#allocation1] sm:$0xff pattern:$0x75316420]
        %v2032 = vrot.slane %v2022, 1
        %v2033 = vrot.slane %v2023, 1
        %v2034 = vrot.slane %v2024, 1
        %v2035 = vrot.slane %v2025, 1
        %v2036 = vrot.slane %v2026, 1
        %v2037 = vrot.slane %v2027, 1
        %v2038 = vrot.slane %v2028, 1
        %v2039 = vrot.slane %v2029, 1
        %v2040 = vrot.slane %v2031, 1
        %2041 = vrot.lane.b32.xlu0 %v2032, 127
        %v2042 = vpop.permute.xlu0 %2041
        %2043 = vrot.lane.b32.xlu0 %v2033, 127
        %v2044 = vpop.permute.xlu0 %2043
        %2045 = vrot.lane.b32.xlu0 %v2034, 127
        %v2046 = vpop.permute.xlu0 %2045
        %2047 = vrot.lane.b32.xlu0 %v2035, 127
        %v2048 = vpop.permute.xlu0 %2047
        %2049 = vrot.lane.b32.xlu0 %v2036, 127
        %v2050 = vpop.permute.xlu0 %2049
        %2051 = vrot.lane.b32.xlu0 %v2037, 127
        %v2052 = vpop.permute.xlu0 %2051
        %2053 = vrot.lane.b32.xlu0 %v2038, 127
        %v2054 = vpop.permute.xlu0 %2053
        %2055 = vrot.lane.b32.xlu0 %v2039, 127
        %v2056 = vpop.permute.xlu0 %2055
        %2057 = vrot.lane.b32.xlu0 %v2040, 127
        %v2058 = vpop.permute.xlu0 %2057
        %v2059 = vsel %vm512, %v2042, %v2044
        %v2060 = vsel %vm512, %v2044, %v2046
        %v2061 = vsel %vm512, %v2046, %v2048
        %v2062 = vsel %vm512, %v2048, %v2050
        %v2063 = vsel %vm512, %v2050, %v2052
        %v2064 = vsel %vm512, %v2052, %v2054
        %v2065 = vsel %vm512, %v2054, %v2056
        %v2066 = vsel %vm512, %v2056, %v2058
        %2075 = vst [vmem:[#allocation2 + $0x1c0] sm:$0x80] %v2059
        %2076 = vst [vmem:[#allocation2 + $0x1c8] sm:$0x80] %v2060
        %2077 = vst [vmem:[#allocation2 + $0x1d0] sm:$0x80] %v2061
        %2078 = vst [vmem:[#allocation2 + $0x1d8] sm:$0x80] %v2062
        %2079 = vst [vmem:[#allocation2 + $0x1e0] sm:$0x80] %v2063
        %2080 = vst [vmem:[#allocation2 + $0x1e8] sm:$0x80] %v2064
        %2081 = vst [vmem:[#allocation2 + $0x1f0] sm:$0x80] %v2065
        %2082 = vst [vmem:[#allocation2 + $0x1f8] sm:$0x80] %v2066
        %2083 = vst [vmem:[#allocation2 + $0x200] sm:$0x3] %v2059
        %2084 = vst [vmem:[#allocation2 + $0x208] sm:$0x3] %v2060
        %2085 = vst [vmem:[#allocation2 + $0x210] sm:$0x3] %v2061
        %2086 = vst [vmem:[#allocation2 + $0x218] sm:$0x3] %v2062
        %2087 = vst [vmem:[#allocation2 + $0x220] sm:$0x3] %v2063
        %2088 = vst [vmem:[#allocation2 + $0x228] sm:$0x3] %v2064
        %2089 = vst [vmem:[#allocation2 + $0x230] sm:$0x3] %v2065
        %2090 = vst [vmem:[#allocation2 + $0x238] sm:$0x3] %v2066
        %v2091 = vld [vmem:[%s414 + $0x4] sm:$0x77]
        %v2092 = vld [vmem:[%s414 + $0xc] sm:$0x77]
        %v2093 = vld [vmem:[%s414 + $0x14] sm:$0x77]
        %v2094 = vld [vmem:[%s414 + $0x1c] sm:$0x77]
        %v2095 = vld [vmem:[%s414 + $0x24] sm:$0x7]
        %2101 = vst [vmem:[#allocation1] ss:$2 sm:$0xff] %v2091
        %s2102 = scalar_lea.vmem [#allocation1], 16
        %2103 = vst [vmem:[%s2102] ss:$2 sm:$0xff] %v2092
        %s2104 = scalar_lea.vmem [#allocation1], 32
        %2105 = vst [vmem:[%s2104] ss:$2 sm:$0xff] %v2093
        %s2106 = scalar_lea.vmem [#allocation1], 48
        %2107 = vst [vmem:[%s2106] ss:$2 sm:$0xff] %v2094
        %v2108 = vld.sshfl [vmem:[#allocation1] sm:$0xff pattern:$0x75316420]
        %v2109 = vld.sshfl [vmem:[#allocation1 + $0x8] sm:$0xff pattern:$0x75316420]
        %v2110 = vld.sshfl [vmem:[#allocation1 + $0x10] sm:$0xff pattern:$0x75316420]
        %v2111 = vld.sshfl [vmem:[#allocation1 + $0x18] sm:$0xff pattern:$0x75316420]
        %v2112 = vld.sshfl [vmem:[#allocation1 + $0x20] sm:$0xff pattern:$0x75316420]
        %v2113 = vld.sshfl [vmem:[#allocation1 + $0x28] sm:$0xff pattern:$0x75316420]
        %v2114 = vld.sshfl [vmem:[#allocation1 + $0x30] sm:$0xff pattern:$0x75316420]
        %v2115 = vld.sshfl [vmem:[#allocation1 + $0x38] sm:$0xff pattern:$0x75316420]
        %2116 = vst [vmem:[#allocation1] ss:$2 sm:$0xff] %v2095
        %v2117 = vld.sshfl [vmem:[#allocation1] sm:$0xff pattern:$0x75316420]
        %v2118 = vrot.slane %v2108, 6
        %v2119 = vrot.slane %v2109, 6
        %v2120 = vrot.slane %v2110, 6
        %v2121 = vrot.slane %v2111, 6
        %v2122 = vrot.slane %v2112, 6
        %v2123 = vrot.slane %v2113, 6
        %v2124 = vrot.slane %v2114, 6
        %v2125 = vrot.slane %v2115, 6
        %v2126 = vrot.slane %v2117, 6
        %2127 = vrot.lane.b32.xlu0 %v2118, 126
        %v2128 = vpop.permute.xlu0 %2127
        %2129 = vrot.lane.b32.xlu0 %v2119, 126
        %v2130 = vpop.permute.xlu0 %2129
        %2131 = vrot.lane.b32.xlu0 %v2120, 126
        %v2132 = vpop.permute.xlu0 %2131
        %2133 = vrot.lane.b32.xlu0 %v2121, 126
        %v2134 = vpop.permute.xlu0 %2133
        %2135 = vrot.lane.b32.xlu0 %v2122, 126
        %v2136 = vpop.permute.xlu0 %2135
        %2137 = vrot.lane.b32.xlu0 %v2123, 126
        %v2138 = vpop.permute.xlu0 %2137
        %2139 = vrot.lane.b32.xlu0 %v2124, 126
        %v2140 = vpop.permute.xlu0 %2139
        %2141 = vrot.lane.b32.xlu0 %v2125, 126
        %v2142 = vpop.permute.xlu0 %2141
        %2143 = vrot.lane.b32.xlu0 %v2126, 126
        %v2144 = vpop.permute.xlu0 %2143
        %v2145 = vsel %vm591, %v2128, %v2130
        %v2146 = vsel %vm591, %v2130, %v2132
        %v2147 = vsel %vm591, %v2132, %v2134
        %v2148 = vsel %vm591, %v2134, %v2136
        %v2149 = vsel %vm591, %v2136, %v2138
        %v2150 = vsel %vm591, %v2138, %v2140
        %v2151 = vsel %vm591, %v2140, %v2142
        %v2152 = vsel %vm591, %v2142, %v2144
        %2161 = vst [vmem:[#allocation2 + $0x200] sm:$0x1c] %v2145
        %2162 = vst [vmem:[#allocation2 + $0x208] sm:$0x1c] %v2146
        %2163 = vst [vmem:[#allocation2 + $0x210] sm:$0x1c] %v2147
        %2164 = vst [vmem:[#allocation2 + $0x218] sm:$0x1c] %v2148
        %2165 = vst [vmem:[#allocation2 + $0x220] sm:$0x1c] %v2149
        %2166 = vst [vmem:[#allocation2 + $0x228] sm:$0x1c] %v2150
        %2167 = vst [vmem:[#allocation2 + $0x230] sm:$0x1c] %v2151
        %2168 = vst [vmem:[#allocation2 + $0x238] sm:$0x1c] %v2152
        %v2169 = vld [vmem:[%s414 + $0x4] sm:$0x77]
        %v2170 = vld [vmem:[%s414 + $0xc] sm:$0x77]
        %v2171 = vld [vmem:[%s414 + $0x14] sm:$0x77]
        %v2172 = vld [vmem:[%s414 + $0x1c] sm:$0x77]
        %v2173 = vld [vmem:[%s414 + $0x24] sm:$0x7]
        %2179 = vst [vmem:[#allocation1] ss:$2 sm:$0xff] %v2169
        %s2180 = scalar_lea.vmem [#allocation1], 16
        %2181 = vst [vmem:[%s2180] ss:$2 sm:$0xff] %v2170
        %s2182 = scalar_lea.vmem [#allocation1], 32
        %2183 = vst [vmem:[%s2182] ss:$2 sm:$0xff] %v2171
        %s2184 = scalar_lea.vmem [#allocation1], 48
        %2185 = vst [vmem:[%s2184] ss:$2 sm:$0xff] %v2172
        %v2186 = vld.sshfl [vmem:[#allocation1] sm:$0xff pattern:$0x75316420]
        %v2187 = vld.sshfl [vmem:[#allocation1 + $0x8] sm:$0xff pattern:$0x75316420]
        %v2188 = vld.sshfl [vmem:[#allocation1 + $0x10] sm:$0xff pattern:$0x75316420]
        %v2189 = vld.sshfl [vmem:[#allocation1 + $0x18] sm:$0xff pattern:$0x75316420]
        %v2190 = vld.sshfl [vmem:[#allocation1 + $0x20] sm:$0xff pattern:$0x75316420]
        %v2191 = vld.sshfl [vmem:[#allocation1 + $0x28] sm:$0xff pattern:$0x75316420]
        %v2192 = vld.sshfl [vmem:[#allocation1 + $0x30] sm:$0xff pattern:$0x75316420]
        %v2193 = vld.sshfl [vmem:[#allocation1 + $0x38] sm:$0xff pattern:$0x75316420]
        %2194 = vst [vmem:[#allocation1] ss:$2 sm:$0xff] %v2173
        %v2195 = vld.sshfl [vmem:[#allocation1] sm:$0xff pattern:$0x75316420]
        %v2196 = vrot.slane %v2186, 3
        %v2197 = vrot.slane %v2187, 3
        %v2198 = vrot.slane %v2188, 3
        %v2199 = vrot.slane %v2189, 3
        %v2200 = vrot.slane %v2190, 3
        %v2201 = vrot.slane %v2191, 3
        %v2202 = vrot.slane %v2192, 3
        %v2203 = vrot.slane %v2193, 3
        %v2204 = vrot.slane %v2195, 3
        %2205 = vrot.lane.b32.xlu0 %v2196, 125
        %v2206 = vpop.permute.xlu0 %2205
        %2207 = vrot.lane.b32.xlu0 %v2197, 125
        %v2208 = vpop.permute.xlu0 %2207
        %2209 = vrot.lane.b32.xlu0 %v2198, 125
        %v2210 = vpop.permute.xlu0 %2209
        %2211 = vrot.lane.b32.xlu0 %v2199, 125
        %v2212 = vpop.permute.xlu0 %2211
        %2213 = vrot.lane.b32.xlu0 %v2200, 125
        %v2214 = vpop.permute.xlu0 %2213
        %2215 = vrot.lane.b32.xlu0 %v2201, 125
        %v2216 = vpop.permute.xlu0 %2215
        %2217 = vrot.lane.b32.xlu0 %v2202, 125
        %v2218 = vpop.permute.xlu0 %2217
        %2219 = vrot.lane.b32.xlu0 %v2203, 125
        %v2220 = vpop.permute.xlu0 %2219
        %2221 = vrot.lane.b32.xlu0 %v2204, 125
        %v2222 = vpop.permute.xlu0 %2221
        %v2223 = vsel %vm678, %v2206, %v2208
        %v2224 = vsel %vm678, %v2208, %v2210
        %v2225 = vsel %vm678, %v2210, %v2212
        %v2226 = vsel %vm678, %v2212, %v2214
        %v2227 = vsel %vm678, %v2214, %v2216
        %v2228 = vsel %vm678, %v2216, %v2218
        %v2229 = vsel %vm678, %v2218, %v2220
        %v2230 = vsel %vm678, %v2220, %v2222
        %2239 = vst [vmem:[#allocation2 + $0x200] sm:$0xe0] %v2223
        %2240 = vst [vmem:[#allocation2 + $0x208] sm:$0xe0] %v2224
        %2241 = vst [vmem:[#allocation2 + $0x210] sm:$0xe0] %v2225
        %2242 = vst [vmem:[#allocation2 + $0x218] sm:$0xe0] %v2226
        %2243 = vst [vmem:[#allocation2 + $0x220] sm:$0xe0] %v2227
        %2244 = vst [vmem:[#allocation2 + $0x228] sm:$0xe0] %v2228
        %2245 = vst [vmem:[#allocation2 + $0x230] sm:$0xe0] %v2229
        %2246 = vst [vmem:[#allocation2 + $0x238] sm:$0xe0] %v2230
        %v2247 = vld [vmem:[%s414 + $0x4] sm:$0x77]
        %v2248 = vld [vmem:[%s414 + $0xc] sm:$0x77]
        %v2249 = vld [vmem:[%s414 + $0x14] sm:$0x77]
        %v2250 = vld [vmem:[%s414 + $0x1c] sm:$0x77]
        %v2251 = vld [vmem:[%s414 + $0x24] sm:$0x7]
        %2257 = vst [vmem:[#allocation1] ss:$2 sm:$0xff] %v2247
        %s2258 = scalar_lea.vmem [#allocation1], 16
        %2259 = vst [vmem:[%s2258] ss:$2 sm:$0xff] %v2248
        %s2260 = scalar_lea.vmem [#allocation1], 32
        %2261 = vst [vmem:[%s2260] ss:$2 sm:$0xff] %v2249
        %s2262 = scalar_lea.vmem [#allocation1], 48
        %2263 = vst [vmem:[%s2262] ss:$2 sm:$0xff] %v2250
        %v2264 = vld.sshfl [vmem:[#allocation1] sm:$0xff pattern:$0x75316420]
        %v2265 = vld.sshfl [vmem:[#allocation1 + $0x8] sm:$0xff pattern:$0x75316420]
        %v2266 = vld.sshfl [vmem:[#allocation1 + $0x10] sm:$0xff pattern:$0x75316420]
        %v2267 = vld.sshfl [vmem:[#allocation1 + $0x18] sm:$0xff pattern:$0x75316420]
        %v2268 = vld.sshfl [vmem:[#allocation1 + $0x20] sm:$0xff pattern:$0x75316420]
        %v2269 = vld.sshfl [vmem:[#allocation1 + $0x28] sm:$0xff pattern:$0x75316420]
        %v2270 = vld.sshfl [vmem:[#allocation1 + $0x30] sm:$0xff pattern:$0x75316420]
        %v2271 = vld.sshfl [vmem:[#allocation1 + $0x38] sm:$0xff pattern:$0x75316420]
        %2272 = vst [vmem:[#allocation1] ss:$2 sm:$0xff] %v2251
        %v2273 = vld.sshfl [vmem:[#allocation1] sm:$0xff pattern:$0x75316420]
        %2274 = vrot.lane.b32.xlu0 %v2264, 124
        %v2275 = vpop.permute.xlu0 %2274
        %2276 = vrot.lane.b32.xlu0 %v2265, 124
        %v2277 = vpop.permute.xlu0 %2276
        %2278 = vrot.lane.b32.xlu0 %v2266, 124
        %v2279 = vpop.permute.xlu0 %2278
        %2280 = vrot.lane.b32.xlu0 %v2267, 124
        %v2281 = vpop.permute.xlu0 %2280
        %2282 = vrot.lane.b32.xlu0 %v2268, 124
        %v2283 = vpop.permute.xlu0 %2282
        %2284 = vrot.lane.b32.xlu0 %v2269, 124
        %v2285 = vpop.permute.xlu0 %2284
        %2286 = vrot.lane.b32.xlu0 %v2270, 124
        %v2287 = vpop.permute.xlu0 %2286
        %2288 = vrot.lane.b32.xlu0 %v2271, 124
        %v2289 = vpop.permute.xlu0 %2288
        %2290 = vrot.lane.b32.xlu0 %v2273, 124
        %v2291 = vpop.permute.xlu0 %2290
        %v2292 = vsel %vm749, %v2275, %v2277
        %v2293 = vsel %vm749, %v2277, %v2279
        %v2294 = vsel %vm749, %v2279, %v2281
        %v2295 = vsel %vm749, %v2281, %v2283
        %v2296 = vsel %vm749, %v2283, %v2285
        %v2297 = vsel %vm749, %v2285, %v2287
        %v2298 = vsel %vm749, %v2287, %v2289
        %v2299 = vsel %vm749, %v2289, %v2291
        %2308 = vst [vmem:[#allocation2 + $0x240] sm:$0x7] %v2292
        %2309 = vst [vmem:[#allocation2 + $0x248] sm:$0x7] %v2293
        %2310 = vst [vmem:[#allocation2 + $0x250] sm:$0x7] %v2294
        %2311 = vst [vmem:[#allocation2 + $0x258] sm:$0x7] %v2295
        %2312 = vst [vmem:[#allocation2 + $0x260] sm:$0x7] %v2296
        %2313 = vst [vmem:[#allocation2 + $0x268] sm:$0x7] %v2297
        %2314 = vst [vmem:[#allocation2 + $0x270] sm:$0x7] %v2298
        %2315 = vst [vmem:[#allocation2 + $0x278] sm:$0x7] %v2299
        %v2316 = vld [vmem:[%s1] sm:$0x3f]
        %v2317 = vld [vmem:[#allocation2] sm:$0xff]
        %v2318 = vld [vmem:[#allocation2 + $0x8] sm:$0xff]
        %v2319 = vld [vmem:[#allocation2 + $0x10] sm:$0xff]
        %v2320 = vld [vmem:[#allocation2 + $0x18] sm:$0xff]
        %v2321 = vld [vmem:[#allocation2 + $0x20] sm:$0xff]
        %v2322 = vld [vmem:[#allocation2 + $0x28] sm:$0xff]
        %v2323 = vld [vmem:[#allocation2 + $0x30] sm:$0xff]
        %v2324 = vld [vmem:[#allocation2 + $0x38] sm:$0xff]
        %v2325 = vld [vmem:[#allocation2 + $0x40] sm:$0xff]
        %v2326 = vld [vmem:[#allocation2 + $0x48] sm:$0xff]
        %v2327 = vld [vmem:[#allocation2 + $0x50] sm:$0xff]
        %v2328 = vld [vmem:[#allocation2 + $0x58] sm:$0xff]
        %v2329 = vld [vmem:[#allocation2 + $0x60] sm:$0xff]
        %v2330 = vld [vmem:[#allocation2 + $0x68] sm:$0xff]
        %v2331 = vld [vmem:[#allocation2 + $0x70] sm:$0xff]
        %v2332 = vld [vmem:[#allocation2 + $0x78] sm:$0xff]
        %v2333 = vld [vmem:[#allocation2 + $0x80] sm:$0xff]
        %v2334 = vld [vmem:[#allocation2 + $0x88] sm:$0xff]
        %v2335 = vld [vmem:[#allocation2 + $0x90] sm:$0xff]
        %v2336 = vld [vmem:[#allocation2 + $0x98] sm:$0xff]
        %v2337 = vld [vmem:[#allocation2 + $0xa0] sm:$0xff]
        %v2338 = vld [vmem:[#allocation2 + $0xa8] sm:$0xff]
        %v2339 = vld [vmem:[#allocation2 + $0xb0] sm:$0xff]
        %v2340 = vld [vmem:[#allocation2 + $0xb8] sm:$0xff]
        %v2341 = vld [vmem:[#allocation2 + $0xc0] sm:$0xff]
        %v2342 = vld [vmem:[#allocation2 + $0xc8] sm:$0xff]
        %v2343 = vld [vmem:[#allocation2 + $0xd0] sm:$0xff]
        %v2344 = vld [vmem:[#allocation2 + $0xd8] sm:$0xff]
        %v2345 = vld [vmem:[#allocation2 + $0xe0] sm:$0xff]
        %v2346 = vld [vmem:[#allocation2 + $0xe8] sm:$0xff]
        %v2347 = vld [vmem:[#allocation2 + $0xf0] sm:$0xff]
        %v2348 = vld [vmem:[#allocation2 + $0xf8] sm:$0xff]
        %v2349 = vld [vmem:[#allocation2 + $0x100] sm:$0xff]
        %v2350 = vld [vmem:[#allocation2 + $0x108] sm:$0xff]
        %v2351 = vld [vmem:[#allocation2 + $0x110] sm:$0xff]
        %v2352 = vld [vmem:[#allocation2 + $0x118] sm:$0xff]
        %v2353 = vld [vmem:[#allocation2 + $0x120] sm:$0xff]
        %v2354 = vld [vmem:[#allocation2 + $0x128] sm:$0xff]
        %v2355 = vld [vmem:[#allocation2 + $0x130] sm:$0xff]
        %v2356 = vld [vmem:[#allocation2 + $0x138] sm:$0xff]
        %v2357 = vld [vmem:[#allocation2 + $0x140] sm:$0xff]
        %v2358 = vld [vmem:[#allocation2 + $0x148] sm:$0xff]
        %v2359 = vld [vmem:[#allocation2 + $0x150] sm:$0xff]
        %v2360 = vld [vmem:[#allocation2 + $0x158] sm:$0xff]
        %v2361 = vld [vmem:[#allocation2 + $0x160] sm:$0xff]
        %v2362 = vld [vmem:[#allocation2 + $0x168] sm:$0xff]
        %v2363 = vld [vmem:[#allocation2 + $0x170] sm:$0xff]
        %v2364 = vld [vmem:[#allocation2 + $0x178] sm:$0xff]
        %v2365 = vld [vmem:[#allocation2 + $0x180] sm:$0xff]
        %v2366 = vld [vmem:[#allocation2 + $0x188] sm:$0xff]
        %v2367 = vld [vmem:[#allocation2 + $0x190] sm:$0xff]
        %v2368 = vld [vmem:[#allocation2 + $0x198] sm:$0xff]
        %v2369 = vld [vmem:[#allocation2 + $0x1a0] sm:$0xff]
        %v2370 = vld [vmem:[#allocation2 + $0x1a8] sm:$0xff]
        %v2371 = vld [vmem:[#allocation2 + $0x1b0] sm:$0xff]
        %v2372 = vld [vmem:[#allocation2 + $0x1b8] sm:$0xff]
        %v2373 = vld [vmem:[#allocation2 + $0x1c0] sm:$0xff]
        %v2374 = vld [vmem:[#allocation2 + $0x1c8] sm:$0xff]
        %v2375 = vld [vmem:[#allocation2 + $0x1d0] sm:$0xff]
        %v2376 = vld [vmem:[#allocation2 + $0x1d8] sm:$0xff]
        %v2377 = vld [vmem:[#allocation2 + $0x1e0] sm:$0xff]
        %v2378 = vld [vmem:[#allocation2 + $0x1e8] sm:$0xff]
        %v2379 = vld [vmem:[#allocation2 + $0x1f0] sm:$0xff]
        %v2380 = vld [vmem:[#allocation2 + $0x1f8] sm:$0xff]
        %v2381 = vld [vmem:[#allocation2 + $0x200] sm:$0xff]
        %v2382 = vld [vmem:[#allocation2 + $0x208] sm:$0xff]
        %v2383 = vld [vmem:[#allocation2 + $0x210] sm:$0xff]
        %v2384 = vld [vmem:[#allocation2 + $0x218] sm:$0xff]
        %v2385 = vld [vmem:[#allocation2 + $0x220] sm:$0xff]
        %v2386 = vld [vmem:[#allocation2 + $0x228] sm:$0xff]
        %v2387 = vld [vmem:[#allocation2 + $0x230] sm:$0xff]
        %v2388 = vld [vmem:[#allocation2 + $0x238] sm:$0xff]
        %v2389 = vld [vmem:[#allocation2 + $0x240] sm:$0x7]
        %v2390 = vld [vmem:[#allocation2 + $0x248] sm:$0x7]
        %v2391 = vld [vmem:[#allocation2 + $0x250] sm:$0x7]
        %v2392 = vld [vmem:[#allocation2 + $0x258] sm:$0x7]
        %v2393 = vld [vmem:[#allocation2 + $0x260] sm:$0x7]
        %v2394 = vld [vmem:[#allocation2 + $0x268] sm:$0x7]
        %v2395 = vld [vmem:[#allocation2 + $0x270] sm:$0x7]
        %v2396 = vld [vmem:[#allocation2 + $0x278] sm:$0x7]
        %v2397 = vld [vmem:[%s2] sm:$0x3f]
        %2399 = vset.pattern.permute.xlu0 0
        %2400 = vperm.xlu0 %2399, %v2397
        %v2401 = vpop.permute.xlu0 %2400
        %vm2403 = vcmask 613376
        %v2405 = vsel %vm2403, %v2316, 0
        %vm2407 = vcmask 1042432
        %v2409 = vsel %vm2407, %v2389, 0
        %v2412 = vsel %vm2407, %v2390, 0
        %v2415 = vsel %vm2407, %v2391, 0
        %v2418 = vsel %vm2407, %v2392, 0
        %v2421 = vsel %vm2407, %v2393, 0
        %v2424 = vsel %vm2407, %v2394, 0
        %v2427 = vsel %vm2407, %v2395, 0
        %v2430 = vsel %vm2407, %v2396, 0
        %2432 = vmatpush.msra.mxu0 0.0
        %2433 = vmatpush.msra.mxu0 0.0
        %2434 = vmatpush.msra.mxu0 0.0
        %2435 = vmatpush.msra.mxu0 0.0
        %2436 = vmatpush.msra.mxu0 0.0
        %2437 = vmatpush.msra.mxu0 0.0
        %2438 = vmatpush.msra.mxu0 %v2409
        %2439 = vmatpush.msra.mxu0 %v2381
        %2440 = vmatpush.msra.mxu0 %v2373
        %2441 = vmatpush.msra.mxu0 %v2365
        %2442 = vmatpush.msra.mxu0 %v2357
        %2443 = vmatpush.msra.mxu0 %v2349
        %2444 = vmatpush.msra.mxu0 %v2341
        %2445 = vmatpush.msra.mxu0 %v2333
        %2446 = vmatpush.msra.mxu0 %v2325
        %2447 = vmatpush.msra.mxu0 %v2317
        %2448 = vmatmul.f32.gmra.mxu0 %v2405
        %v2449 = vpop.f32.mrf.mxu0
        %v2450 = vadd.f32 %v2401, %v2449
        %2451 = vdwg.mxu0
        %2452 = vmatpush.msra.mxu0 0.0
        %2453 = vmatpush.msra.mxu0 0.0
        %2454 = vmatpush.msra.mxu0 0.0
        %2455 = vmatpush.msra.mxu0 0.0
        %2456 = vmatpush.msra.mxu0 0.0
        %2457 = vmatpush.msra.mxu0 0.0
        %2458 = vmatpush.msra.mxu0 %v2412
        %2459 = vmatpush.msra.mxu0 %v2382
        %2460 = vmatpush.msra.mxu0 %v2374
        %2461 = vmatpush.msra.mxu0 %v2366
        %2462 = vmatpush.msra.mxu0 %v2358
        %2463 = vmatpush.msra.mxu0 %v2350
        %2464 = vmatpush.msra.mxu0 %v2342
        %2465 = vmatpush.msra.mxu0 %v2334
        %2466 = vmatpush.msra.mxu0 %v2326
        %2467 = vmatpush.msra.mxu0 %v2318
        %2468 = vmatmul.f32.gmra.mxu0 %v2405
        %v2469 = vpop.f32.mrf.mxu0
        %v2470 = vadd.f32 %v2401, %v2469
        %2471 = vdwg.mxu0
        %2472 = vmatpush.msra.mxu0 0.0
        %2473 = vmatpush.msra.mxu0 0.0
        %2474 = vmatpush.msra.mxu0 0.0
        %2475 = vmatpush.msra.mxu0 0.0
        %2476 = vmatpush.msra.mxu0 0.0
        %2477 = vmatpush.msra.mxu0 0.0
        %2478 = vmatpush.msra.mxu0 %v2415
        %2479 = vmatpush.msra.mxu0 %v2383
        %2480 = vmatpush.msra.mxu0 %v2375
        %2481 = vmatpush.msra.mxu0 %v2367
        %2482 = vmatpush.msra.mxu0 %v2359
        %2483 = vmatpush.msra.mxu0 %v2351
        %2484 = vmatpush.msra.mxu0 %v2343
        %2485 = vmatpush.msra.mxu0 %v2335
        %2486 = vmatpush.msra.mxu0 %v2327
        %2487 = vmatpush.msra.mxu0 %v2319
        %2488 = vmatmul.f32.gmra.mxu0 %v2405
        %v2489 = vpop.f32.mrf.mxu0
        %v2490 = vadd.f32 %v2401, %v2489
        %2491 = vdwg.mxu0
        %2492 = vmatpush.msra.mxu0 0.0
        %2493 = vmatpush.msra.mxu0 0.0
        %2494 = vmatpush.msra.mxu0 0.0
        %2495 = vmatpush.msra.mxu0 0.0
        %2496 = vmatpush.msra.mxu0 0.0
        %2497 = vmatpush.msra.mxu0 0.0
        %2498 = vmatpush.msra.mxu0 %v2418
        %2499 = vmatpush.msra.mxu0 %v2384
        %2500 = vmatpush.msra.mxu0 %v2376
        %2501 = vmatpush.msra.mxu0 %v2368
        %2502 = vmatpush.msra.mxu0 %v2360
        %2503 = vmatpush.msra.mxu0 %v2352
        %2504 = vmatpush.msra.mxu0 %v2344
        %2505 = vmatpush.msra.mxu0 %v2336
        %2506 = vmatpush.msra.mxu0 %v2328
        %2507 = vmatpush.msra.mxu0 %v2320
        %2508 = vmatmul.f32.gmra.mxu0 %v2405
        %v2509 = vpop.f32.mrf.mxu0
        %v2510 = vadd.f32 %v2401, %v2509
        %2511 = vdwg.mxu0
        %2512 = vmatpush.msra.mxu0 0.0
        %2513 = vmatpush.msra.mxu0 0.0
        %2514 = vmatpush.msra.mxu0 0.0
        %2515 = vmatpush.msra.mxu0 0.0
        %2516 = vmatpush.msra.mxu0 0.0
        %2517 = vmatpush.msra.mxu0 0.0
        %2518 = vmatpush.msra.mxu0 %v2421
        %2519 = vmatpush.msra.mxu0 %v2385
        %2520 = vmatpush.msra.mxu0 %v2377
        %2521 = vmatpush.msra.mxu0 %v2369
        %2522 = vmatpush.msra.mxu0 %v2361
        %2523 = vmatpush.msra.mxu0 %v2353
        %2524 = vmatpush.msra.mxu0 %v2345
        %2525 = vmatpush.msra.mxu0 %v2337
        %2526 = vmatpush.msra.mxu0 %v2329
        %2527 = vmatpush.msra.mxu0 %v2321
        %2528 = vmatmul.f32.gmra.mxu0 %v2405
        %v2529 = vpop.f32.mrf.mxu0
        %v2530 = vadd.f32 %v2401, %v2529
        %2531 = vdwg.mxu0
        %2532 = vmatpush.msra.mxu0 0.0
        %2533 = vmatpush.msra.mxu0 0.0
        %2534 = vmatpush.msra.mxu0 0.0
        %2535 = vmatpush.msra.mxu0 0.0
        %2536 = vmatpush.msra.mxu0 0.0
        %2537 = vmatpush.msra.mxu0 0.0
        %2538 = vmatpush.msra.mxu0 %v2424
        %2539 = vmatpush.msra.mxu0 %v2386
        %2540 = vmatpush.msra.mxu0 %v2378
        %2541 = vmatpush.msra.mxu0 %v2370
        %2542 = vmatpush.msra.mxu0 %v2362
        %2543 = vmatpush.msra.mxu0 %v2354
        %2544 = vmatpush.msra.mxu0 %v2346
        %2545 = vmatpush.msra.mxu0 %v2338
        %2546 = vmatpush.msra.mxu0 %v2330
        %2547 = vmatpush.msra.mxu0 %v2322
        %2548 = vmatmul.f32.gmra.mxu0 %v2405
        %v2549 = vpop.f32.mrf.mxu0
        %v2550 = vadd.f32 %v2401, %v2549
        %2551 = vdwg.mxu0
        %2552 = vmatpush.msra.mxu0 0.0
        %2553 = vmatpush.msra.mxu0 0.0
        %2554 = vmatpush.msra.mxu0 0.0
        %2555 = vmatpush.msra.mxu0 0.0
        %2556 = vmatpush.msra.mxu0 0.0
        %2557 = vmatpush.msra.mxu0 0.0
        %2558 = vmatpush.msra.mxu0 %v2427
        %2559 = vmatpush.msra.mxu0 %v2387
        %2560 = vmatpush.msra.mxu0 %v2379
        %2561 = vmatpush.msra.mxu0 %v2371
        %2562 = vmatpush.msra.mxu0 %v2363
        %2563 = vmatpush.msra.mxu0 %v2355
        %2564 = vmatpush.msra.mxu0 %v2347
        %2565 = vmatpush.msra.mxu0 %v2339
        %2566 = vmatpush.msra.mxu0 %v2331
        %2567 = vmatpush.msra.mxu0 %v2323
        %2568 = vmatmul.f32.gmra.mxu0 %v2405
        %v2569 = vpop.f32.mrf.mxu0
        %v2570 = vadd.f32 %v2401, %v2569
        %2571 = vdwg.mxu0
        %2572 = vmatpush.msra.mxu0 0.0
        %2573 = vmatpush.msra.mxu0 0.0
        %2574 = vmatpush.msra.mxu0 0.0
        %2575 = vmatpush.msra.mxu0 0.0
        %2576 = vmatpush.msra.mxu0 0.0
        %2577 = vmatpush.msra.mxu0 0.0
        %2578 = vmatpush.msra.mxu0 %v2430
        %2579 = vmatpush.msra.mxu0 %v2388
        %2580 = vmatpush.msra.mxu0 %v2380
        %2581 = vmatpush.msra.mxu0 %v2372
        %2582 = vmatpush.msra.mxu0 %v2364
        %2583 = vmatpush.msra.mxu0 %v2356
        %2584 = vmatpush.msra.mxu0 %v2348
        %2585 = vmatpush.msra.mxu0 %v2340
        %2586 = vmatpush.msra.mxu0 %v2332
        %2587 = vmatpush.msra.mxu0 %v2324
        %2588 = vmatmul.f32.gmra.mxu0 %v2405
        %v2589 = vpop.f32.mrf.mxu0
        %v2590 = vadd.f32 %v2401, %v2589
        %2591 = vdwg.mxu0
        %v2592 = vmax.f32 %v2450, 0.0
        %v2593 = vmax.f32 %v2470, 0.0
        %v2594 = vmax.f32 %v2490, 0.0
        %v2595 = vmax.f32 %v2510, 0.0
        %v2596 = vmax.f32 %v2530, 0.0
        %v2597 = vmax.f32 %v2550, 0.0
        %v2598 = vmax.f32 %v2570, 0.0
        %v2599 = vmax.f32 %v2590, 0.0
        %2600 = vst [vmem:[#allocation4] sm:$0x3f] %v2592
        %2601 = vst [vmem:[#allocation4 + $0x8] sm:$0x3f] %v2593
        %2602 = vst [vmem:[#allocation4 + $0x10] sm:$0x3f] %v2594
        %2603 = vst [vmem:[#allocation4 + $0x18] sm:$0x3f] %v2595
        %2604 = vst [vmem:[#allocation4 + $0x20] sm:$0x3f] %v2596
        %2605 = vst [vmem:[#allocation4 + $0x28] sm:$0x3f] %v2597
        %2606 = vst [vmem:[#allocation4 + $0x30] sm:$0x3f] %v2598
        %2607 = vst [vmem:[#allocation4 + $0x38] sm:$0x3f] %v2599
        %v2608 = vld [vmem:[#allocation4] sm:$0x3f]
        %v2609 = vld [vmem:[#allocation4 + $0x8] sm:$0x3f]
        %v2610 = vld [vmem:[#allocation4 + $0x10] sm:$0x3f]
        %v2611 = vld [vmem:[#allocation4 + $0x18] sm:$0x3f]
        %v2612 = vld [vmem:[#allocation4 + $0x20] sm:$0x3f]
        %v2613 = vld [vmem:[#allocation4 + $0x28] sm:$0x3f]
        %v2614 = vld [vmem:[#allocation4 + $0x30] sm:$0x3f]
        %v2615 = vld [vmem:[#allocation4 + $0x38] sm:$0x3f]
        %2624 = vrot.lane.b32.xlu0 %v2608, 127
        %v2625 = vpop.permute.xlu0 %2624
        %2626 = vrot.lane.b32.xlu0 %v2609, 127
        %v2627 = vpop.permute.xlu0 %2626
        %2628 = vrot.lane.b32.xlu0 %v2610, 127
        %v2629 = vpop.permute.xlu0 %2628
        %2630 = vrot.lane.b32.xlu0 %v2611, 127
        %v2631 = vpop.permute.xlu0 %2630
        %2632 = vrot.lane.b32.xlu0 %v2612, 127
        %v2633 = vpop.permute.xlu0 %2632
        %2634 = vrot.lane.b32.xlu0 %v2613, 127
        %v2635 = vpop.permute.xlu0 %2634
        %2636 = vrot.lane.b32.xlu0 %v2614, 127
        %v2637 = vpop.permute.xlu0 %2636
        %2638 = vrot.lane.b32.xlu0 %v2615, 127
        %v2639 = vpop.permute.xlu0 %2638
        %v2640 = vsel %vm512, %v2625, %v2627
        %v2641 = vsel %vm512, %v2627, %v2629
        %v2642 = vsel %vm512, %v2629, %v2631
        %v2643 = vsel %vm512, %v2631, %v2633
        %v2644 = vsel %vm512, %v2633, %v2635
        %v2645 = vsel %vm512, %v2635, %v2637
        %v2646 = vsel %vm512, %v2637, %v2639
        %v2655 = vmax.f32 %v2608, %v2640
        %v2656 = vmax.f32 %v2609, %v2641
        %v2657 = vmax.f32 %v2610, %v2642
        %v2658 = vmax.f32 %v2611, %v2643
        %v2659 = vmax.f32 %v2612, %v2644
        %v2660 = vmax.f32 %v2613, %v2645
        %v2661 = vmax.f32 %v2614, %v2646
        %v2662 = vmax.f32 %v2615, %v2639
        %2671 = vrot.lane.b32.xlu0 %v2655, 96
        %v2672 = vpop.permute.xlu0 %2671
        %2673 = vrot.lane.b32.xlu0 %v2656, 96
        %v2674 = vpop.permute.xlu0 %2673
        %2675 = vrot.lane.b32.xlu0 %v2657, 96
        %v2676 = vpop.permute.xlu0 %2675
        %2677 = vrot.lane.b32.xlu0 %v2658, 96
        %v2678 = vpop.permute.xlu0 %2677
        %2679 = vrot.lane.b32.xlu0 %v2659, 96
        %v2680 = vpop.permute.xlu0 %2679
        %2681 = vrot.lane.b32.xlu0 %v2660, 96
        %v2682 = vpop.permute.xlu0 %2681
        %2683 = vrot.lane.b32.xlu0 %v2661, 96
        %v2684 = vpop.permute.xlu0 %2683
        %2685 = vrot.lane.b32.xlu0 %v2662, 96
        %v2686 = vpop.permute.xlu0 %2685
        %v2687 = vsel %vm828, %v2672, %v2674
        %v2688 = vsel %vm828, %v2674, %v2676
        %v2689 = vsel %vm828, %v2676, %v2678
        %v2690 = vsel %vm828, %v2678, %v2680
        %v2691 = vsel %vm828, %v2680, %v2682
        %v2692 = vsel %vm828, %v2682, %v2684
        %v2693 = vsel %vm828, %v2684, %v2686
        %v2702 = vmax.f32 %v2655, %v2687
        %v2703 = vmax.f32 %v2656, %v2688
        %v2704 = vmax.f32 %v2657, %v2689
        %v2705 = vmax.f32 %v2658, %v2690
        %v2706 = vmax.f32 %v2659, %v2691
        %v2707 = vmax.f32 %v2660, %v2692
        %v2708 = vmax.f32 %v2661, %v2693
        %v2709 = vmax.f32 %v2662, %v2686
        %v2710 = vld [vmem:[#allocation8] sm:$0xff]
        %v2711 = vld [vmem:[#allocation8 + $0x8] sm:$0xff]
        %v2712 = vld [vmem:[#allocation8 + $0x10] sm:$0xff]
        %v2713 = vld [vmem:[#allocation8 + $0x18] sm:$0xff]
        %v2714 = vld [vmem:[#allocation8 + $0x20] sm:$0xff]
        %v2715 = vld [vmem:[#allocation8 + $0x28] sm:$0xff]
        %v2716 = vld [vmem:[#allocation8 + $0x30] sm:$0xff]
        %v2717 = vld [vmem:[#allocation8 + $0x38] sm:$0xff]
        %v2718 = vld [vmem:[#allocation8 + $0x40] sm:$0xff]
        %v2719 = vld [vmem:[#allocation8 + $0x48] sm:$0xff]
        %v2720 = vld [vmem:[#allocation8 + $0x50] sm:$0xff]
        %v2721 = vld [vmem:[#allocation8 + $0x58] sm:$0xff]
        %v2722 = vld [vmem:[#allocation8 + $0x60] sm:$0xff]
        %v2723 = vld [vmem:[#allocation8 + $0x68] sm:$0xff]
        %v2724 = vld [vmem:[#allocation8 + $0x70] sm:$0xff]
        %v2725 = vld [vmem:[#allocation8 + $0x78] sm:$0xff]
        %v2726 = vld [vmem:[#allocation8 + $0x80] sm:$0xff]
        %v2727 = vld [vmem:[#allocation8 + $0x88] sm:$0xff]
        %v2728 = vld [vmem:[#allocation8 + $0x90] sm:$0xff]
        %v2729 = vld [vmem:[#allocation8 + $0x98] sm:$0xff]
        %v2730 = vld [vmem:[#allocation8 + $0xa0] sm:$0xff]
        %v2731 = vld [vmem:[#allocation8 + $0xa8] sm:$0xff]
        %v2732 = vld [vmem:[#allocation8 + $0xb0] sm:$0xff]
        %v2733 = vld [vmem:[#allocation8 + $0xb8] sm:$0xff]
        %v2734 = vld [vmem:[#allocation8 + $0xc0] sm:$0xff]
        %v2735 = vld [vmem:[#allocation8 + $0xc8] sm:$0xff]
        %v2736 = vld [vmem:[#allocation8 + $0xd0] sm:$0xff]
        %v2737 = vld [vmem:[#allocation8 + $0xd8] sm:$0xff]
        %v2738 = vld [vmem:[#allocation8 + $0xe0] sm:$0xff]
        %v2739 = vld [vmem:[#allocation8 + $0xe8] sm:$0xff]
        %v2740 = vld [vmem:[#allocation8 + $0xf0] sm:$0xff]
        %v2741 = vld [vmem:[#allocation8 + $0xf8] sm:$0xff]
        %v2742 = vld [vmem:[#allocation8 + $0x100] sm:$0xff]
        %v2743 = vld [vmem:[#allocation8 + $0x108] sm:$0xff]
        %v2744 = vld [vmem:[#allocation8 + $0x110] sm:$0xff]
        %v2745 = vld [vmem:[#allocation8 + $0x118] sm:$0xff]
        %v2746 = vld [vmem:[#allocation8 + $0x120] sm:$0xff]
        %v2747 = vld [vmem:[#allocation8 + $0x128] sm:$0xff]
        %v2748 = vld [vmem:[#allocation8 + $0x130] sm:$0xff]
        %v2749 = vld [vmem:[#allocation8 + $0x138] sm:$0xff]
        %v2750 = vld [vmem:[#allocation8 + $0x140] sm:$0xff]
        %v2751 = vld [vmem:[#allocation8 + $0x148] sm:$0xff]
        %v2752 = vld [vmem:[#allocation8 + $0x150] sm:$0xff]
        %v2753 = vld [vmem:[#allocation8 + $0x158] sm:$0xff]
        %v2754 = vld [vmem:[#allocation8 + $0x160] sm:$0xff]
        %v2755 = vld [vmem:[#allocation8 + $0x168] sm:$0xff]
        %v2756 = vld [vmem:[#allocation8 + $0x170] sm:$0xff]
        %v2757 = vld [vmem:[#allocation8 + $0x178] sm:$0xff]
        %v2758 = vld [vmem:[#allocation8 + $0x180] sm:$0xff]
        %v2759 = vld [vmem:[#allocation8 + $0x188] sm:$0xff]
        %v2760 = vld [vmem:[#allocation8 + $0x190] sm:$0xff]
        %v2761 = vld [vmem:[#allocation8 + $0x198] sm:$0xff]
        %v2762 = vld [vmem:[#allocation8 + $0x1a0] sm:$0xff]
        %v2763 = vld [vmem:[#allocation8 + $0x1a8] sm:$0xff]
        %v2764 = vld [vmem:[#allocation8 + $0x1b0] sm:$0xff]
        %v2765 = vld [vmem:[#allocation8 + $0x1b8] sm:$0xff]
        %v2766 = vld [vmem:[#allocation8 + $0x1c0] sm:$0xff]
        %v2767 = vld [vmem:[#allocation8 + $0x1c8] sm:$0xff]
        %v2768 = vld [vmem:[#allocation8 + $0x1d0] sm:$0xff]
        %v2769 = vld [vmem:[#allocation8 + $0x1d8] sm:$0xff]
        %v2770 = vld [vmem:[#allocation8 + $0x1e0] sm:$0xff]
        %v2771 = vld [vmem:[#allocation8 + $0x1e8] sm:$0xff]
        %v2772 = vld [vmem:[#allocation8 + $0x1f0] sm:$0xff]
        %v2773 = vld [vmem:[#allocation8 + $0x1f8] sm:$0xff]
        %v2774 = vld [vmem:[#allocation8 + $0x200] sm:$0xff]
        %v2775 = vld [vmem:[#allocation8 + $0x208] sm:$0xff]
        %v2776 = vld [vmem:[#allocation8 + $0x210] sm:$0xff]
        %v2777 = vld [vmem:[#allocation8 + $0x218] sm:$0xff]
        %v2778 = vld [vmem:[#allocation8 + $0x220] sm:$0xff]
        %v2779 = vld [vmem:[#allocation8 + $0x228] sm:$0xff]
        %v2780 = vld [vmem:[#allocation8 + $0x230] sm:$0xff]
        %v2781 = vld [vmem:[#allocation8 + $0x238] sm:$0xff]
        %v2782 = vld [vmem:[#allocation8 + $0x240] sm:$0xff]
        %v2783 = vld [vmem:[#allocation8 + $0x248] sm:$0xff]
        %v2784 = vld [vmem:[#allocation8 + $0x250] sm:$0xff]
        %v2785 = vld [vmem:[#allocation8 + $0x258] sm:$0xff]
        %v2786 = vld [vmem:[#allocation8 + $0x260] sm:$0xff]
        %v2787 = vld [vmem:[#allocation8 + $0x268] sm:$0xff]
        %v2788 = vld [vmem:[#allocation8 + $0x270] sm:$0xff]
        %v2789 = vld [vmem:[#allocation8 + $0x278] sm:$0xff]
        %v2790 = vld [vmem:[#allocation8 + $0x280] sm:$0xff]
        %v2791 = vld [vmem:[#allocation8 + $0x288] sm:$0xff]
        %v2792 = vld [vmem:[#allocation8 + $0x290] sm:$0xff]
        %v2793 = vld [vmem:[#allocation8 + $0x298] sm:$0xff]
        %v2794 = vld [vmem:[#allocation8 + $0x2a0] sm:$0xff]
        %v2795 = vld [vmem:[#allocation8 + $0x2a8] sm:$0xff]
        %v2796 = vld [vmem:[#allocation8 + $0x2b0] sm:$0xff]
        %v2797 = vld [vmem:[#allocation8 + $0x2b8] sm:$0xff]
        %v2798 = vld [vmem:[#allocation8 + $0x2c0] sm:$0xff]
        %v2799 = vld [vmem:[#allocation8 + $0x2c8] sm:$0xff]
        %v2800 = vld [vmem:[#allocation8 + $0x2d0] sm:$0xff]
        %v2801 = vld [vmem:[#allocation8 + $0x2d8] sm:$0xff]
        %v2802 = vld [vmem:[#allocation8 + $0x2e0] sm:$0xff]
        %v2803 = vld [vmem:[#allocation8 + $0x2e8] sm:$0xff]
        %v2804 = vld [vmem:[#allocation8 + $0x2f0] sm:$0xff]
        %v2805 = vld [vmem:[#allocation8 + $0x2f8] sm:$0xff]
        %v2806 = vld [vmem:[#allocation8 + $0x300] sm:$0xff]
        %v2807 = vld [vmem:[#allocation8 + $0x308] sm:$0xff]
        %v2808 = vld [vmem:[#allocation8 + $0x310] sm:$0xff]
        %v2809 = vld [vmem:[#allocation8 + $0x318] sm:$0xff]
        %v2810 = vld [vmem:[#allocation8 + $0x320] sm:$0xff]
        %v2811 = vld [vmem:[#allocation8 + $0x328] sm:$0xff]
        %v2812 = vld [vmem:[#allocation8 + $0x330] sm:$0xff]
        %v2813 = vld [vmem:[#allocation8 + $0x338] sm:$0xff]
        %v2814 = vld [vmem:[#allocation8 + $0x340] sm:$0xff]
        %v2815 = vld [vmem:[#allocation8 + $0x348] sm:$0xff]
        %v2816 = vld [vmem:[#allocation8 + $0x350] sm:$0xff]
        %v2817 = vld [vmem:[#allocation8 + $0x358] sm:$0xff]
        %v2818 = vld [vmem:[#allocation8 + $0x360] sm:$0xff]
        %v2819 = vld [vmem:[#allocation8 + $0x368] sm:$0xff]
        %v2820 = vld [vmem:[#allocation8 + $0x370] sm:$0xff]
        %v2821 = vld [vmem:[#allocation8 + $0x378] sm:$0xff]
        %v2822 = vld [vmem:[#allocation8 + $0x380] sm:$0xff]
        %v2823 = vld [vmem:[#allocation8 + $0x388] sm:$0xff]
        %v2824 = vld [vmem:[#allocation8 + $0x390] sm:$0xff]
        %v2825 = vld [vmem:[#allocation8 + $0x398] sm:$0xff]
        %v2826 = vld [vmem:[#allocation8 + $0x3a0] sm:$0xff]
        %v2827 = vld [vmem:[#allocation8 + $0x3a8] sm:$0xff]
        %v2828 = vld [vmem:[#allocation8 + $0x3b0] sm:$0xff]
        %v2829 = vld [vmem:[#allocation8 + $0x3b8] sm:$0xff]
        %v2830 = vld [vmem:[#allocation8 + $0x3c0] sm:$0xff]
        %v2831 = vld [vmem:[#allocation8 + $0x3c8] sm:$0xff]
        %v2832 = vld [vmem:[#allocation8 + $0x3d0] sm:$0xff]
        %v2833 = vld [vmem:[#allocation8 + $0x3d8] sm:$0xff]
        %v2834 = vld [vmem:[#allocation8 + $0x3e0] sm:$0xff]
        %v2835 = vld [vmem:[#allocation8 + $0x3e8] sm:$0xff]
        %v2836 = vld [vmem:[#allocation8 + $0x3f0] sm:$0xff]
        %v2837 = vld [vmem:[#allocation8 + $0x3f8] sm:$0xff]
        %v2838 = vld [vmem:[#allocation8 + $0x400] sm:$0xff]
        %v2839 = vld [vmem:[#allocation8 + $0x408] sm:$0xff]
        %v2840 = vld [vmem:[#allocation8 + $0x410] sm:$0xff]
        %v2841 = vld [vmem:[#allocation8 + $0x418] sm:$0xff]
        %v2842 = vld [vmem:[#allocation8 + $0x420] sm:$0xff]
        %v2843 = vld [vmem:[#allocation8 + $0x428] sm:$0xff]
        %v2844 = vld [vmem:[#allocation8 + $0x430] sm:$0xff]
        %v2845 = vld [vmem:[#allocation8 + $0x438] sm:$0xff]
        %v2846 = vld [vmem:[#allocation8 + $0x440] sm:$0xff]
        %v2847 = vld [vmem:[#allocation8 + $0x448] sm:$0xff]
        %v2848 = vld [vmem:[#allocation8 + $0x450] sm:$0xff]
        %v2849 = vld [vmem:[#allocation8 + $0x458] sm:$0xff]
        %v2850 = vld [vmem:[#allocation8 + $0x460] sm:$0xff]
        %v2851 = vld [vmem:[#allocation8 + $0x468] sm:$0xff]
        %v2852 = vld [vmem:[#allocation8 + $0x470] sm:$0xff]
        %v2853 = vld [vmem:[#allocation8 + $0x478] sm:$0xff]
        %v2854 = vld [vmem:[#allocation8 + $0x480] sm:$0xff]
        %v2855 = vld [vmem:[#allocation8 + $0x488] sm:$0xff]
        %v2856 = vld [vmem:[#allocation8 + $0x490] sm:$0xff]
        %v2857 = vld [vmem:[#allocation8 + $0x498] sm:$0xff]
        %v2858 = vld [vmem:[#allocation8 + $0x4a0] sm:$0xff]
        %v2859 = vld [vmem:[#allocation8 + $0x4a8] sm:$0xff]
        %v2860 = vld [vmem:[#allocation8 + $0x4b0] sm:$0xff]
        %v2861 = vld [vmem:[#allocation8 + $0x4b8] sm:$0xff]
        %v2862 = vld [vmem:[#allocation8 + $0x4c0] sm:$0xff]
        %v2863 = vld [vmem:[#allocation8 + $0x4c8] sm:$0xff]
        %v2864 = vld [vmem:[#allocation8 + $0x4d0] sm:$0xff]
        %v2865 = vld [vmem:[#allocation8 + $0x4d8] sm:$0xff]
        %v2866 = vld [vmem:[#allocation8 + $0x4e0] sm:$0xff]
        %v2867 = vld [vmem:[#allocation8 + $0x4e8] sm:$0xff]
        %v2868 = vld [vmem:[#allocation8 + $0x4f0] sm:$0xff]
        %v2869 = vld [vmem:[#allocation8 + $0x4f8] sm:$0xff]
        %v2870 = vld [vmem:[#allocation8 + $0x500] sm:$0xff]
        %v2871 = vld [vmem:[#allocation8 + $0x508] sm:$0xff]
        %v2872 = vld [vmem:[#allocation8 + $0x510] sm:$0xff]
        %v2873 = vld [vmem:[#allocation8 + $0x518] sm:$0xff]
        %v2874 = vld [vmem:[#allocation8 + $0x520] sm:$0xff]
        %v2875 = vld [vmem:[#allocation8 + $0x528] sm:$0xff]
        %v2876 = vld [vmem:[#allocation8 + $0x530] sm:$0xff]
        %v2877 = vld [vmem:[#allocation8 + $0x538] sm:$0xff]
        %v2878 = vld [vmem:[#allocation8 + $0x540] sm:$0xff]
        %v2879 = vld [vmem:[#allocation8 + $0x548] sm:$0xff]
        %v2880 = vld [vmem:[#allocation8 + $0x550] sm:$0xff]
        %v2881 = vld [vmem:[#allocation8 + $0x558] sm:$0xff]
        %v2882 = vld [vmem:[#allocation8 + $0x560] sm:$0xff]
        %v2883 = vld [vmem:[#allocation8 + $0x568] sm:$0xff]
        %v2884 = vld [vmem:[#allocation8 + $0x570] sm:$0xff]
        %v2885 = vld [vmem:[#allocation8 + $0x578] sm:$0xff]
        %v2886 = vld [vmem:[#allocation8 + $0x580] sm:$0xff]
        %v2887 = vld [vmem:[#allocation8 + $0x588] sm:$0xff]
        %v2888 = vld [vmem:[#allocation8 + $0x590] sm:$0xff]
        %v2889 = vld [vmem:[#allocation8 + $0x598] sm:$0xff]
        %v2890 = vld [vmem:[#allocation8 + $0x5a0] sm:$0xff]
        %v2891 = vld [vmem:[#allocation8 + $0x5a8] sm:$0xff]
        %v2892 = vld [vmem:[#allocation8 + $0x5b0] sm:$0xff]
        %v2893 = vld [vmem:[#allocation8 + $0x5b8] sm:$0xff]
        %v2894 = vld [vmem:[#allocation8 + $0x5c0] sm:$0xff]
        %v2895 = vld [vmem:[#allocation8 + $0x5c8] sm:$0xff]
        %v2896 = vld [vmem:[#allocation8 + $0x5d0] sm:$0xff]
        %v2897 = vld [vmem:[#allocation8 + $0x5d8] sm:$0xff]
        %v2898 = vld [vmem:[#allocation8 + $0x5e0] sm:$0xff]
        %v2899 = vld [vmem:[#allocation8 + $0x5e8] sm:$0xff]
        %v2900 = vld [vmem:[#allocation8 + $0x5f0] sm:$0xff]
        %v2901 = vld [vmem:[#allocation8 + $0x5f8] sm:$0xff]
        %v2902 = vld [vmem:[#allocation8 + $0x600] sm:$0xff]
        %v2903 = vld [vmem:[#allocation8 + $0x608] sm:$0xff]
        %v2904 = vld [vmem:[#allocation8 + $0x610] sm:$0xff]
        %v2905 = vld [vmem:[#allocation8 + $0x618] sm:$0xff]
        %v2906 = vld [vmem:[#allocation8 + $0x620] sm:$0xff]
        %v2907 = vld [vmem:[#allocation8 + $0x628] sm:$0xff]
        %v2908 = vld [vmem:[#allocation8 + $0x630] sm:$0xff]
        %v2909 = vld [vmem:[#allocation8 + $0x638] sm:$0xff]
        %v2910 = vld [vmem:[#allocation8 + $0x640] sm:$0xff]
        %v2911 = vld [vmem:[#allocation8 + $0x648] sm:$0xff]
        %v2912 = vld [vmem:[#allocation8 + $0x650] sm:$0xff]
        %v2913 = vld [vmem:[#allocation8 + $0x658] sm:$0xff]
        %v2914 = vld [vmem:[#allocation8 + $0x660] sm:$0xff]
        %v2915 = vld [vmem:[#allocation8 + $0x668] sm:$0xff]
        %v2916 = vld [vmem:[#allocation8 + $0x670] sm:$0xff]
        %v2917 = vld [vmem:[#allocation8 + $0x678] sm:$0xff]
        %v2918 = vld [vmem:[#allocation8 + $0x680] sm:$0xff]
        %v2919 = vld [vmem:[#allocation8 + $0x688] sm:$0xff]
        %v2920 = vld [vmem:[#allocation8 + $0x690] sm:$0xff]
        %v2921 = vld [vmem:[#allocation8 + $0x698] sm:$0xff]
        %v2922 = vld [vmem:[#allocation8 + $0x6a0] sm:$0xff]
        %v2923 = vld [vmem:[#allocation8 + $0x6a8] sm:$0xff]
        %v2924 = vld [vmem:[#allocation8 + $0x6b0] sm:$0xff]
        %v2925 = vld [vmem:[#allocation8 + $0x6b8] sm:$0xff]
        %v2926 = vld [vmem:[#allocation8 + $0x6c0] sm:$0xff]
        %v2927 = vld [vmem:[#allocation8 + $0x6c8] sm:$0xff]
        %v2928 = vld [vmem:[#allocation8 + $0x6d0] sm:$0xff]
        %v2929 = vld [vmem:[#allocation8 + $0x6d8] sm:$0xff]
        %v2930 = vld [vmem:[#allocation8 + $0x6e0] sm:$0xff]
        %v2931 = vld [vmem:[#allocation8 + $0x6e8] sm:$0xff]
        %v2932 = vld [vmem:[#allocation8 + $0x6f0] sm:$0xff]
        %v2933 = vld [vmem:[#allocation8 + $0x6f8] sm:$0xff]
        %v2934 = vld [vmem:[#allocation8 + $0x700] sm:$0xff]
        %v2935 = vld [vmem:[#allocation8 + $0x708] sm:$0xff]
        %v2936 = vld [vmem:[#allocation8 + $0x710] sm:$0xff]
        %v2937 = vld [vmem:[#allocation8 + $0x718] sm:$0xff]
        %v2938 = vld [vmem:[#allocation8 + $0x720] sm:$0xff]
        %v2939 = vld [vmem:[#allocation8 + $0x728] sm:$0xff]
        %v2940 = vld [vmem:[#allocation8 + $0x730] sm:$0xff]
        %v2941 = vld [vmem:[#allocation8 + $0x738] sm:$0xff]
        %v2942 = vld [vmem:[#allocation8 + $0x740] sm:$0xff]
        %v2943 = vld [vmem:[#allocation8 + $0x748] sm:$0xff]
        %v2944 = vld [vmem:[#allocation8 + $0x750] sm:$0xff]
        %v2945 = vld [vmem:[#allocation8 + $0x758] sm:$0xff]
        %v2946 = vld [vmem:[#allocation8 + $0x760] sm:$0xff]
        %v2947 = vld [vmem:[#allocation8 + $0x768] sm:$0xff]
        %v2948 = vld [vmem:[#allocation8 + $0x770] sm:$0xff]
        %v2949 = vld [vmem:[#allocation8 + $0x778] sm:$0xff]
        %v2950 = vld [vmem:[#allocation8 + $0x780] sm:$0xff]
        %v2951 = vld [vmem:[#allocation8 + $0x788] sm:$0xff]
        %v2952 = vld [vmem:[#allocation8 + $0x790] sm:$0xff]
        %v2953 = vld [vmem:[#allocation8 + $0x798] sm:$0xff]
        %v2954 = vld [vmem:[#allocation8 + $0x7a0] sm:$0xff]
        %v2955 = vld [vmem:[#allocation8 + $0x7a8] sm:$0xff]
        %v2956 = vld [vmem:[#allocation8 + $0x7b0] sm:$0x7f]
        %v2957 = vld [vmem:[#allocation8 + $0x7b8] sm:$0x7f]
        %v2959 = vsel %vm915, %v2709, 0
        %vm2961 = vcmask 1046528
        %v2963 = vsel %vm2961, %v2956, 0
        %v2966 = vsel %vm2961, %v2957, 0
        %2968 = vmatpush.msra.mxu0 %v2740
        %2969 = vmatpush.msra.mxu0 %v2738
        %2970 = vmatpush.msra.mxu0 %v2736
        %2971 = vmatpush.msra.mxu0 %v2734
        %2972 = vmatpush.msra.mxu0 %v2732
        %2973 = vmatpush.msra.mxu0 %v2730
        %2974 = vmatpush.msra.mxu0 %v2728
        %2975 = vmatpush.msra.mxu0 %v2726
        %2976 = vmatpush.msra.mxu0 %v2724
        %2977 = vmatpush.msra.mxu0 %v2722
        %2978 = vmatpush.msra.mxu0 %v2720
        %2979 = vmatpush.msra.mxu0 %v2718
        %2980 = vmatpush.msra.mxu0 %v2716
        %2981 = vmatpush.msra.mxu0 %v2714
        %2982 = vmatpush.msra.mxu0 %v2712
        %2983 = vmatpush.msra.mxu0 %v2710
        %2984 = vmatmul.f32.gmra.mxu0 %v2702
        %v2985 = vpop.f32.mrf.mxu0
        %v2986 = vadd.f32 0.0, %v2985
        %2987 = vdwg.mxu0
        %2988 = vmatpush.msra.mxu0 %v2772
        %2989 = vmatpush.msra.mxu0 %v2770
        %2990 = vmatpush.msra.mxu0 %v2768
        %2991 = vmatpush.msra.mxu0 %v2766
        %2992 = vmatpush.msra.mxu0 %v2764
        %2993 = vmatpush.msra.mxu0 %v2762
        %2994 = vmatpush.msra.mxu0 %v2760
        %2995 = vmatpush.msra.mxu0 %v2758
        %2996 = vmatpush.msra.mxu0 %v2756
        %2997 = vmatpush.msra.mxu0 %v2754
        %2998 = vmatpush.msra.mxu0 %v2752
        %2999 = vmatpush.msra.mxu0 %v2750
        %3000 = vmatpush.msra.mxu0 %v2748
        %3001 = vmatpush.msra.mxu0 %v2746
        %3002 = vmatpush.msra.mxu0 %v2744
        %3003 = vmatpush.msra.mxu0 %v2742
        %3004 = vmatmul.f32.gmra.mxu0 %v2703
        %v3005 = vpop.f32.mrf.mxu0
        %v3006 = vadd.f32 %v2986, %v3005
        %3007 = vdwg.mxu0
        %3008 = vmatpush.msra.mxu0 %v2804
        %3009 = vmatpush.msra.mxu0 %v2802
        %3010 = vmatpush.msra.mxu0 %v2800
        %3011 = vmatpush.msra.mxu0 %v2798
        %3012 = vmatpush.msra.mxu0 %v2796
        %3013 = vmatpush.msra.mxu0 %v2794
        %3014 = vmatpush.msra.mxu0 %v2792
        %3015 = vmatpush.msra.mxu0 %v2790
        %3016 = vmatpush.msra.mxu0 %v2788
        %3017 = vmatpush.msra.mxu0 %v2786
        %3018 = vmatpush.msra.mxu0 %v2784
        %3019 = vmatpush.msra.mxu0 %v2782
        %3020 = vmatpush.msra.mxu0 %v2780
        %3021 = vmatpush.msra.mxu0 %v2778
        %3022 = vmatpush.msra.mxu0 %v2776
        %3023 = vmatpush.msra.mxu0 %v2774
        %3024 = vmatmul.f32.gmra.mxu0 %v2704
        %v3025 = vpop.f32.mrf.mxu0
        %v3026 = vadd.f32 %v3006, %v3025
        %3027 = vdwg.mxu0
        %3028 = vmatpush.msra.mxu0 %v2836
        %3029 = vmatpush.msra.mxu0 %v2834
        %3030 = vmatpush.msra.mxu0 %v2832
        %3031 = vmatpush.msra.mxu0 %v2830
        %3032 = vmatpush.msra.mxu0 %v2828
        %3033 = vmatpush.msra.mxu0 %v2826
        %3034 = vmatpush.msra.mxu0 %v2824
        %3035 = vmatpush.msra.mxu0 %v2822
        %3036 = vmatpush.msra.mxu0 %v2820
        %3037 = vmatpush.msra.mxu0 %v2818
        %3038 = vmatpush.msra.mxu0 %v2816
        %3039 = vmatpush.msra.mxu0 %v2814
        %3040 = vmatpush.msra.mxu0 %v2812
        %3041 = vmatpush.msra.mxu0 %v2810
        %3042 = vmatpush.msra.mxu0 %v2808
        %3043 = vmatpush.msra.mxu0 %v2806
        %3044 = vmatmul.f32.gmra.mxu0 %v2705
        %v3045 = vpop.f32.mrf.mxu0
        %v3046 = vadd.f32 %v3026, %v3045
        %3047 = vdwg.mxu0
        %3048 = vmatpush.msra.mxu0 %v2868
        %3049 = vmatpush.msra.mxu0 %v2866
        %3050 = vmatpush.msra.mxu0 %v2864
        %3051 = vmatpush.msra.mxu0 %v2862
        %3052 = vmatpush.msra.mxu0 %v2860
        %3053 = vmatpush.msra.mxu0 %v2858
        %3054 = vmatpush.msra.mxu0 %v2856
        %3055 = vmatpush.msra.mxu0 %v2854
        %3056 = vmatpush.msra.mxu0 %v2852
        %3057 = vmatpush.msra.mxu0 %v2850
        %3058 = vmatpush.msra.mxu0 %v2848
        %3059 = vmatpush.msra.mxu0 %v2846
        %3060 = vmatpush.msra.mxu0 %v2844
        %3061 = vmatpush.msra.mxu0 %v2842
        %3062 = vmatpush.msra.mxu0 %v2840
        %3063 = vmatpush.msra.mxu0 %v2838
        %3064 = vmatmul.f32.gmra.mxu0 %v2706
        %v3065 = vpop.f32.mrf.mxu0
        %v3066 = vadd.f32 %v3046, %v3065
        %3067 = vdwg.mxu0
        %3068 = vmatpush.msra.mxu0 %v2900
        %3069 = vmatpush.msra.mxu0 %v2898
        %3070 = vmatpush.msra.mxu0 %v2896
        %3071 = vmatpush.msra.mxu0 %v2894
        %3072 = vmatpush.msra.mxu0 %v2892
        %3073 = vmatpush.msra.mxu0 %v2890
        %3074 = vmatpush.msra.mxu0 %v2888
        %3075 = vmatpush.msra.mxu0 %v2886
        %3076 = vmatpush.msra.mxu0 %v2884
        %3077 = vmatpush.msra.mxu0 %v2882
        %3078 = vmatpush.msra.mxu0 %v2880
        %3079 = vmatpush.msra.mxu0 %v2878
        %3080 = vmatpush.msra.mxu0 %v2876
        %3081 = vmatpush.msra.mxu0 %v2874
        %3082 = vmatpush.msra.mxu0 %v2872
        %3083 = vmatpush.msra.mxu0 %v2870
        %3084 = vmatmul.f32.gmra.mxu0 %v2707
        %v3085 = vpop.f32.mrf.mxu0
        %v3086 = vadd.f32 %v3066, %v3085
        %3087 = vdwg.mxu0
        %3088 = vmatpush.msra.mxu0 %v2932
        %3089 = vmatpush.msra.mxu0 %v2930
        %3090 = vmatpush.msra.mxu0 %v2928
        %3091 = vmatpush.msra.mxu0 %v2926
        %3092 = vmatpush.msra.mxu0 %v2924
        %3093 = vmatpush.msra.mxu0 %v2922
        %3094 = vmatpush.msra.mxu0 %v2920
        %3095 = vmatpush.msra.mxu0 %v2918
        %3096 = vmatpush.msra.mxu0 %v2916
        %3097 = vmatpush.msra.mxu0 %v2914
        %3098 = vmatpush.msra.mxu0 %v2912
        %3099 = vmatpush.msra.mxu0 %v2910
        %3100 = vmatpush.msra.mxu0 %v2908
        %3101 = vmatpush.msra.mxu0 %v2906
        %3102 = vmatpush.msra.mxu0 %v2904
        %3103 = vmatpush.msra.mxu0 %v2902
        %3104 = vmatmul.f32.gmra.mxu0 %v2708
        %v3105 = vpop.f32.mrf.mxu0
        %v3106 = vadd.f32 %v3086, %v3105
        %3107 = vdwg.mxu0
        %3108 = vmatpush.msra.mxu0 0.0
        %3109 = vmatpush.msra.mxu0 0.0
        %3110 = vmatpush.msra.mxu0 0.0
        %3111 = vmatpush.msra.mxu0 0.0
        %3112 = vmatpush.msra.mxu0 %v2963
        %3113 = vmatpush.msra.mxu0 %v2954
        %3114 = vmatpush.msra.mxu0 %v2952
        %3115 = vmatpush.msra.mxu0 %v2950
        %3116 = vmatpush.msra.mxu0 %v2948
        %3117 = vmatpush.msra.mxu0 %v2946
        %3118 = vmatpush.msra.mxu0 %v2944
        %3119 = vmatpush.msra.mxu0 %v2942
        %3120 = vmatpush.msra.mxu0 %v2940
        %3121 = vmatpush.msra.mxu0 %v2938
        %3122 = vmatpush.msra.mxu0 %v2936
        %3123 = vmatpush.msra.mxu0 %v2934
        %3124 = vmatmul.f32.gmra.mxu0 %v2959
        %v3125 = vpop.f32.mrf.mxu0
        %v3126 = vadd.f32 %v3106, %v3125
        %3127 = vdwg.mxu0
        %3128 = vmatpush.msra.mxu0 %v2741
        %3129 = vmatpush.msra.mxu0 %v2739
        %3130 = vmatpush.msra.mxu0 %v2737
        %3131 = vmatpush.msra.mxu0 %v2735
        %3132 = vmatpush.msra.mxu0 %v2733
        %3133 = vmatpush.msra.mxu0 %v2731
        %3134 = vmatpush.msra.mxu0 %v2729
        %3135 = vmatpush.msra.mxu0 %v2727
        %3136 = vmatpush.msra.mxu0 %v2725
        %3137 = vmatpush.msra.mxu0 %v2723
        %3138 = vmatpush.msra.mxu0 %v2721
        %3139 = vmatpush.msra.mxu0 %v2719
        %3140 = vmatpush.msra.mxu0 %v2717
        %3141 = vmatpush.msra.mxu0 %v2715
        %3142 = vmatpush.msra.mxu0 %v2713
        %3143 = vmatpush.msra.mxu0 %v2711
        %3144 = vmatmul.f32.gmra.mxu0 %v2702
        %v3145 = vpop.f32.mrf.mxu0
        %v3146 = vadd.f32 0.0, %v3145
        %3147 = vdwg.mxu0
        %3148 = vmatpush.msra.mxu0 %v2773
        %3149 = vmatpush.msra.mxu0 %v2771
        %3150 = vmatpush.msra.mxu0 %v2769
        %3151 = vmatpush.msra.mxu0 %v2767
        %3152 = vmatpush.msra.mxu0 %v2765
        %3153 = vmatpush.msra.mxu0 %v2763
        %3154 = vmatpush.msra.mxu0 %v2761
        %3155 = vmatpush.msra.mxu0 %v2759
        %3156 = vmatpush.msra.mxu0 %v2757
        %3157 = vmatpush.msra.mxu0 %v2755
        %3158 = vmatpush.msra.mxu0 %v2753
        %3159 = vmatpush.msra.mxu0 %v2751
        %3160 = vmatpush.msra.mxu0 %v2749
        %3161 = vmatpush.msra.mxu0 %v2747
        %3162 = vmatpush.msra.mxu0 %v2745
        %3163 = vmatpush.msra.mxu0 %v2743
        %3164 = vmatmul.f32.gmra.mxu0 %v2703
        %v3165 = vpop.f32.mrf.mxu0
        %v3166 = vadd.f32 %v3146, %v3165
        %3167 = vdwg.mxu0
        %3168 = vmatpush.msra.mxu0 %v2805
        %3169 = vmatpush.msra.mxu0 %v2803
        %3170 = vmatpush.msra.mxu0 %v2801
        %3171 = vmatpush.msra.mxu0 %v2799
        %3172 = vmatpush.msra.mxu0 %v2797
        %3173 = vmatpush.msra.mxu0 %v2795
        %3174 = vmatpush.msra.mxu0 %v2793
        %3175 = vmatpush.msra.mxu0 %v2791
        %3176 = vmatpush.msra.mxu0 %v2789
        %3177 = vmatpush.msra.mxu0 %v2787
        %3178 = vmatpush.msra.mxu0 %v2785
        %3179 = vmatpush.msra.mxu0 %v2783
        %3180 = vmatpush.msra.mxu0 %v2781
        %3181 = vmatpush.msra.mxu0 %v2779
        %3182 = vmatpush.msra.mxu0 %v2777
        %3183 = vmatpush.msra.mxu0 %v2775
        %3184 = vmatmul.f32.gmra.mxu0 %v2704
        %v3185 = vpop.f32.mrf.mxu0
        %v3186 = vadd.f32 %v3166, %v3185
        %3187 = vdwg.mxu0
        %3188 = vmatpush.msra.mxu0 %v2837
        %3189 = vmatpush.msra.mxu0 %v2835
        %3190 = vmatpush.msra.mxu0 %v2833
        %3191 = vmatpush.msra.mxu0 %v2831
        %3192 = vmatpush.msra.mxu0 %v2829
        %3193 = vmatpush.msra.mxu0 %v2827
        %3194 = vmatpush.msra.mxu0 %v2825
        %3195 = vmatpush.msra.mxu0 %v2823
        %3196 = vmatpush.msra.mxu0 %v2821
        %3197 = vmatpush.msra.mxu0 %v2819
        %3198 = vmatpush.msra.mxu0 %v2817
        %3199 = vmatpush.msra.mxu0 %v2815
        %3200 = vmatpush.msra.mxu0 %v2813
        %3201 = vmatpush.msra.mxu0 %v2811
        %3202 = vmatpush.msra.mxu0 %v2809
        %3203 = vmatpush.msra.mxu0 %v2807
        %3204 = vmatmul.f32.gmra.mxu0 %v2705
        %v3205 = vpop.f32.mrf.mxu0
        %v3206 = vadd.f32 %v3186, %v3205
        %3207 = vdwg.mxu0
        %3208 = vmatpush.msra.mxu0 %v2869
        %3209 = vmatpush.msra.mxu0 %v2867
        %3210 = vmatpush.msra.mxu0 %v2865
        %3211 = vmatpush.msra.mxu0 %v2863
        %3212 = vmatpush.msra.mxu0 %v2861
        %3213 = vmatpush.msra.mxu0 %v2859
        %3214 = vmatpush.msra.mxu0 %v2857
        %3215 = vmatpush.msra.mxu0 %v2855
        %3216 = vmatpush.msra.mxu0 %v2853
        %3217 = vmatpush.msra.mxu0 %v2851
        %3218 = vmatpush.msra.mxu0 %v2849
        %3219 = vmatpush.msra.mxu0 %v2847
        %3220 = vmatpush.msra.mxu0 %v2845
        %3221 = vmatpush.msra.mxu0 %v2843
        %3222 = vmatpush.msra.mxu0 %v2841
        %3223 = vmatpush.msra.mxu0 %v2839
        %3224 = vmatmul.f32.gmra.mxu0 %v2706
        %v3225 = vpop.f32.mrf.mxu0
        %v3226 = vadd.f32 %v3206, %v3225
        %3227 = vdwg.mxu0
        %3228 = vmatpush.msra.mxu0 %v2901
        %3229 = vmatpush.msra.mxu0 %v2899
        %3230 = vmatpush.msra.mxu0 %v2897
        %3231 = vmatpush.msra.mxu0 %v2895
        %3232 = vmatpush.msra.mxu0 %v2893
        %3233 = vmatpush.msra.mxu0 %v2891
        %3234 = vmatpush.msra.mxu0 %v2889
        %3235 = vmatpush.msra.mxu0 %v2887
        %3236 = vmatpush.msra.mxu0 %v2885
        %3237 = vmatpush.msra.mxu0 %v2883
        %3238 = vmatpush.msra.mxu0 %v2881
        %3239 = vmatpush.msra.mxu0 %v2879
        %3240 = vmatpush.msra.mxu0 %v2877
        %3241 = vmatpush.msra.mxu0 %v2875
        %3242 = vmatpush.msra.mxu0 %v2873
        %3243 = vmatpush.msra.mxu0 %v2871
        %3244 = vmatmul.f32.gmra.mxu0 %v2707
        %v3245 = vpop.f32.mrf.mxu0
        %v3246 = vadd.f32 %v3226, %v3245
        %3247 = vdwg.mxu0
        %3248 = vmatpush.msra.mxu0 %v2933
        %3249 = vmatpush.msra.mxu0 %v2931
        %3250 = vmatpush.msra.mxu0 %v2929
        %3251 = vmatpush.msra.mxu0 %v2927
        %3252 = vmatpush.msra.mxu0 %v2925
        %3253 = vmatpush.msra.mxu0 %v2923
        %3254 = vmatpush.msra.mxu0 %v2921
        %3255 = vmatpush.msra.mxu0 %v2919
        %3256 = vmatpush.msra.mxu0 %v2917
        %3257 = vmatpush.msra.mxu0 %v2915
        %3258 = vmatpush.msra.mxu0 %v2913
        %3259 = vmatpush.msra.mxu0 %v2911
        %3260 = vmatpush.msra.mxu0 %v2909
        %3261 = vmatpush.msra.mxu0 %v2907
        %3262 = vmatpush.msra.mxu0 %v2905
        %3263 = vmatpush.msra.mxu0 %v2903
        %3264 = vmatmul.f32.gmra.mxu0 %v2708
        %v3265 = vpop.f32.mrf.mxu0
        %v3266 = vadd.f32 %v3246, %v3265
        %3267 = vdwg.mxu0
        %3268 = vmatpush.msra.mxu0 0.0
        %3269 = vmatpush.msra.mxu0 0.0
        %3270 = vmatpush.msra.mxu0 0.0
        %3271 = vmatpush.msra.mxu0 0.0
        %3272 = vmatpush.msra.mxu0 %v2966
        %3273 = vmatpush.msra.mxu0 %v2955
        %3274 = vmatpush.msra.mxu0 %v2953
        %3275 = vmatpush.msra.mxu0 %v2951
        %3276 = vmatpush.msra.mxu0 %v2949
        %3277 = vmatpush.msra.mxu0 %v2947
        %3278 = vmatpush.msra.mxu0 %v2945
        %3279 = vmatpush.msra.mxu0 %v2943
        %3280 = vmatpush.msra.mxu0 %v2941
        %3281 = vmatpush.msra.mxu0 %v2939
        %3282 = vmatpush.msra.mxu0 %v2937
        %3283 = vmatpush.msra.mxu0 %v2935
        %3284 = vmatmul.f32.gmra.mxu0 %v2959
        %v3285 = vpop.f32.mrf.mxu0
        %v3286 = vadd.f32 %v3266, %v3285
        %3287 = vdwg.mxu0
        %3288 = vst [vmem:[#allocation5] sm:$0x3f] %v3126
        %3289 = vst [vmem:[#allocation5 + $0x8] sm:$0x3f] %v3286
        %v3290 = vld [vmem:[#allocation5] sm:$0x3f]
        %v3291 = vld [vmem:[#allocation5 + $0x8] sm:$0x3f]
        %3292 = vst [vmem:[#allocation3] sm:$0x3f] %v3290
        %vm3293 = vcmask 553984
        %3294 = vst.msk [vmem:[#allocation3 + $0x8] sm:$0x3f] %vm3293, %v3291
        %v3295 = vld [vmem:[#allocation5] sm:$0x3f]
        %v3296 = vld [vmem:[#allocation5 + $0x8] sm:$0x3f]
        %v3299 = vrot.slane %v3295, 2
        %v3300 = vrot.slane %v3296, 2
        %3301 = vrot.lane.b32.xlu0 %v3299, 127
        %v3302 = vpop.permute.xlu0 %3301
        %3303 = vrot.lane.b32.xlu0 %v3300, 127
        %v3304 = vpop.permute.xlu0 %3303
        %v3305 = vsel %vm512, %v3302, %v3304
        %3308 = vst [vmem:[#allocation3] sm:$0xc0] %v3305
        %vm3309 = vcmask 556038
        %3310 = vst.msk [vmem:[#allocation3 + $0x8] sm:$0xc0] %vm3309, %v3304
        %3311 = vst [vmem:[#allocation3 + $0x10] sm:$0xf] %v3305
        %vm3312 = vcmask 551936
        %3313 = vst.msk [vmem:[#allocation3 + $0x18] sm:$0xf] %vm3312, %v3304
        %v3314 = vld [vmem:[#allocation5] sm:$0x3f]
        %v3315 = vld [vmem:[#allocation5 + $0x8] sm:$0x3f]
        %v3318 = vrot.slane %v3314, 4
        %v3319 = vrot.slane %v3315, 4
        %3320 = vrot.lane.b32.xlu0 %v3318, 126
        %v3321 = vpop.permute.xlu0 %3320
        %3322 = vrot.lane.b32.xlu0 %v3319, 126
        %v3323 = vpop.permute.xlu0 %3322
        %v3324 = vsel %vm591, %v3321, %v3323
        %3327 = vst [vmem:[#allocation3 + $0x10] sm:$0xf0] %v3324
        %vm3328 = vcmask 556036
        %3329 = vst.msk [vmem:[#allocation3 + $0x18] sm:$0xf0] %vm3328, %v3323
        %3330 = vst [vmem:[#allocation3 + $0x20] sm:$0x3] %v3324
        %vm3331 = vcmask 549888
        %3332 = vst.msk [vmem:[#allocation3 + $0x28] sm:$0x3] %vm3331, %v3323
        %v3333 = vld [vmem:[#allocation5] sm:$0x3f]
        %v3334 = vld [vmem:[#allocation5 + $0x8] sm:$0x3f]
        %v3337 = vrot.slane %v3333, 6
        %v3338 = vrot.slane %v3334, 6
        %3339 = vrot.lane.b32.xlu0 %v3337, 125
        %v3340 = vpop.permute.xlu0 %3339
        %3341 = vrot.lane.b32.xlu0 %v3338, 125
        %v3342 = vpop.permute.xlu0 %3341
        %v3343 = vsel %vm678, %v3340, %v3342
        %3346 = vst [vmem:[#allocation3 + $0x20] sm:$0xfc] %v3343
        %vm3347 = vcmask 556034
        %3348 = vst.msk [vmem:[#allocation3 + $0x28] sm:$0xfc] %vm3347, %v3342
        %v3349 = vld [vmem:[#allocation5] sm:$0x3f]
        %v3350 = vld [vmem:[#allocation5 + $0x8] sm:$0x3f]
        %3353 = vrot.lane.b32.xlu0 %v3349, 124
        %v3354 = vpop.permute.xlu0 %3353
        %3355 = vrot.lane.b32.xlu0 %v3350, 124
        %v3356 = vpop.permute.xlu0 %3355
        %v3357 = vsel %vm749, %v3354, %v3356
        %3360 = vst [vmem:[#allocation3 + $0x30] sm:$0x3f] %v3357
        %3361 = vst.msk [vmem:[#allocation3 + $0x38] sm:$0x3f] %vm3293, %v3356
        %v3362 = vld [vmem:[#allocation5] sm:$0x3f]
        %v3363 = vld [vmem:[#allocation5 + $0x8] sm:$0x3f]
        %v3366 = vrot.slane %v3362, 2
        %v3367 = vrot.slane %v3363, 2
        %3368 = vrot.lane.b32.xlu0 %v3366, 114
        %v3369 = vpop.permute.xlu0 %3368
        %3370 = vrot.lane.b32.xlu0 %v3367, 114
        %v3371 = vpop.permute.xlu0 %3370
        %vm3372 = vcmask 932864
        %v3373 = vsel %vm3372, %v3369, %v3371
        %3376 = vst [vmem:[#allocation3 + $0x30] sm:$0xc0] %v3373
        %3377 = vst.msk [vmem:[#allocation3 + $0x38] sm:$0xc0] %vm3309, %v3371
        %3378 = vst [vmem:[#allocation3 + $0x40] sm:$0xf] %v3373
        %3379 = vst.msk [vmem:[#allocation3 + $0x48] sm:$0xf] %vm3312, %v3371
        %v3380 = vld [vmem:[#allocation5] sm:$0x3f]
        %v3381 = vld [vmem:[#allocation5 + $0x8] sm:$0x3f]
        %v3384 = vrot.slane %v3380, 4
        %v3385 = vrot.slane %v3381, 4
        %3386 = vrot.lane.b32.xlu0 %v3384, 113
        %v3387 = vpop.permute.xlu0 %3386
        %3388 = vrot.lane.b32.xlu0 %v3385, 113
        %v3389 = vpop.permute.xlu0 %3388
        %vm3390 = vcmask 924672
        %v3391 = vsel %vm3390, %v3387, %v3389
        %3394 = vst [vmem:[#allocation3 + $0x40] sm:$0xf0] %v3391
        %3395 = vst.msk [vmem:[#allocation3 + $0x48] sm:$0xf0] %vm3328, %v3389
        %3396 = vst [vmem:[#allocation3 + $0x50] sm:$0x3] %v3391
        %3397 = vst.msk [vmem:[#allocation3 + $0x58] sm:$0x3] %vm3331, %v3389
        %v3398 = vld [vmem:[#allocation5] sm:$0x3f]
        %v3399 = vld [vmem:[#allocation5 + $0x8] sm:$0x3f]
        %v3402 = vrot.slane %v3398, 6
        %v3403 = vrot.slane %v3399, 6
        %3404 = vrot.lane.b32.xlu0 %v3402, 112
        %v3405 = vpop.permute.xlu0 %3404
        %3406 = vrot.lane.b32.xlu0 %v3403, 112
        %v3407 = vpop.permute.xlu0 %3406
        %vm3408 = vcmask 916480
        %v3409 = vsel %vm3408, %v3405, %v3407
        %3412 = vst [vmem:[#allocation3 + $0x50] sm:$0xfc] %v3409
        %3413 = vst.msk [vmem:[#allocation3 + $0x58] sm:$0xfc] %vm3347, %v3407
        %v3414 = vld [vmem:[#allocation5] sm:$0x3f]
        %v3415 = vld [vmem:[#allocation5 + $0x8] sm:$0x3f]
        %3418 = vrot.lane.b32.xlu0 %v3414, 111
        %v3419 = vpop.permute.xlu0 %3418
        %3420 = vrot.lane.b32.xlu0 %v3415, 111
        %v3421 = vpop.permute.xlu0 %3420
        %vm3422 = vcmask 908288
        %v3423 = vsel %vm3422, %v3419, %v3421
        %3426 = vst [vmem:[#allocation3 + $0x60] sm:$0x3f] %v3423
        %3427 = vst.msk [vmem:[#allocation3 + $0x68] sm:$0x3f] %vm3293, %v3421
        %v3428 = vld [vmem:[#allocation5] sm:$0x3f]
        %v3429 = vld [vmem:[#allocation5 + $0x8] sm:$0x3f]
        %v3432 = vrot.slane %v3428, 2
        %v3433 = vrot.slane %v3429, 2
        %3434 = vrot.lane.b32.xlu0 %v3432, 110
        %v3435 = vpop.permute.xlu0 %3434
        %3436 = vrot.lane.b32.xlu0 %v3433, 110
        %v3437 = vpop.permute.xlu0 %3436
        %vm3438 = vcmask 900096
        %v3439 = vsel %vm3438, %v3435, %v3437
        %3442 = vst [vmem:[#allocation3 + $0x60] sm:$0xc0] %v3439
        %3443 = vst.msk [vmem:[#allocation3 + $0x68] sm:$0xc0] %vm3309, %v3437
        %3444 = vst [vmem:[#allocation3 + $0x70] sm:$0xf] %v3439
        %3445 = vst.msk [vmem:[#allocation3 + $0x78] sm:$0xf] %vm3312, %v3437
        %v3446 = vld [vmem:[#allocation5] sm:$0x3f]
        %v3447 = vld [vmem:[#allocation5 + $0x8] sm:$0x3f]
        %v3450 = vrot.slane %v3446, 4
        %v3451 = vrot.slane %v3447, 4
        %3452 = vrot.lane.b32.xlu0 %v3450, 100
        %v3453 = vpop.permute.xlu0 %3452
        %3454 = vrot.lane.b32.xlu0 %v3451, 100
        %v3455 = vpop.permute.xlu0 %3454
        %vm3456 = vcmask 818176
        %v3457 = vsel %vm3456, %v3453, %v3455
        %3460 = vst [vmem:[#allocation3 + $0x70] sm:$0xf0] %v3457
        %3461 = vst.msk [vmem:[#allocation3 + $0x78] sm:$0xf0] %vm3328, %v3455
        %3462 = vst [vmem:[#allocation3 + $0x80] sm:$0x3] %v3457
        %3463 = vst.msk [vmem:[#allocation3 + $0x88] sm:$0x3] %vm3331, %v3455
        %v3464 = vld [vmem:[#allocation5] sm:$0x3f]
        %v3465 = vld [vmem:[#allocation5 + $0x8] sm:$0x3f]
        %v3468 = vrot.slane %v3464, 6
        %v3469 = vrot.slane %v3465, 6
        %3470 = vrot.lane.b32.xlu0 %v3468, 99
        %v3471 = vpop.permute.xlu0 %3470
        %3472 = vrot.lane.b32.xlu0 %v3469, 99
        %v3473 = vpop.permute.xlu0 %3472
        %vm3474 = vcmask 809984
        %v3475 = vsel %vm3474, %v3471, %v3473
        %3478 = vst [vmem:[#allocation3 + $0x80] sm:$0xfc] %v3475
        %3479 = vst.msk [vmem:[#allocation3 + $0x88] sm:$0xfc] %vm3347, %v3473
        %v3480 = vld [vmem:[#allocation5] sm:$0x3f]
        %v3481 = vld [vmem:[#allocation5 + $0x8] sm:$0x3f]
        %3484 = vrot.lane.b32.xlu0 %v3480, 98
        %v3485 = vpop.permute.xlu0 %3484
        %3486 = vrot.lane.b32.xlu0 %v3481, 98
        %v3487 = vpop.permute.xlu0 %3486
        %vm3488 = vcmask 801792
        %v3489 = vsel %vm3488, %v3485, %v3487
        %3492 = vst [vmem:[#allocation3 + $0x90] sm:$0x3f] %v3489
        %3493 = vst.msk [vmem:[#allocation3 + $0x98] sm:$0x3f] %vm3293, %v3487
        %v3494 = vld [vmem:[#allocation5] sm:$0x3f]
        %v3495 = vld [vmem:[#allocation5 + $0x8] sm:$0x3f]
        %v3498 = vrot.slane %v3494, 2
        %v3499 = vrot.slane %v3495, 2
        %3500 = vrot.lane.b32.xlu0 %v3498, 97
        %v3501 = vpop.permute.xlu0 %3500
        %3502 = vrot.lane.b32.xlu0 %v3499, 97
        %v3503 = vpop.permute.xlu0 %3502
        %vm3504 = vcmask 793600
        %v3505 = vsel %vm3504, %v3501, %v3503
        %3508 = vst [vmem:[#allocation3 + $0x90] sm:$0xc0] %v3505
        %3509 = vst.msk [vmem:[#allocation3 + $0x98] sm:$0xc0] %vm3309, %v3503
        %3510 = vst [vmem:[#allocation3 + $0xa0] sm:$0xf] %v3505
        %3511 = vst.msk [vmem:[#allocation3 + $0xa8] sm:$0xf] %vm3312, %v3503
        %v3512 = vld [vmem:[#allocation5] sm:$0x3f]
        %v3513 = vld [vmem:[#allocation5 + $0x8] sm:$0x3f]
        %v3516 = vrot.slane %v3512, 4
        %v3517 = vrot.slane %v3513, 4
        %3518 = vrot.lane.b32.xlu0 %v3516, 96
        %v3519 = vpop.permute.xlu0 %3518
        %3520 = vrot.lane.b32.xlu0 %v3517, 96
        %v3521 = vpop.permute.xlu0 %3520
        %v3522 = vsel %vm828, %v3519, %v3521
        %3525 = vst [vmem:[#allocation3 + $0xa0] sm:$0xf0] %v3522
        %3526 = vst.msk [vmem:[#allocation3 + $0xa8] sm:$0xf0] %vm3328, %v3521
        %3527 = vst [vmem:[#allocation3 + $0xb0] sm:$0x3] %v3522
        %3528 = vst.msk [vmem:[#allocation3 + $0xb8] sm:$0x3] %vm3331, %v3521
        %v3529 = vld [vmem:[#allocation5] sm:$0x3f]
        %v3530 = vld [vmem:[#allocation5 + $0x8] sm:$0x3f]
        %v3533 = vrot.slane %v3529, 6
        %v3534 = vrot.slane %v3530, 6
        %3535 = vrot.lane.b32.xlu0 %v3533, 86
        %v3536 = vpop.permute.xlu0 %3535
        %3537 = vrot.lane.b32.xlu0 %v3534, 86
        %v3538 = vpop.permute.xlu0 %3537
        %vm3539 = vcmask 703488
        %v3540 = vsel %vm3539, %v3536, %v3538
        %3543 = vst [vmem:[#allocation3 + $0xb0] sm:$0xfc] %v3540
        %3544 = vst.msk [vmem:[#allocation3 + $0xb8] sm:$0xfc] %vm3347, %v3538
        %v3545 = vld [vmem:[#allocation5] sm:$0x3f]
        %v3546 = vld [vmem:[#allocation5 + $0x8] sm:$0x3f]
        %3549 = vrot.lane.b32.xlu0 %v3545, 85
        %v3550 = vpop.permute.xlu0 %3549
        %3551 = vrot.lane.b32.xlu0 %v3546, 85
        %v3552 = vpop.permute.xlu0 %3551
        %vm3553 = vcmask 695296
        %v3554 = vsel %vm3553, %v3550, %v3552
        %3557 = vst [vmem:[#allocation3 + $0xc0] sm:$0x3f] %v3554
        %3558 = vst.msk [vmem:[#allocation3 + $0xc8] sm:$0x3f] %vm3293, %v3552
        %v3559 = vld [vmem:[#allocation5] sm:$0x3f]
        %v3560 = vld [vmem:[#allocation5 + $0x8] sm:$0x3f]
        %v3563 = vrot.slane %v3559, 2
        %v3564 = vrot.slane %v3560, 2
        %3565 = vrot.lane.b32.xlu0 %v3563, 84
        %v3566 = vpop.permute.xlu0 %3565
        %3567 = vrot.lane.b32.xlu0 %v3564, 84
        %v3568 = vpop.permute.xlu0 %3567
        %vm3569 = vcmask 687104
        %v3570 = vsel %vm3569, %v3566, %v3568
        %3573 = vst [vmem:[#allocation3 + $0xc0] sm:$0xc0] %v3570
        %3574 = vst.msk [vmem:[#allocation3 + $0xc8] sm:$0xc0] %vm3309, %v3568
        %3575 = vst [vmem:[#allocation3 + $0xd0] sm:$0xf] %v3570
        %3576 = vst.msk [vmem:[#allocation3 + $0xd8] sm:$0xf] %vm3312, %v3568
        %v3577 = vld [vmem:[#allocation5] sm:$0x3f]
        %v3578 = vld [vmem:[#allocation5 + $0x8] sm:$0x3f]
        %v3581 = vrot.slane %v3577, 4
        %v3582 = vrot.slane %v3578, 4
        %3583 = vrot.lane.b32.xlu0 %v3581, 83
        %v3584 = vpop.permute.xlu0 %3583
        %3585 = vrot.lane.b32.xlu0 %v3582, 83
        %v3586 = vpop.permute.xlu0 %3585
        %vm3587 = vcmask 678912
        %v3588 = vsel %vm3587, %v3584, %v3586
        %3591 = vst [vmem:[#allocation3 + $0xd0] sm:$0xf0] %v3588
        %3592 = vst.msk [vmem:[#allocation3 + $0xd8] sm:$0xf0] %vm3328, %v3586
        %3593 = vst [vmem:[#allocation3 + $0xe0] sm:$0x3] %v3588
        %3594 = vst.msk [vmem:[#allocation3 + $0xe8] sm:$0x3] %vm3331, %v3586
        %v3595 = vld [vmem:[#allocation5] sm:$0x3f]
        %v3596 = vld [vmem:[#allocation5 + $0x8] sm:$0x3f]
        %v3599 = vrot.slane %v3595, 6
        %v3600 = vrot.slane %v3596, 6
        %3601 = vrot.lane.b32.xlu0 %v3599, 82
        %v3602 = vpop.permute.xlu0 %3601
        %3603 = vrot.lane.b32.xlu0 %v3600, 82
        %v3604 = vpop.permute.xlu0 %3603
        %vm3605 = vcmask 670720
        %v3606 = vsel %vm3605, %v3602, %v3604
        %3609 = vst [vmem:[#allocation3 + $0xe0] sm:$0xfc] %v3606
        %3610 = vst.msk [vmem:[#allocation3 + $0xe8] sm:$0xfc] %vm3347, %v3604
        %v3611 = vld [vmem:[#allocation5] sm:$0x3f]
        %v3612 = vld [vmem:[#allocation5 + $0x8] sm:$0x3f]
        %3615 = vrot.lane.b32.xlu0 %v3611, 72
        %v3616 = vpop.permute.xlu0 %3615
        %3617 = vrot.lane.b32.xlu0 %v3612, 72
        %v3618 = vpop.permute.xlu0 %3617
        %vm3619 = vcmask 588800
        %v3620 = vsel %vm3619, %v3616, %v3618
        %3623 = vst [vmem:[#allocation3 + $0xf0] sm:$0x3f] %v3620
        %3624 = vst.msk [vmem:[#allocation3 + $0xf8] sm:$0x3f] %vm3293, %v3618
        %v3625 = vld [vmem:[#allocation5] sm:$0x3f]
        %v3626 = vld [vmem:[#allocation5 + $0x8] sm:$0x3f]
        %v3629 = vrot.slane %v3625, 2
        %v3630 = vrot.slane %v3626, 2
        %3631 = vrot.lane.b32.xlu0 %v3629, 71
        %v3632 = vpop.permute.xlu0 %3631
        %3633 = vrot.lane.b32.xlu0 %v3630, 71
        %v3634 = vpop.permute.xlu0 %3633
        %vm3635 = vcmask 580608
        %v3636 = vsel %vm3635, %v3632, %v3634
        %3639 = vst [vmem:[#allocation3 + $0xf0] sm:$0xc0] %v3636
        %3640 = vst.msk [vmem:[#allocation3 + $0xf8] sm:$0xc0] %vm3309, %v3634
        %3641 = vst [vmem:[#allocation3 + $0x100] sm:$0xf] %v3636
        %3642 = vst.msk [vmem:[#allocation3 + $0x108] sm:$0xf] %vm3312, %v3634
        %v3643 = vld [vmem:[#allocation5] sm:$0x3f]
        %v3644 = vld [vmem:[#allocation5 + $0x8] sm:$0x3f]
        %v3647 = vrot.slane %v3643, 4
        %v3648 = vrot.slane %v3644, 4
        %3649 = vrot.lane.b32.xlu0 %v3647, 70
        %v3650 = vpop.permute.xlu0 %3649
        %3651 = vrot.lane.b32.xlu0 %v3648, 70
        %v3652 = vpop.permute.xlu0 %3651
        %vm3653 = vcmask 572416
        %v3654 = vsel %vm3653, %v3650, %v3652
        %3657 = vst [vmem:[#allocation3 + $0x100] sm:$0xf0] %v3654
        %3658 = vst.msk [vmem:[#allocation3 + $0x108] sm:$0xf0] %vm3328, %v3652
        %3659 = vst [vmem:[#allocation3 + $0x110] sm:$0x3] %v3654
        %3660 = vst.msk [vmem:[#allocation3 + $0x118] sm:$0x3] %vm3331, %v3652
        %v3661 = vld [vmem:[#allocation5] sm:$0x3f]
        %v3662 = vld [vmem:[#allocation5 + $0x8] sm:$0x3f]
        %v3665 = vrot.slane %v3661, 6
        %v3666 = vrot.slane %v3662, 6
        %3667 = vrot.lane.b32.xlu0 %v3665, 69
        %v3668 = vpop.permute.xlu0 %3667
        %3669 = vrot.lane.b32.xlu0 %v3666, 69
        %v3670 = vpop.permute.xlu0 %3669
        %vm3671 = vcmask 564224
        %v3672 = vsel %vm3671, %v3668, %v3670
        %3675 = vst [vmem:[#allocation3 + $0x110] sm:$0xfc] %v3672
        %3676 = vst.msk [vmem:[#allocation3 + $0x118] sm:$0xfc] %vm3347, %v3670
        %v3677 = vld [vmem:[#allocation5] sm:$0x3f]
        %v3678 = vld [vmem:[#allocation5 + $0x8] sm:$0x3f]
        %3681 = vrot.lane.b32.xlu0 %v3677, 68
        %v3682 = vpop.permute.xlu0 %3681
        %3683 = vrot.lane.b32.xlu0 %v3678, 68
        %v3684 = vpop.permute.xlu0 %3683
        %vm3685 = vcmask 556032
        %v3686 = vsel %vm3685, %v3682, %v3684
        %3689 = vst [vmem:[#allocation3 + $0x120] sm:$0x3f] %v3686
        %3690 = vst.msk [vmem:[#allocation3 + $0x128] sm:$0x3f] %vm3293, %v3684
        %v3691 = vld [vmem:[%s3] sm:$0xff]
        %v3692 = vld [vmem:[%s3 + $0x8] sm:$0xff]
        %v3693 = vld [vmem:[%s3 + $0x10] sm:$0xff]
        %v3694 = vld [vmem:[%s3 + $0x18] sm:$0xff]
        %v3695 = vld [vmem:[#allocation3] sm:$0xff]
        %v3696 = vld [vmem:[#allocation3 + $0x8] sm:$0xff]
        %v3697 = vld [vmem:[#allocation3 + $0x10] sm:$0xff]
        %v3698 = vld [vmem:[#allocation3 + $0x18] sm:$0xff]
        %v3699 = vld [vmem:[#allocation3 + $0x20] sm:$0xff]
        %v3700 = vld [vmem:[#allocation3 + $0x28] sm:$0xff]
        %v3701 = vld [vmem:[#allocation3 + $0x30] sm:$0xff]
        %v3702 = vld [vmem:[#allocation3 + $0x38] sm:$0xff]
        %v3703 = vld [vmem:[#allocation3 + $0x40] sm:$0xff]
        %v3704 = vld [vmem:[#allocation3 + $0x48] sm:$0xff]
        %v3705 = vld [vmem:[#allocation3 + $0x50] sm:$0xff]
        %v3706 = vld [vmem:[#allocation3 + $0x58] sm:$0xff]
        %v3707 = vld [vmem:[#allocation3 + $0x60] sm:$0xff]
        %v3708 = vld [vmem:[#allocation3 + $0x68] sm:$0xff]
        %v3709 = vld [vmem:[#allocation3 + $0x70] sm:$0xff]
        %v3710 = vld [vmem:[#allocation3 + $0x78] sm:$0xff]
        %v3711 = vld [vmem:[#allocation3 + $0x80] sm:$0xff]
        %v3712 = vld [vmem:[#allocation3 + $0x88] sm:$0xff]
        %v3713 = vld [vmem:[#allocation3 + $0x90] sm:$0xff]
        %v3714 = vld [vmem:[#allocation3 + $0x98] sm:$0xff]
        %v3715 = vld [vmem:[#allocation3 + $0xa0] sm:$0xff]
        %v3716 = vld [vmem:[#allocation3 + $0xa8] sm:$0xff]
        %v3717 = vld [vmem:[#allocation3 + $0xb0] sm:$0xff]
        %v3718 = vld [vmem:[#allocation3 + $0xb8] sm:$0xff]
        %v3719 = vld [vmem:[#allocation3 + $0xc0] sm:$0xff]
        %v3720 = vld [vmem:[#allocation3 + $0xc8] sm:$0xff]
        %v3721 = vld [vmem:[#allocation3 + $0xd0] sm:$0xff]
        %v3722 = vld [vmem:[#allocation3 + $0xd8] sm:$0xff]
        %v3723 = vld [vmem:[#allocation3 + $0xe0] sm:$0xff]
        %v3724 = vld [vmem:[#allocation3 + $0xe8] sm:$0xff]
        %v3725 = vld [vmem:[#allocation3 + $0xf0] sm:$0xff]
        %v3726 = vld [vmem:[#allocation3 + $0xf8] sm:$0xff]
        %v3727 = vld [vmem:[#allocation3 + $0x100] sm:$0xff]
        %v3728 = vld [vmem:[#allocation3 + $0x108] sm:$0xff]
        %v3729 = vld [vmem:[#allocation3 + $0x110] sm:$0xff]
        %v3730 = vld [vmem:[#allocation3 + $0x118] sm:$0xff]
        %v3731 = vld [vmem:[#allocation3 + $0x120] sm:$0x3f]
        %v3732 = vld [vmem:[#allocation3 + $0x128] sm:$0x3f]
        %v3733 = vld [vmem:[%s4] sm:$0xff]
        %v3734 = vld [vmem:[%s4 + $0x8] sm:$0xff]
        %3736 = vset.pattern.permute.xlu0 0
        %3737 = vperm.xlu0 %3736, %v3733
        %v3738 = vpop.permute.xlu0 %3737
        %3741 = vset.pattern.permute.xlu0 0
        %3742 = vperm.xlu0 %3741, %v3734
        %v3743 = vpop.permute.xlu0 %3742
        %vm3745 = vcmask 179200
        %v3747 = vsel %vm3745, %v3692, 0
        %v3750 = vsel %vm3745, %v3694, 0
        %vm3752 = vcmask 1045504
        %v3754 = vsel %vm3752, %v3731, 0
        %v3757 = vsel %vm3752, %v3732, 0
        %3759 = vmatpush.msra.mxu0 %v3725
        %3760 = vmatpush.msra.mxu0 %v3723
        %3761 = vmatpush.msra.mxu0 %v3721
        %3762 = vmatpush.msra.mxu0 %v3719
        %3763 = vmatpush.msra.mxu0 %v3717
        %3764 = vmatpush.msra.mxu0 %v3715
        %3765 = vmatpush.msra.mxu0 %v3713
        %3766 = vmatpush.msra.mxu0 %v3711
        %3767 = vmatpush.msra.mxu0 %v3709
        %3768 = vmatpush.msra.mxu0 %v3707
        %3769 = vmatpush.msra.mxu0 %v3705
        %3770 = vmatpush.msra.mxu0 %v3703
        %3771 = vmatpush.msra.mxu0 %v3701
        %3772 = vmatpush.msra.mxu0 %v3699
        %3773 = vmatpush.msra.mxu0 %v3697
        %3774 = vmatpush.msra.mxu0 %v3695
        %3775 = vmatmul.f32.gmra.mxu0 %v3691
        %v3776 = vpop.f32.mrf.mxu0
        %v3777 = vadd.f32 %v3738, %v3776
        %3778 = vmatmul.f32.gmra.mxu0 %v3693
        %v3779 = vpop.f32.mrf.mxu0
        %v3780 = vadd.f32 %v3743, %v3779
        %3781 = vdwg.mxu0
        %3782 = vmatpush.msra.mxu0 0.0
        %3783 = vmatpush.msra.mxu0 0.0
        %3784 = vmatpush.msra.mxu0 0.0
        %3785 = vmatpush.msra.mxu0 0.0
        %3786 = vmatpush.msra.mxu0 0.0
        %3787 = vmatpush.msra.mxu0 0.0
        %3788 = vmatpush.msra.mxu0 0.0
        %3789 = vmatpush.msra.mxu0 0.0
        %3790 = vmatpush.msra.mxu0 0.0
        %3791 = vmatpush.msra.mxu0 0.0
        %3792 = vmatpush.msra.mxu0 0.0
        %3793 = vmatpush.msra.mxu0 0.0
        %3794 = vmatpush.msra.mxu0 0.0
        %3795 = vmatpush.msra.mxu0 %v3754
        %3796 = vmatpush.msra.mxu0 %v3729
        %3797 = vmatpush.msra.mxu0 %v3727
        %3798 = vmatmul.f32.gmra.mxu0 %v3747
        %v3799 = vpop.f32.mrf.mxu0
        %v3800 = vadd.f32 %v3777, %v3799
        %3801 = vmatmul.f32.gmra.mxu0 %v3750
        %v3802 = vpop.f32.mrf.mxu0
        %v3803 = vadd.f32 %v3780, %v3802
        %3804 = vdwg.mxu0
        %3805 = vmatpush.msra.mxu0 %v3726
        %3806 = vmatpush.msra.mxu0 %v3724
        %3807 = vmatpush.msra.mxu0 %v3722
        %3808 = vmatpush.msra.mxu0 %v3720
        %3809 = vmatpush.msra.mxu0 %v3718
        %3810 = vmatpush.msra.mxu0 %v3716
        %3811 = vmatpush.msra.mxu0 %v3714
        %3812 = vmatpush.msra.mxu0 %v3712
        %3813 = vmatpush.msra.mxu0 %v3710
        %3814 = vmatpush.msra.mxu0 %v3708
        %3815 = vmatpush.msra.mxu0 %v3706
        %3816 = vmatpush.msra.mxu0 %v3704
        %3817 = vmatpush.msra.mxu0 %v3702
        %3818 = vmatpush.msra.mxu0 %v3700
        %3819 = vmatpush.msra.mxu0 %v3698
        %3820 = vmatpush.msra.mxu0 %v3696
        %3821 = vmatmul.f32.gmra.mxu0 %v3691
        %v3822 = vpop.f32.mrf.mxu0
        %v3823 = vadd.f32 %v3738, %v3822
        %3824 = vmatmul.f32.gmra.mxu0 %v3693
        %v3825 = vpop.f32.mrf.mxu0
        %v3826 = vadd.f32 %v3743, %v3825
        %3827 = vdwg.mxu0
        %3828 = vmatpush.msra.mxu0 0.0
        %3829 = vmatpush.msra.mxu0 0.0
        %3830 = vmatpush.msra.mxu0 0.0
        %3831 = vmatpush.msra.mxu0 0.0
        %3832 = vmatpush.msra.mxu0 0.0
        %3833 = vmatpush.msra.mxu0 0.0
        %3834 = vmatpush.msra.mxu0 0.0
        %3835 = vmatpush.msra.mxu0 0.0
        %3836 = vmatpush.msra.mxu0 0.0
        %3837 = vmatpush.msra.mxu0 0.0
        %3838 = vmatpush.msra.mxu0 0.0
        %3839 = vmatpush.msra.mxu0 0.0
        %3840 = vmatpush.msra.mxu0 0.0
        %3841 = vmatpush.msra.mxu0 %v3757
        %3842 = vmatpush.msra.mxu0 %v3730
        %3843 = vmatpush.msra.mxu0 %v3728
        %3844 = vmatmul.f32.gmra.mxu0 %v3747
        %v3845 = vpop.f32.mrf.mxu0
        %v3846 = vadd.f32 %v3823, %v3845
        %3847 = vmatmul.f32.gmra.mxu0 %v3750
        %v3848 = vpop.f32.mrf.mxu0
        %v3849 = vadd.f32 %v3826, %v3848
        %3850 = vdwg.mxu0
        %v3851 = vmax.f32 %v3800, 0.0
        %v3852 = vmax.f32 %v3846, 0.0
        %v3853 = vmax.f32 %v3803, 0.0
        %v3854 = vmax.f32 %v3849, 0.0
        %3855 = vst [vmem:[#allocation6] sm:$0xff] %v3851
        %3856 = vst.msk [vmem:[#allocation6 + $0x8] sm:$0xff] %vm3685, %v3852
        %3857 = vst [vmem:[#allocation6 + $0x10] sm:$0xff] %v3853
        %3858 = vst.msk [vmem:[#allocation6 + $0x18] sm:$0xff] %vm3685, %v3854
        %v3859 = vld [vmem:[#allocation6] sm:$0xff]
        %v3860 = vld [vmem:[#allocation6 + $0x8] sm:$0xff]
        %v3861 = vld [vmem:[#allocation6 + $0x10] sm:$0xff]
        %v3862 = vld [vmem:[#allocation6 + $0x18] sm:$0xff]
        %3867 = vrot.lane.b32.xlu0 %v3859, 127
        %v3868 = vpop.permute.xlu0 %3867
        %3869 = vrot.lane.b32.xlu0 %v3860, 127
        %v3870 = vpop.permute.xlu0 %3869
        %3871 = vrot.lane.b32.xlu0 %v3861, 127
        %v3872 = vpop.permute.xlu0 %3871
        %3873 = vrot.lane.b32.xlu0 %v3862, 127
        %v3874 = vpop.permute.xlu0 %3873
        %v3875 = vsel %vm512, %v3868, %v3870
        %v3876 = vsel %vm512, %v3872, %v3874
        %v3881 = vmax.f32 %v3859, %v3875
        %v3882 = vmax.f32 %v3860, %v3870
        %v3883 = vmax.f32 %v3861, %v3876
        %v3884 = vmax.f32 %v3862, %v3874
        %3889 = vrot.lane.b32.xlu0 %v3881, 114
        %v3890 = vpop.permute.xlu0 %3889
        %3891 = vrot.lane.b32.xlu0 %v3882, 114
        %v3892 = vpop.permute.xlu0 %3891
        %3893 = vrot.lane.b32.xlu0 %v3883, 114
        %v3894 = vpop.permute.xlu0 %3893
        %3895 = vrot.lane.b32.xlu0 %v3884, 114
        %v3896 = vpop.permute.xlu0 %3895
        %v3897 = vsel %vm3372, %v3890, %v3892
        %v3898 = vsel %vm3372, %v3894, %v3896
        %v3903 = vmax.f32 %v3881, %v3897
        %v3904 = vmax.f32 %v3882, %v3892
        %v3905 = vmax.f32 %v3883, %v3898
        %v3906 = vmax.f32 %v3884, %v3896
        %v3907 = vld [vmem:[%s6] sm:$0xff]
        %v3908 = vld [vmem:[%s6 + $0x8] sm:$0xff]
        %v3909 = vld [vmem:[%s6 + $0x10] sm:$0xff]
        %v3910 = vld [vmem:[%s6 + $0x18] sm:$0xff]
        %v3911 = vld [vmem:[%s6 + $0x20] sm:$0xff]
        %v3912 = vld [vmem:[%s6 + $0x28] sm:$0xff]
        %v3913 = vld [vmem:[%s6 + $0x30] sm:$0xff]
        %v3914 = vld [vmem:[%s6 + $0x38] sm:$0xff]
        %v3915 = vld [vmem:[%s6 + $0x40] sm:$0xff]
        %v3916 = vld [vmem:[%s6 + $0x48] sm:$0xff]
        %v3917 = vld [vmem:[%s6 + $0x50] sm:$0xff]
        %v3918 = vld [vmem:[%s6 + $0x58] sm:$0xff]
        %v3919 = vld [vmem:[%s6 + $0x60] sm:$0xff]
        %v3920 = vld [vmem:[%s6 + $0x68] sm:$0xff]
        %v3921 = vld [vmem:[%s6 + $0x70] sm:$0xff]
        %v3922 = vld [vmem:[%s6 + $0x78] sm:$0xff]
        %v3923 = vld [vmem:[%s6 + $0x80] sm:$0xff]
        %v3924 = vld [vmem:[%s6 + $0x88] sm:$0xff]
        %v3925 = vld [vmem:[%s6 + $0x90] sm:$0xff]
        %v3926 = vld [vmem:[%s6 + $0x98] sm:$0xff]
        %v3927 = vld [vmem:[%s6 + $0xa0] sm:$0xff]
        %v3928 = vld [vmem:[%s6 + $0xa8] sm:$0xff]
        %v3929 = vld [vmem:[%s6 + $0xb0] sm:$0x1f]
        %vm3930 = vcmask 433152
        %v3932 = vsel %vm3930, %v3904, 0
        %v3935 = vsel %vm3930, %v3906, 0
        %vm3937 = vcmask 1044480
        %v3939 = vsel %vm3937, %v3929, 0
        %3941 = vmatpush.msra.mxu0 %v3922
        %3942 = vmatpush.msra.mxu0 %v3921
        %3943 = vmatpush.msra.mxu0 %v3920
        %3944 = vmatpush.msra.mxu0 %v3919
        %3945 = vmatpush.msra.mxu0 %v3918
        %3946 = vmatpush.msra.mxu0 %v3917
        %3947 = vmatpush.msra.mxu0 %v3916
        %3948 = vmatpush.msra.mxu0 %v3915
        %3949 = vmatpush.msra.mxu0 %v3914
        %3950 = vmatpush.msra.mxu0 %v3913
        %3951 = vmatpush.msra.mxu0 %v3912
        %3952 = vmatpush.msra.mxu0 %v3911
        %3953 = vmatpush.msra.mxu0 %v3910
        %3954 = vmatpush.msra.mxu0 %v3909
        %3955 = vmatpush.msra.mxu0 %v3908
        %3956 = vmatpush.msra.mxu0 %v3907
        %3957 = vmatmul.f32.gmra.mxu0 %v3903
        %v3958 = vpop.f32.mrf.mxu0
        %v3959 = vadd.f32 0.0, %v3958
        %3960 = vmatmul.f32.gmra.mxu0 %v3905
        %v3961 = vpop.f32.mrf.mxu0
        %v3962 = vadd.f32 0.0, %v3961
        %3963 = vdwg.mxu0
        %3964 = vmatpush.msra.mxu0 0.0
        %3965 = vmatpush.msra.mxu0 0.0
        %3966 = vmatpush.msra.mxu0 0.0
        %3967 = vmatpush.msra.mxu0 0.0
        %3968 = vmatpush.msra.mxu0 0.0
        %3969 = vmatpush.msra.mxu0 0.0
        %3970 = vmatpush.msra.mxu0 0.0
        %3971 = vmatpush.msra.mxu0 0.0
        %3972 = vmatpush.msra.mxu0 0.0
        %3973 = vmatpush.msra.mxu0 %v3939
        %3974 = vmatpush.msra.mxu0 %v3928
        %3975 = vmatpush.msra.mxu0 %v3927
        %3976 = vmatpush.msra.mxu0 %v3926
        %3977 = vmatpush.msra.mxu0 %v3925
        %3978 = vmatpush.msra.mxu0 %v3924
        %3979 = vmatpush.msra.mxu0 %v3923
        %3980 = vmatmul.f32.gmra.mxu0 %v3932
        %v3981 = vpop.f32.mrf.mxu0
        %v3982 = vadd.f32 %v3959, %v3981
        %3983 = vmatmul.f32.gmra.mxu0 %v3935
        %v3984 = vpop.f32.mrf.mxu0
        %v3985 = vadd.f32 %v3962, %v3984
        %3986 = vdwg.mxu0
        %3987 = vst.msk [vmem:[#allocation7] sm:$0xff] %vm1625, %v3982
        %3988 = vst.msk [vmem:[#allocation7 + $0x8] sm:$0xff] %vm1625, %v3985
        %v3989 = vld [vmem:[%s8] sm:$0x1]
        %v3990 = vld [vmem:[#allocation7] sm:$0x1]
        %v3991 = vld [vmem:[#allocation10] sm:$0xff]
        %v3992 = vld [vmem:[#allocation10 + $0x8] sm:$0xff]
        %v3993 = vld [vmem:[#allocation10 + $0x10] sm:$0xff]
        %v3994 = vld [vmem:[#allocation10 + $0x18] sm:$0xff]
        %v3996 = vsel %vm1625, %v3990, 0
        %3998 = vmatpush.msra.mxu0 0.0
        %3999 = vmatpush.msra.mxu0 0.0
        %4000 = vmatpush.msra.mxu0 0.0
        %4001 = vmatpush.msra.mxu0 0.0
        %4002 = vmatpush.msra.mxu0 0.0
        %4003 = vmatpush.msra.mxu0 0.0
        %4004 = vmatpush.msra.mxu0 0.0
        %4005 = vmatpush.msra.mxu0 0.0
        %4006 = vmatpush.msra.mxu0 0.0
        %4007 = vmatpush.msra.mxu0 0.0
        %4008 = vmatpush.msra.mxu0 0.0
        %4009 = vmatpush.msra.mxu0 0.0
        %4010 = vmatpush.msra.mxu0 %v3994
        %4011 = vmatpush.msra.mxu0 %v3993
        %4012 = vmatpush.msra.mxu0 %v3992
        %4013 = vmatpush.msra.mxu0 %v3991
        %4014 = vmatmul.f32.gmra.mxu0 %v3996
        %v4015 = vpop.f32.mrf.mxu0
        %v4016 = vadd.f32 0.0, %v4015
        %4017 = vdwg.mxu0
        %v4018 = vadd.f32 %v3989, %v4016
        %v4019 = vld [vmem:[#allocation7 + $0x1] sm:$0x1]
        %s4020 = scalar_lea.vmem [#allocation10], 32
        %v4021 = vld [vmem:[%s4020] sm:$0xff]
        %v4022 = vld [vmem:[%s4020 + $0x8] sm:$0xff]
        %v4023 = vld [vmem:[%s4020 + $0x10] sm:$0xff]
        %v4024 = vld [vmem:[%s4020 + $0x18] sm:$0xff]
        %v4026 = vsel %vm1625, %v4019, 0
        %4028 = vmatpush.msra.mxu0 0.0
        %4029 = vmatpush.msra.mxu0 0.0
        %4030 = vmatpush.msra.mxu0 0.0
        %4031 = vmatpush.msra.mxu0 0.0
        %4032 = vmatpush.msra.mxu0 0.0
        %4033 = vmatpush.msra.mxu0 0.0
        %4034 = vmatpush.msra.mxu0 0.0
        %4035 = vmatpush.msra.mxu0 0.0
        %4036 = vmatpush.msra.mxu0 0.0
        %4037 = vmatpush.msra.mxu0 0.0
        %4038 = vmatpush.msra.mxu0 0.0
        %4039 = vmatpush.msra.mxu0 0.0
        %4040 = vmatpush.msra.mxu0 %v4024
        %4041 = vmatpush.msra.mxu0 %v4023
        %4042 = vmatpush.msra.mxu0 %v4022
        %4043 = vmatpush.msra.mxu0 %v4021
        %4044 = vmatmul.f32.gmra.mxu0 %v4026
        %v4045 = vpop.f32.mrf.mxu0
        %v4046 = vadd.f32 0.0, %v4045
        %4047 = vdwg.mxu0
        %v4048 = vadd.f32 %v4018, %v4046
        %v4049 = vld [vmem:[#allocation7 + $0x2] sm:$0x1]
        %s4050 = scalar_lea.vmem [#allocation10], 64
        %v4051 = vld [vmem:[%s4050] sm:$0xff]
        %v4052 = vld [vmem:[%s4050 + $0x8] sm:$0xff]
        %v4053 = vld [vmem:[%s4050 + $0x10] sm:$0xff]
        %v4054 = vld [vmem:[%s4050 + $0x18] sm:$0xff]
        %v4056 = vsel %vm1625, %v4049, 0
        %4058 = vmatpush.msra.mxu0 0.0
        %4059 = vmatpush.msra.mxu0 0.0
        %4060 = vmatpush.msra.mxu0 0.0
        %4061 = vmatpush.msra.mxu0 0.0
        %4062 = vmatpush.msra.mxu0 0.0
        %4063 = vmatpush.msra.mxu0 0.0
        %4064 = vmatpush.msra.mxu0 0.0
        %4065 = vmatpush.msra.mxu0 0.0
        %4066 = vmatpush.msra.mxu0 0.0
        %4067 = vmatpush.msra.mxu0 0.0
        %4068 = vmatpush.msra.mxu0 0.0
        %4069 = vmatpush.msra.mxu0 0.0
        %4070 = vmatpush.msra.mxu0 %v4054
        %4071 = vmatpush.msra.mxu0 %v4053
        %4072 = vmatpush.msra.mxu0 %v4052
        %4073 = vmatpush.msra.mxu0 %v4051
        %4074 = vmatmul.f32.gmra.mxu0 %v4056
        %v4075 = vpop.f32.mrf.mxu0
        %v4076 = vadd.f32 0.0, %v4075
        %4077 = vdwg.mxu0
        %v4078 = vadd.f32 %v4048, %v4076
        %v4079 = vld [vmem:[#allocation7 + $0x3] sm:$0x1]
        %s4080 = scalar_lea.vmem [#allocation10], 96
        %v4081 = vld [vmem:[%s4080] sm:$0xff]
        %v4082 = vld [vmem:[%s4080 + $0x8] sm:$0xff]
        %v4083 = vld [vmem:[%s4080 + $0x10] sm:$0xff]
        %v4084 = vld [vmem:[%s4080 + $0x18] sm:$0xff]
        %v4086 = vsel %vm1625, %v4079, 0
        %4088 = vmatpush.msra.mxu0 0.0
        %4089 = vmatpush.msra.mxu0 0.0
        %4090 = vmatpush.msra.mxu0 0.0
        %4091 = vmatpush.msra.mxu0 0.0
        %4092 = vmatpush.msra.mxu0 0.0
        %4093 = vmatpush.msra.mxu0 0.0
        %4094 = vmatpush.msra.mxu0 0.0
        %4095 = vmatpush.msra.mxu0 0.0
        %4096 = vmatpush.msra.mxu0 0.0
        %4097 = vmatpush.msra.mxu0 0.0
        %4098 = vmatpush.msra.mxu0 0.0
        %4099 = vmatpush.msra.mxu0 0.0
        %4100 = vmatpush.msra.mxu0 %v4084
        %4101 = vmatpush.msra.mxu0 %v4083
        %4102 = vmatpush.msra.mxu0 %v4082
        %4103 = vmatpush.msra.mxu0 %v4081
        %4104 = vmatmul.f32.gmra.mxu0 %v4086
        %v4105 = vpop.f32.mrf.mxu0
        %v4106 = vadd.f32 0.0, %v4105
        %4107 = vdwg.mxu0
        %v4108 = vadd.f32 %v4078, %v4106
        %v4109 = vld [vmem:[#allocation7 + $0x4] sm:$0x1]
        %s4110 = scalar_lea.vmem [#allocation10], 128
        %v4111 = vld [vmem:[%s4110] sm:$0xff]
        %v4112 = vld [vmem:[%s4110 + $0x8] sm:$0xff]
        %v4113 = vld [vmem:[%s4110 + $0x10] sm:$0xff]
        %v4114 = vld [vmem:[%s4110 + $0x18] sm:$0xff]
        %v4116 = vsel %vm1625, %v4109, 0
        %4118 = vmatpush.msra.mxu0 0.0
        %4119 = vmatpush.msra.mxu0 0.0
        %4120 = vmatpush.msra.mxu0 0.0
        %4121 = vmatpush.msra.mxu0 0.0
        %4122 = vmatpush.msra.mxu0 0.0
        %4123 = vmatpush.msra.mxu0 0.0
        %4124 = vmatpush.msra.mxu0 0.0
        %4125 = vmatpush.msra.mxu0 0.0
        %4126 = vmatpush.msra.mxu0 0.0
        %4127 = vmatpush.msra.mxu0 0.0
        %4128 = vmatpush.msra.mxu0 0.0
        %4129 = vmatpush.msra.mxu0 0.0
        %4130 = vmatpush.msra.mxu0 %v4114
        %4131 = vmatpush.msra.mxu0 %v4113
        %4132 = vmatpush.msra.mxu0 %v4112
        %4133 = vmatpush.msra.mxu0 %v4111
        %4134 = vmatmul.f32.gmra.mxu0 %v4116
        %v4135 = vpop.f32.mrf.mxu0
        %v4136 = vadd.f32 0.0, %v4135
        %4137 = vdwg.mxu0
        %v4138 = vadd.f32 %v4108, %v4136
        %v4139 = vld [vmem:[#allocation7 + $0x5] sm:$0x1]
        %s4140 = scalar_lea.vmem [#allocation10], 160
        %v4141 = vld [vmem:[%s4140] sm:$0xff]
        %v4142 = vld [vmem:[%s4140 + $0x8] sm:$0xff]
        %v4143 = vld [vmem:[%s4140 + $0x10] sm:$0xff]
        %v4144 = vld [vmem:[%s4140 + $0x18] sm:$0xff]
        %v4146 = vsel %vm1625, %v4139, 0
        %4148 = vmatpush.msra.mxu0 0.0
        %4149 = vmatpush.msra.mxu0 0.0
        %4150 = vmatpush.msra.mxu0 0.0
        %4151 = vmatpush.msra.mxu0 0.0
        %4152 = vmatpush.msra.mxu0 0.0
        %4153 = vmatpush.msra.mxu0 0.0
        %4154 = vmatpush.msra.mxu0 0.0
        %4155 = vmatpush.msra.mxu0 0.0
        %4156 = vmatpush.msra.mxu0 0.0
        %4157 = vmatpush.msra.mxu0 0.0
        %4158 = vmatpush.msra.mxu0 0.0
        %4159 = vmatpush.msra.mxu0 0.0
        %4160 = vmatpush.msra.mxu0 %v4144
        %4161 = vmatpush.msra.mxu0 %v4143
        %4162 = vmatpush.msra.mxu0 %v4142
        %4163 = vmatpush.msra.mxu0 %v4141
        %4164 = vmatmul.f32.gmra.mxu0 %v4146
        %v4165 = vpop.f32.mrf.mxu0
        %v4166 = vadd.f32 0.0, %v4165
        %4167 = vdwg.mxu0
        %v4168 = vadd.f32 %v4138, %v4166
        %v4169 = vld [vmem:[#allocation7 + $0x6] sm:$0x1]
        %s4170 = scalar_lea.vmem [#allocation10], 192
        %v4171 = vld [vmem:[%s4170] sm:$0xff]
        %v4172 = vld [vmem:[%s4170 + $0x8] sm:$0xff]
        %v4173 = vld [vmem:[%s4170 + $0x10] sm:$0xff]
        %v4174 = vld [vmem:[%s4170 + $0x18] sm:$0xff]
        %v4176 = vsel %vm1625, %v4169, 0
        %4178 = vmatpush.msra.mxu0 0.0
        %4179 = vmatpush.msra.mxu0 0.0
        %4180 = vmatpush.msra.mxu0 0.0
        %4181 = vmatpush.msra.mxu0 0.0
        %4182 = vmatpush.msra.mxu0 0.0
        %4183 = vmatpush.msra.mxu0 0.0
        %4184 = vmatpush.msra.mxu0 0.0
        %4185 = vmatpush.msra.mxu0 0.0
        %4186 = vmatpush.msra.mxu0 0.0
        %4187 = vmatpush.msra.mxu0 0.0
        %4188 = vmatpush.msra.mxu0 0.0
        %4189 = vmatpush.msra.mxu0 0.0
        %4190 = vmatpush.msra.mxu0 %v4174
        %4191 = vmatpush.msra.mxu0 %v4173
        %4192 = vmatpush.msra.mxu0 %v4172
        %4193 = vmatpush.msra.mxu0 %v4171
        %4194 = vmatmul.f32.gmra.mxu0 %v4176
        %v4195 = vpop.f32.mrf.mxu0
        %v4196 = vadd.f32 0.0, %v4195
        %4197 = vdwg.mxu0
        %v4198 = vadd.f32 %v4168, %v4196
        %v4199 = vld [vmem:[#allocation7 + $0x7] sm:$0x1]
        %s4200 = scalar_lea.vmem [#allocation10], 224
        %v4201 = vld [vmem:[%s4200] sm:$0xff]
        %v4202 = vld [vmem:[%s4200 + $0x8] sm:$0xff]
        %v4203 = vld [vmem:[%s4200 + $0x10] sm:$0xff]
        %v4204 = vld [vmem:[%s4200 + $0x18] sm:$0xff]
        %v4206 = vsel %vm1625, %v4199, 0
        %4208 = vmatpush.msra.mxu0 0.0
        %4209 = vmatpush.msra.mxu0 0.0
        %4210 = vmatpush.msra.mxu0 0.0
        %4211 = vmatpush.msra.mxu0 0.0
        %4212 = vmatpush.msra.mxu0 0.0
        %4213 = vmatpush.msra.mxu0 0.0
        %4214 = vmatpush.msra.mxu0 0.0
        %4215 = vmatpush.msra.mxu0 0.0
        %4216 = vmatpush.msra.mxu0 0.0
        %4217 = vmatpush.msra.mxu0 0.0
        %4218 = vmatpush.msra.mxu0 0.0
        %4219 = vmatpush.msra.mxu0 0.0
        %4220 = vmatpush.msra.mxu0 %v4204
        %4221 = vmatpush.msra.mxu0 %v4203
        %4222 = vmatpush.msra.mxu0 %v4202
        %4223 = vmatpush.msra.mxu0 %v4201
        %4224 = vmatmul.f32.gmra.mxu0 %v4206
        %v4225 = vpop.f32.mrf.mxu0
        %v4226 = vadd.f32 0.0, %v4225
        %4227 = vdwg.mxu0
        %v4228 = vadd.f32 %v4198, %v4226
        %v4229 = vld [vmem:[#allocation7 + $0x8] sm:$0x1]
        %s4230 = scalar_lea.vmem [#allocation10], 256
        %v4231 = vld [vmem:[%s4230] sm:$0xff]
        %v4232 = vld [vmem:[%s4230 + $0x8] sm:$0xff]
        %v4233 = vld [vmem:[%s4230 + $0x10] sm:$0xff]
        %v4234 = vld [vmem:[%s4230 + $0x18] sm:$0xff]
        %v4236 = vsel %vm1625, %v4229, 0
        %4238 = vmatpush.msra.mxu0 0.0
        %4239 = vmatpush.msra.mxu0 0.0
        %4240 = vmatpush.msra.mxu0 0.0
        %4241 = vmatpush.msra.mxu0 0.0
        %4242 = vmatpush.msra.mxu0 0.0
        %4243 = vmatpush.msra.mxu0 0.0
        %4244 = vmatpush.msra.mxu0 0.0
        %4245 = vmatpush.msra.mxu0 0.0
        %4246 = vmatpush.msra.mxu0 0.0
        %4247 = vmatpush.msra.mxu0 0.0
        %4248 = vmatpush.msra.mxu0 0.0
        %4249 = vmatpush.msra.mxu0 0.0
        %4250 = vmatpush.msra.mxu0 %v4234
        %4251 = vmatpush.msra.mxu0 %v4233
        %4252 = vmatpush.msra.mxu0 %v4232
        %4253 = vmatpush.msra.mxu0 %v4231
        %4254 = vmatmul.f32.gmra.mxu0 %v4236
        %v4255 = vpop.f32.mrf.mxu0
        %v4256 = vadd.f32 0.0, %v4255
        %4257 = vdwg.mxu0
        %v4258 = vadd.f32 %v4228, %v4256
        %v4259 = vld [vmem:[#allocation7 + $0x9] sm:$0x1]
        %s4260 = scalar_lea.vmem [#allocation10], 288
        %v4261 = vld [vmem:[%s4260] sm:$0xff]
        %v4262 = vld [vmem:[%s4260 + $0x8] sm:$0xff]
        %v4263 = vld [vmem:[%s4260 + $0x10] sm:$0xff]
        %v4264 = vld [vmem:[%s4260 + $0x18] sm:$0xff]
        %v4266 = vsel %vm1625, %v4259, 0
        %4268 = vmatpush.msra.mxu0 0.0
        %4269 = vmatpush.msra.mxu0 0.0
        %4270 = vmatpush.msra.mxu0 0.0
        %4271 = vmatpush.msra.mxu0 0.0
        %4272 = vmatpush.msra.mxu0 0.0
        %4273 = vmatpush.msra.mxu0 0.0
        %4274 = vmatpush.msra.mxu0 0.0
        %4275 = vmatpush.msra.mxu0 0.0
        %4276 = vmatpush.msra.mxu0 0.0
        %4277 = vmatpush.msra.mxu0 0.0
        %4278 = vmatpush.msra.mxu0 0.0
        %4279 = vmatpush.msra.mxu0 0.0
        %4280 = vmatpush.msra.mxu0 %v4264
        %4281 = vmatpush.msra.mxu0 %v4263
        %4282 = vmatpush.msra.mxu0 %v4262
        %4283 = vmatpush.msra.mxu0 %v4261
        %4284 = vmatmul.f32.gmra.mxu0 %v4266
        %v4285 = vpop.f32.mrf.mxu0
        %v4286 = vadd.f32 0.0, %v4285
        %4287 = vdwg.mxu0
        %v4288 = vadd.f32 %v4258, %v4286
        %v4289 = vld [vmem:[#allocation7 + $0xa] sm:$0x1]
        %s4290 = scalar_lea.vmem [#allocation10], 320
        %v4291 = vld [vmem:[%s4290] sm:$0xff]
        %v4292 = vld [vmem:[%s4290 + $0x8] sm:$0xff]
        %v4293 = vld [vmem:[%s4290 + $0x10] sm:$0xff]
        %v4294 = vld [vmem:[%s4290 + $0x18] sm:$0xff]
        %v4296 = vsel %vm1625, %v4289, 0
        %4298 = vmatpush.msra.mxu0 0.0
        %4299 = vmatpush.msra.mxu0 0.0
        %4300 = vmatpush.msra.mxu0 0.0
        %4301 = vmatpush.msra.mxu0 0.0
        %4302 = vmatpush.msra.mxu0 0.0
        %4303 = vmatpush.msra.mxu0 0.0
        %4304 = vmatpush.msra.mxu0 0.0
        %4305 = vmatpush.msra.mxu0 0.0
        %4306 = vmatpush.msra.mxu0 0.0
        %4307 = vmatpush.msra.mxu0 0.0
        %4308 = vmatpush.msra.mxu0 0.0
        %4309 = vmatpush.msra.mxu0 0.0
        %4310 = vmatpush.msra.mxu0 %v4294
        %4311 = vmatpush.msra.mxu0 %v4293
        %4312 = vmatpush.msra.mxu0 %v4292
        %4313 = vmatpush.msra.mxu0 %v4291
        %4314 = vmatmul.f32.gmra.mxu0 %v4296
        %v4315 = vpop.f32.mrf.mxu0
        %v4316 = vadd.f32 0.0, %v4315
        %4317 = vdwg.mxu0
        %v4318 = vadd.f32 %v4288, %v4316
        %v4319 = vld [vmem:[#allocation7 + $0xb] sm:$0x1]
        %s4320 = scalar_lea.vmem [#allocation10], 352
        %v4321 = vld [vmem:[%s4320] sm:$0xff]
        %v4322 = vld [vmem:[%s4320 + $0x8] sm:$0xff]
        %v4323 = vld [vmem:[%s4320 + $0x10] sm:$0xff]
        %v4324 = vld [vmem:[%s4320 + $0x18] sm:$0xff]
        %v4326 = vsel %vm1625, %v4319, 0
        %4328 = vmatpush.msra.mxu0 0.0
        %4329 = vmatpush.msra.mxu0 0.0
        %4330 = vmatpush.msra.mxu0 0.0
        %4331 = vmatpush.msra.mxu0 0.0
        %4332 = vmatpush.msra.mxu0 0.0
        %4333 = vmatpush.msra.mxu0 0.0
        %4334 = vmatpush.msra.mxu0 0.0
        %4335 = vmatpush.msra.mxu0 0.0
        %4336 = vmatpush.msra.mxu0 0.0
        %4337 = vmatpush.msra.mxu0 0.0
        %4338 = vmatpush.msra.mxu0 0.0
        %4339 = vmatpush.msra.mxu0 0.0
        %4340 = vmatpush.msra.mxu0 %v4324
        %4341 = vmatpush.msra.mxu0 %v4323
        %4342 = vmatpush.msra.mxu0 %v4322
        %4343 = vmatpush.msra.mxu0 %v4321
        %4344 = vmatmul.f32.gmra.mxu0 %v4326
        %v4345 = vpop.f32.mrf.mxu0
        %v4346 = vadd.f32 0.0, %v4345
        %4347 = vdwg.mxu0
        %v4348 = vadd.f32 %v4318, %v4346
        %v4349 = vld [vmem:[#allocation7 + $0xc] sm:$0x1]
        %s4350 = scalar_lea.vmem [#allocation10], 384
        %v4351 = vld [vmem:[%s4350] sm:$0xff]
        %v4352 = vld [vmem:[%s4350 + $0x8] sm:$0xff]
        %v4353 = vld [vmem:[%s4350 + $0x10] sm:$0xff]
        %v4354 = vld [vmem:[%s4350 + $0x18] sm:$0xff]
        %v4356 = vsel %vm1625, %v4349, 0
        %4358 = vmatpush.msra.mxu0 0.0
        %4359 = vmatpush.msra.mxu0 0.0
        %4360 = vmatpush.msra.mxu0 0.0
        %4361 = vmatpush.msra.mxu0 0.0
        %4362 = vmatpush.msra.mxu0 0.0
        %4363 = vmatpush.msra.mxu0 0.0
        %4364 = vmatpush.msra.mxu0 0.0
        %4365 = vmatpush.msra.mxu0 0.0
        %4366 = vmatpush.msra.mxu0 0.0
        %4367 = vmatpush.msra.mxu0 0.0
        %4368 = vmatpush.msra.mxu0 0.0
        %4369 = vmatpush.msra.mxu0 0.0
        %4370 = vmatpush.msra.mxu0 %v4354
        %4371 = vmatpush.msra.mxu0 %v4353
        %4372 = vmatpush.msra.mxu0 %v4352
        %4373 = vmatpush.msra.mxu0 %v4351
        %4374 = vmatmul.f32.gmra.mxu0 %v4356
        %v4375 = vpop.f32.mrf.mxu0
        %v4376 = vadd.f32 0.0, %v4375
        %4377 = vdwg.mxu0
        %v4378 = vadd.f32 %v4348, %v4376
        %v4379 = vld [vmem:[#allocation7 + $0xd] sm:$0x1]
        %s4380 = scalar_lea.vmem [#allocation10], 416
        %v4381 = vld [vmem:[%s4380] sm:$0xff]
        %v4382 = vld [vmem:[%s4380 + $0x8] sm:$0xff]
        %v4383 = vld [vmem:[%s4380 + $0x10] sm:$0xff]
        %v4384 = vld [vmem:[%s4380 + $0x18] sm:$0xff]
        %v4386 = vsel %vm1625, %v4379, 0
        %4388 = vmatpush.msra.mxu0 0.0
        %4389 = vmatpush.msra.mxu0 0.0
        %4390 = vmatpush.msra.mxu0 0.0
        %4391 = vmatpush.msra.mxu0 0.0
        %4392 = vmatpush.msra.mxu0 0.0
        %4393 = vmatpush.msra.mxu0 0.0
        %4394 = vmatpush.msra.mxu0 0.0
        %4395 = vmatpush.msra.mxu0 0.0
        %4396 = vmatpush.msra.mxu0 0.0
        %4397 = vmatpush.msra.mxu0 0.0
        %4398 = vmatpush.msra.mxu0 0.0
        %4399 = vmatpush.msra.mxu0 0.0
        %4400 = vmatpush.msra.mxu0 %v4384
        %4401 = vmatpush.msra.mxu0 %v4383
        %4402 = vmatpush.msra.mxu0 %v4382
        %4403 = vmatpush.msra.mxu0 %v4381
        %4404 = vmatmul.f32.gmra.mxu0 %v4386
        %v4405 = vpop.f32.mrf.mxu0
        %v4406 = vadd.f32 0.0, %v4405
        %4407 = vdwg.mxu0
        %v4408 = vadd.f32 %v4378, %v4406
        %v4409 = vld [vmem:[#allocation7 + $0xe] sm:$0x1]
        %s4410 = scalar_lea.vmem [#allocation10], 448
        %v4411 = vld [vmem:[%s4410] sm:$0xff]
        %v4412 = vld [vmem:[%s4410 + $0x8] sm:$0xff]
        %v4413 = vld [vmem:[%s4410 + $0x10] sm:$0xff]
        %v4414 = vld [vmem:[%s4410 + $0x18] sm:$0xff]
        %v4416 = vsel %vm1625, %v4409, 0
        %4418 = vmatpush.msra.mxu0 0.0
        %4419 = vmatpush.msra.mxu0 0.0
        %4420 = vmatpush.msra.mxu0 0.0
        %4421 = vmatpush.msra.mxu0 0.0
        %4422 = vmatpush.msra.mxu0 0.0
        %4423 = vmatpush.msra.mxu0 0.0
        %4424 = vmatpush.msra.mxu0 0.0
        %4425 = vmatpush.msra.mxu0 0.0
        %4426 = vmatpush.msra.mxu0 0.0
        %4427 = vmatpush.msra.mxu0 0.0
        %4428 = vmatpush.msra.mxu0 0.0
        %4429 = vmatpush.msra.mxu0 0.0
        %4430 = vmatpush.msra.mxu0 %v4414
        %4431 = vmatpush.msra.mxu0 %v4413
        %4432 = vmatpush.msra.mxu0 %v4412
        %4433 = vmatpush.msra.mxu0 %v4411
        %4434 = vmatmul.f32.gmra.mxu0 %v4416
        %v4435 = vpop.f32.mrf.mxu0
        %v4436 = vadd.f32 0.0, %v4435
        %4437 = vdwg.mxu0
        %v4438 = vadd.f32 %v4408, %v4436
        %v4439 = vld [vmem:[#allocation7 + $0xf] sm:$0x1]
        %s4440 = scalar_lea.vmem [#allocation10], 480
        %v4441 = vld [vmem:[%s4440] sm:$0xff]
        %v4442 = vld [vmem:[%s4440 + $0x8] sm:$0xff]
        %v4443 = vld [vmem:[%s4440 + $0x10] sm:$0xff]
        %v4444 = vld [vmem:[%s4440 + $0x18] sm:$0xff]
        %v4446 = vsel %vm1625, %v4439, 0
        %4448 = vmatpush.msra.mxu0 0.0
        %4449 = vmatpush.msra.mxu0 0.0
        %4450 = vmatpush.msra.mxu0 0.0
        %4451 = vmatpush.msra.mxu0 0.0
        %4452 = vmatpush.msra.mxu0 0.0
        %4453 = vmatpush.msra.mxu0 0.0
        %4454 = vmatpush.msra.mxu0 0.0
        %4455 = vmatpush.msra.mxu0 0.0
        %4456 = vmatpush.msra.mxu0 0.0
        %4457 = vmatpush.msra.mxu0 0.0
        %4458 = vmatpush.msra.mxu0 0.0
        %4459 = vmatpush.msra.mxu0 0.0
        %4460 = vmatpush.msra.mxu0 %v4444
        %4461 = vmatpush.msra.mxu0 %v4443
        %4462 = vmatpush.msra.mxu0 %v4442
        %4463 = vmatpush.msra.mxu0 %v4441
        %4464 = vmatmul.f32.gmra.mxu0 %v4446
        %v4465 = vpop.f32.mrf.mxu0
        %v4466 = vadd.f32 0.0, %v4465
        %4467 = vdwg.mxu0
        %v4468 = vadd.f32 %v4438, %v4466
        %v4469 = vmax.f32 %v4468, 0.0
        %v4470 = vld [vmem:[%s9] sm:$0xff]
        %v4471 = vld [vmem:[%s9 + $0x8] sm:$0xff]
        %v4472 = vld [vmem:[%s9 + $0x10] sm:$0xff]
        %v4473 = vld [vmem:[%s9 + $0x18] sm:$0xff]
        %v4474 = vld [vmem:[%s9 + $0x20] sm:$0xff]
        %v4475 = vld [vmem:[%s9 + $0x28] sm:$0xff]
        %v4476 = vld [vmem:[%s9 + $0x30] sm:$0xff]
        %v4477 = vld [vmem:[%s9 + $0x38] sm:$0xff]
        %v4478 = vld [vmem:[%s9 + $0x40] sm:$0xff]
        %v4479 = vld [vmem:[%s9 + $0x48] sm:$0xff]
        %v4480 = vld [vmem:[%s9 + $0x50] sm:$0xff]
        %v4481 = vld [vmem:[%s9 + $0x58] sm:$0xff]
        %v4482 = vld [vmem:[%s9 + $0x60] sm:$0xff]
        %v4483 = vld [vmem:[%s9 + $0x68] sm:$0xff]
        %v4484 = vld [vmem:[%s9 + $0x70] sm:$0xff]
        %v4485 = vld [vmem:[%s9 + $0x78] sm:$0xff]
        %v4486 = vld [vmem:[%s10] sm:$0x1]
        %4487 = vmatpush.msra.mxu0 %v4485
        %4488 = vmatpush.msra.mxu0 %v4484
        %4489 = vmatpush.msra.mxu0 %v4483
        %4490 = vmatpush.msra.mxu0 %v4482
        %4491 = vmatpush.msra.mxu0 %v4481
        %4492 = vmatpush.msra.mxu0 %v4480
        %4493 = vmatpush.msra.mxu0 %v4479
        %4494 = vmatpush.msra.mxu0 %v4478
        %4495 = vmatpush.msra.mxu0 %v4477
        %4496 = vmatpush.msra.mxu0 %v4476
        %4497 = vmatpush.msra.mxu0 %v4475
        %4498 = vmatpush.msra.mxu0 %v4474
        %4499 = vmatpush.msra.mxu0 %v4473
        %4500 = vmatpush.msra.mxu0 %v4472
        %4501 = vmatpush.msra.mxu0 %v4471
        %4502 = vmatpush.msra.mxu0 %v4470
        %4503 = vmatmul.f32.gmra.mxu0 %v4469
        %v4504 = vpop.f32.mrf.mxu0
        %v4505 = vadd.f32 %v4486, %v4504
        %4506 = vdwg.mxu0
        %v4507 = vperm.slane %v4505, 0
        %4508 = vst [vmem:[%s418] sm:$0xff] %v4507
        %p4509 = scmp.lt.s32.totalorder %s24, 1
        %s4510 = scalar_select %p4509, %s24, 1
        %s4511 = smul.addr %s4510, 8
        %s4512 = scalar_lea.vmem %s11, %s4511
        // Predicated region
        $region73: #{simplenet_forward.1} parent=63 // pred_check
          %p4513 = pneg %p278
        $region74: #{simplenet_forward.1} parent=63 // pred_check_branch
          %4515 = sbr.rel (%p4513) target = $region76
        $region75: #{simplenet_forward.1} parent=63 // pred_region
          _
        $region76: #{simplenet_forward.1} parent=63 // pred_fallthru
          _
      $region64: #{simplenet_forward.1} parent=5 // pred_fallthru
        _
      %p4516 = scmp.le.s32.totalorder 2, %s19
      // Predicated region
      $region77: #{simplenet_forward.1} parent=5 // pred_check
        %p4517 = pneg %p4516
      $region78: #{simplenet_forward.1} parent=5 // pred_check_branch
        %4519 = sbr.rel (%p4517) target = $region80
      $region79: #{simplenet_forward.1} parent=5 // pred_region
        %s4520 = ssub.s32 %s19, 2
        // Predicated region
        $region81: #{simplenet_forward.1} parent=79 // pred_check
          %p4521 = pneg %p284
        $region82: #{simplenet_forward.1} parent=79 // pred_check_branch
          %4523 = sbr.rel (%p4521) target = $region84
        $region83: #{simplenet_forward.1} parent=79 // pred_region
          %p4524 = scmp.lt.s32.totalorder %s25, 1
          %s4525 = scalar_select %p4524, %s25, 1
          %s4526 = smul.addr %s4525, 8
          %s4527 = scalar_lea.vmem %s11, %s4526
        $region84: #{simplenet_forward.1} parent=79 // pred_fallthru
          _
      $region80: #{simplenet_forward.1} parent=5 // pred_fallthru
        _
    $region6: #{simplenet_forward.1} parent=1 // loop_footer
      %s23 = sadd.s32 1, %s19
    $region7: #{simplenet_forward.1} parent=1 // loop_footer_branch
      %18 = sbr.rel target = $region3
    $region8: #{simplenet_forward.1} parent=1 // loop_exit
      _
    %4528 = vsyncpa [#allocation9], 1
    %s4529 = scalar_lea.sflag [#allocation9], 1
    %4530 = vsyncpa %s4529, 1
    %4531 = vsyncpa [#allocation11], 1

</llo_original>
